<compile_context>
chip_gen: v5e
topology: v5e:2x2
jax: 0.10.0
libtpu: 0.0.40
codegen_flags: <defaults>
</compile_context>

<pallas_src>
import functools

import jax
import jax.numpy as jnp
from jax import lax
from jax.experimental import pallas as pl
from jax.experimental.pallas import tpu as pltpu


def cbam_kernel(x_ref, w1_ref, b1_ref, w2t_ref, b2_ref, wsa_ref, o_ref, *, H, W):
    # x_ref:   (TB, C, H*W) VMEM  (lane-dense: H*W in lanes)
    # w1_ref:  (Cr, C)      VMEM  fc1 weight
    # b1_ref:  (Cr,)        SMEM  fc1 bias (scalar reads)
    # w2t_ref: (Cr, C)      VMEM  fc2 weight, transposed
    # b2_ref:  (1, C)       VMEM  fc2 bias
    # wsa_ref: (99,)        SMEM  7x7x2 spatial-conv weights (flattened) + bias
    # o_ref:   (TB, C, H*W) VMEM
    TB, C, HW = x_ref.shape
    Cr = w1_ref.shape[0]

    x = x_ref[...].astype(jnp.float32)                       # (TB, C, HW)

    # ---------------- Channel attention (VPU; MXU not worth it for tiny Cr) ---
    avg = jnp.sum(x, axis=-1) * (1.0 / float(HW))            # (TB, C) one lane reduce
    g = b2_ref[...]                                          # (1, C)
    for r in range(Cr):
        hr = jnp.sum(avg * w1_ref[r:r + 1, :], axis=-1, keepdims=True) + b1_ref[r]
        hr = jnp.maximum(hr, 0.0)                            # (TB, 1) ReLU
        g = g + hr * w2t_ref[r:r + 1, :]                     # (TB, C)
    g = jax.nn.sigmoid(g)                                    # (TB, C)
    xc = x * g[:, :, None]                                   # per-channel scale

    # ---------------- Spatial attention ---------------------------------------
    mp = jnp.max(xc, axis=1)                                 # (TB, HW) channel max (sublane reduce)
    ap = jnp.sum(xc, axis=1) * (1.0 / float(C))              # (TB, HW) channel mean

    # 7x7 conv, padding=3, evaluated in flattened space. A tap (dy, dx) reads
    # flat index p + off with off = (dy-3)*W + (dx-3). Vertical out-of-bounds
    # sources fall outside [0, HW) of the zero-padded vector; horizontal ones
    # wrap across rows and are killed by a per-dx column mask.
    P = 3 * W + 3                                            # max |off|
    zpad = jnp.zeros((TB, P), jnp.float32)
    mp_pad = jnp.concatenate([zpad, mp, zpad], axis=-1)      # (TB, HW + 2P)
    ap_pad = jnp.concatenate([zpad, ap, zpad], axis=-1)

    col = lax.broadcasted_iota(jnp.int32, (1, HW), 1) % W    # column index of each lane
    cmasks = [jnp.logical_and(col + (dx - 3) >= 0, col + (dx - 3) < W)
              for dx in range(7)]

    acc = jnp.full((TB, HW), wsa_ref[98], dtype=jnp.float32)  # start from conv bias
    for c, m_pad in enumerate((mp_pad, ap_pad)):
        for dy in range(7):
            for dx in range(7):
                off = (dy - 3) * W + (dx - 3)
                if abs(off) >= HW:
                    continue                                  # tap entirely out of bounds
                w = wsa_ref[c * 49 + dy * 7 + dx]
                src = m_pad[:, P + off: P + off + HW]         # static lane shift, (TB, HW)
                if dx != 3:
                    src = jnp.where(cmasks[dx], src, 0.0)
                acc = acc + w * src
    sa = jax.nn.sigmoid(acc)                                  # (TB, HW)

    o_ref[...] = (xc * sa[:, None, :]).astype(o_ref.dtype)    # lane-dense full stores


def _pick_tb(B, bytes_per_image, budget=2 * 1024 * 1024):
    # Largest divisor of B whose block stays <= ~2 MiB, so double-buffered
    # in+out blocks fit the default scoped VMEM on every generation
    # (16 MiB v5e, 32 MiB v6e/v7x) without raising vmem_limit_bytes.
    tb = 1
    for d in range(1, B + 1):
        if B % d == 0 and d * bytes_per_image <= budget:
            tb = d
    return tb


def cbam_pallas(x, params):
    w1, b1, w2, b2, wsa, bsa = params
    B, C, H, W = x.shape
    Cr = w1.shape[0]
    HW = H * W

    # Lane-dense layout: flatten spatial dims into the lane dimension.
    x_flat = x.reshape(B, C, HW)
    TB = _pick_tb(B, C * HW * x.dtype.itemsize)

    # Parameter glue (plain JAX, outside the kernel).
    w1m = jnp.asarray(w1, jnp.float32)                        # (Cr, C)
    w2t = jnp.asarray(w2.T, jnp.float32)                      # (Cr, C)
    b1v = jnp.asarray(b1, jnp.float32).reshape(Cr)            # (Cr,)  -> SMEM
    b2r = jnp.asarray(b2, jnp.float32).reshape(1, C)          # (1, C)
    wsa_flat = jnp.concatenate(
        [wsa.reshape(-1), bsa.reshape(-1)]).astype(jnp.float32)  # (99,) -> SMEM

    kernel = functools.partial(cbam_kernel, H=H, W=W)

    out_flat = pl.pallas_call(
        kernel,
        out_shape=jax.ShapeDtypeStruct((B, C, HW), x.dtype),
        grid=(B // TB,),
        in_specs=[
            pl.BlockSpec((TB, C, HW), lambda b: (b, 0, 0)),
            pl.BlockSpec((Cr, C), lambda b: (0, 0)),
            pl.BlockSpec(memory_space=pltpu.MemorySpace.SMEM),
            pl.BlockSpec((Cr, C), lambda b: (0, 0)),
            pl.BlockSpec((1, C), lambda b: (0, 0)),
            pl.BlockSpec(memory_space=pltpu.MemorySpace.SMEM),
        ],
        out_specs=pl.BlockSpec((TB, C, HW), lambda b: (b, 0, 0)),
        compiler_params=pltpu.CompilerParams(
            dimension_semantics=("parallel",)),
    )(x_flat, w1m, b1v, w2t, b2r, wsa_flat)
    return out_flat.reshape(B, C, H, W)


def cbam_ref(x, w1, b1, w2, b2, wsa, bsa):
    # Pure-JAX reference mirroring the PyTorch module (avg-pool channel att.).
    avg = jnp.mean(x, axis=(2, 3))                            # (B, C)
    h = jax.nn.relu(avg @ w1.T + b1)                          # (B, Cr)
    g = jax.nn.sigmoid(h @ w2.T + b2)                         # (B, C)
    xc = x * g[:, :, None, None]
    mp = jnp.max(xc, axis=1, keepdims=True)
    ap = jnp.mean(xc, axis=1, keepdims=True)
    y = jnp.concatenate([mp, ap], axis=1)                     # (B, 2, H, W)
    y = lax.conv_general_dilated(y, wsa, (1, 1), [(3, 3), (3, 3)],
                                 dimension_numbers=("NCHW", "OIHW", "NCHW"))
    y = y + bsa[None, :, None, None]
    return xc * jax.nn.sigmoid(y)


if __name__ == "__main__":
    B, C, H, W = 2, 32, 16, 16
    reduction_ratio = 16
    Cr = C // reduction_ratio

    key = jax.random.PRNGKey(0)
    keys = jax.random.split(key, 7)
    x = jax.random.normal(keys[0], (B, C, H, W), jnp.float32)
    # Deterministic synthetic parameters (shapes per the module's __init__).
    w1 = jax.random.normal(keys[1], (Cr, C), jnp.float32) * 0.1   # fc1: Conv2d(C, Cr, 1)
    b1 = jax.random.normal(keys[2], (Cr,), jnp.float32) * 0.1
    w2 = jax.random.normal(keys[3], (C, Cr), jnp.float32) * 0.1   # fc2: Conv2d(Cr, C, 1)
    b2 = jax.random.normal(keys[4], (C,), jnp.float32) * 0.1
    wsa = jax.random.normal(keys[5], (1, 2, 7, 7), jnp.float32) * 0.1  # Conv2d(2, 1, 7, pad=3)
    bsa = jax.random.normal(keys[6], (1,), jnp.float32) * 0.1
    params = (w1, b1, w2, b2, wsa, bsa)

    out = cbam_pallas(x, params)
    out = jax.block_until_ready(out)

    ref = cbam_ref(x, *params)
    assert out.shape == (B, C, H, W) and out.dtype == x.dtype
    err = float(jnp.max(jnp.abs(out - ref)))
    assert jnp.allclose(out, ref, atol=1e-4, rtol=1e-4), err
    print("KERNEL_OK")
</pallas_src>

<mosaic_0001>
module attributes {stable_mosaic.version = 11 : i64} {
  func.func @cbam_kernel(%arg0: i32, %arg1: memref<2x32x256xf32, #tpu.memory_space<vmem>>, %arg2: memref<2x32xf32, #tpu.memory_space<vmem>>, %arg3: memref<2xf32, #tpu.memory_space<smem>>, %arg4: memref<2x32xf32, #tpu.memory_space<vmem>>, %arg5: memref<1x32xf32, #tpu.memory_space<vmem>>, %arg6: memref<99xf32, #tpu.memory_space<smem>>, %arg7: memref<2x32x256xf32, #tpu.memory_space<vmem>>) attributes {dimension_semantics = [#tpu.dimension_semantics<parallel>], iteration_bounds = array<i64: 1>, scalar_prefetch = 0 : i64, scratch_operands = 0 : i64, tpu.core_type = #tpu.core_type<tc>, window_params = [{transform_indices = @transform_0, window_bounds = array<i64: 2, 32, 256>}, {pipeline_mode = #tpu.pipeline_mode<synchronous>, transform_indices = @transform_1, window_bounds = array<i64: 2, 32>}, {transform_indices = @transform_2, window_bounds = array<i64: 2>}, {pipeline_mode = #tpu.pipeline_mode<synchronous>, transform_indices = @transform_3, window_bounds = array<i64: 2, 32>}, {pipeline_mode = #tpu.pipeline_mode<synchronous>, transform_indices = @transform_4, window_bounds = array<i64: 1, 32>}, {transform_indices = @transform_5, window_bounds = array<i64: 99>}, {transform_indices = @transform_6, window_bounds = array<i64: 2, 32, 256>}]} {
    %c0 = arith.constant 0 : index
    %c0_0 = arith.constant 0 : index
    %c0_1 = arith.constant 0 : index
    %0 = vector.load %arg1[%c0, %c0_0, %c0_1] : memref<2x32x256xf32, #tpu.memory_space<vmem>>, vector<2x32x256xf32>
    %cst = arith.constant dense<0.000000e+00> : vector<2x32xf32>
    %1 = vector.multi_reduction <add>, %0, %cst [2] : vector<2x32x256xf32> to vector<2x32xf32>
    %cst_2 = arith.constant 3.906250e-03 : f32
    %2 = vector.broadcast %cst_2 : f32 to vector<2x32xf32>
    %3 = arith.mulf %1, %2 : vector<2x32xf32>
    %c0_3 = arith.constant 0 : index
    %c0_4 = arith.constant 0 : index
    %4 = vector.load %arg5[%c0_3, %c0_4] : memref<1x32xf32, #tpu.memory_space<vmem>>, vector<1x32xf32>
    %c0_5 = arith.constant 0 : index
    %c0_6 = arith.constant 0 : index
    %5 = vector.load %arg2[%c0_5, %c0_6] : memref<2x32xf32, #tpu.memory_space<vmem>>, vector<1x32xf32>
    %6 = vector.broadcast %5 : vector<1x32xf32> to vector<2x32xf32>
    %7 = arith.mulf %3, %6 : vector<2x32xf32>
    %cst_7 = arith.constant dense<0.000000e+00> : vector<2xf32>
    %8 = vector.multi_reduction <add>, %7, %cst_7 [1] : vector<2x32xf32> to vector<2xf32>
    %9 = vector.shape_cast %8 : vector<2xf32> to vector<2x1xf32>
    %c0_8 = arith.constant 0 : index
    %10 = memref.load %arg3[%c0_8] : memref<2xf32, #tpu.memory_space<smem>>
    %11 = vector.broadcast %10 : f32 to vector<2x1xf32>
    %12 = arith.addf %9, %11 : vector<2x1xf32>
    %cst_9 = arith.constant 0.000000e+00 : f32
    %13 = vector.broadcast %cst_9 : f32 to vector<2x1xf32>
    %14 = arith.maximumf %12, %13 : vector<2x1xf32>
    %c0_10 = arith.constant 0 : index
    %c0_11 = arith.constant 0 : index
    %15 = vector.load %arg4[%c0_10, %c0_11] : memref<2x32xf32, #tpu.memory_space<vmem>>, vector<1x32xf32>
    %16 = vector.broadcast %14 : vector<2x1xf32> to vector<2x32xf32>
    %17 = vector.broadcast %15 : vector<1x32xf32> to vector<2x32xf32>
    %18 = arith.mulf %16, %17 : vector<2x32xf32>
    %19 = vector.broadcast %4 : vector<1x32xf32> to vector<2x32xf32>
    %20 = arith.addf %19, %18 : vector<2x32xf32>
    %c1 = arith.constant 1 : index
    %c0_12 = arith.constant 0 : index
    %21 = vector.load %arg2[%c1, %c0_12] : memref<2x32xf32, #tpu.memory_space<vmem>>, vector<1x32xf32>
    %22 = vector.broadcast %21 : vector<1x32xf32> to vector<2x32xf32>
    %23 = arith.mulf %3, %22 : vector<2x32xf32>
    %cst_13 = arith.constant dense<0.000000e+00> : vector<2xf32>
    %24 = vector.multi_reduction <add>, %23, %cst_13 [1] : vector<2x32xf32> to vector<2xf32>
    %25 = vector.shape_cast %24 : vector<2xf32> to vector<2x1xf32>
    %c1_14 = arith.constant 1 : index
    %26 = memref.load %arg3[%c1_14] : memref<2xf32, #tpu.memory_space<smem>>
    %27 = vector.broadcast %26 : f32 to vector<2x1xf32>
    %28 = arith.addf %25, %27 : vector<2x1xf32>
    %cst_15 = arith.constant 0.000000e+00 : f32
    %29 = vector.broadcast %cst_15 : f32 to vector<2x1xf32>
    %30 = arith.maximumf %28, %29 : vector<2x1xf32>
    %c1_16 = arith.constant 1 : index
    %c0_17 = arith.constant 0 : index
    %31 = vector.load %arg4[%c1_16, %c0_17] : memref<2x32xf32, #tpu.memory_space<vmem>>, vector<1x32xf32>
    %32 = vector.broadcast %30 : vector<2x1xf32> to vector<2x32xf32>
    %33 = vector.broadcast %31 : vector<1x32xf32> to vector<2x32xf32>
    %34 = arith.mulf %32, %33 : vector<2x32xf32>
    %35 = arith.addf %20, %34 : vector<2x32xf32>
    %36 = arith.negf %35 : vector<2x32xf32>
    %37 = math.exp %36 : vector<2x32xf32>
    %cst_18 = arith.constant 1.000000e+00 : f32
    %38 = vector.broadcast %cst_18 : f32 to vector<2x32xf32>
    %39 = arith.addf %38, %37 : vector<2x32xf32>
    %40 = arith.divf %38, %39 : vector<2x32xf32>
    %41 = vector.shape_cast %40 : vector<2x32xf32> to vector<2x32x1xf32>
    %42 = vector.broadcast %41 : vector<2x32x1xf32> to vector<2x32x256xf32>
    %43 = arith.mulf %0, %42 : vector<2x32x256xf32>
    %cst_19 = arith.constant dense<0xFF800000> : vector<2x256xf32>
    %44 = vector.multi_reduction <maximumf>, %43, %cst_19 [1] : vector<2x32x256xf32> to vector<2x256xf32>
    %cst_20 = arith.constant dense<0.000000e+00> : vector<2x256xf32>
    %45 = vector.multi_reduction <add>, %43, %cst_20 [1] : vector<2x32x256xf32> to vector<2x256xf32>
    %cst_21 = arith.constant 3.125000e-02 : f32
    %46 = vector.broadcast %cst_21 : f32 to vector<2x256xf32>
    %47 = arith.mulf %45, %46 : vector<2x256xf32>
    %cst_22 = arith.constant 0.000000e+00 : f32
    %48 = vector.broadcast %cst_22 : f32 to vector<2x51xf32>
    %49 = tpu.concatenate %48, %44, %48 in 1 : vector<2x51xf32>, vector<2x256xf32>, vector<2x51xf32> -> vector<2x358xf32>
    %50 = tpu.concatenate %48, %47, %48 in 1 : vector<2x51xf32>, vector<2x256xf32>, vector<2x51xf32> -> vector<2x358xf32>
    %51 = tpu.iota {dimensions = array<i32: 1>} : vector<1x256xi32>
    %c16_i32 = arith.constant 16 : i32
    %c0_i32 = arith.constant 0 : i32
    %52 = arith.cmpi eq, %c16_i32, %c0_i32 : i32
    %c1_i32 = arith.constant 1 : i32
    %53 = arith.select %52, %c1_i32, %c16_i32 : i32
    %54 = vector.broadcast %53 : i32 to vector<1x256xi32>
    %55 = arith.remsi %51, %54 : vector<1x256xi32>
    %c0_i32_23 = arith.constant 0 : i32
    %56 = vector.broadcast %c0_i32_23 : i32 to vector<1x256xi32>
    %57 = arith.cmpi ne, %55, %56 : vector<1x256xi32>
    %c0_i32_24 = arith.constant 0 : i32
    %58 = vector.broadcast %c0_i32_24 : i32 to vector<1x256xi32>
    %59 = arith.cmpi slt, %55, %58 : vector<1x256xi32>
    %c0_i32_25 = arith.constant 0 : i32
    %60 = arith.cmpi slt, %53, %c0_i32_25 : i32
    %61 = vector.broadcast %60 : i1 to vector<1x256xi1>
    %62 = vector.broadcast %61 : vector<1x256xi1> to vector<1x256xi1>
    %63 = arith.xori %59, %62 : vector<1x256xi1>
    %64 = arith.andi %63, %57 : vector<1x256xi1>
    %65 = vector.broadcast %53 : i32 to vector<1x256xi32>
    %66 = arith.addi %55, %65 : vector<1x256xi32>
    %67 = arith.select %64, %66, %55 : vector<1x256xi1>, vector<1x256xi32>
    %c-3_i32 = arith.constant -3 : i32
    %68 = vector.broadcast %c-3_i32 : i32 to vector<1x256xi32>
    %69 = arith.addi %67, %68 : vector<1x256xi32>
    %c0_i32_26 = arith.constant 0 : i32
    %70 = vector.broadcast %c0_i32_26 : i32 to vector<1x256xi32>
    %71 = arith.cmpi sge, %69, %70 : vector<1x256xi32>
    %c-3_i32_27 = arith.constant -3 : i32
    %72 = vector.broadcast %c-3_i32_27 : i32 to vector<1x256xi32>
    %73 = arith.addi %67, %72 : vector<1x256xi32>
    %c16_i32_28 = arith.constant 16 : i32
    %74 = vector.broadcast %c16_i32_28 : i32 to vector<1x256xi32>
    %75 = arith.cmpi slt, %73, %74 : vector<1x256xi32>
    %76 = arith.andi %71, %75 : vector<1x256xi1>
    %c-2_i32 = arith.constant -2 : i32
    %77 = vector.broadcast %c-2_i32 : i32 to vector<1x256xi32>
    %78 = arith.addi %67, %77 : vector<1x256xi32>
    %c0_i32_29 = arith.constant 0 : i32
    %79 = vector.broadcast %c0_i32_29 : i32 to vector<1x256xi32>
    %80 = arith.cmpi sge, %78, %79 : vector<1x256xi32>
    %c-2_i32_30 = arith.constant -2 : i32
    %81 = vector.broadcast %c-2_i32_30 : i32 to vector<1x256xi32>
    %82 = arith.addi %67, %81 : vector<1x256xi32>
    %c16_i32_31 = arith.constant 16 : i32
    %83 = vector.broadcast %c16_i32_31 : i32 to vector<1x256xi32>
    %84 = arith.cmpi slt, %82, %83 : vector<1x256xi32>
    %85 = arith.andi %80, %84 : vector<1x256xi1>
    %c-1_i32 = arith.constant -1 : i32
    %86 = vector.broadcast %c-1_i32 : i32 to vector<1x256xi32>
    %87 = arith.addi %67, %86 : vector<1x256xi32>
    %c0_i32_32 = arith.constant 0 : i32
    %88 = vector.broadcast %c0_i32_32 : i32 to vector<1x256xi32>
    %89 = arith.cmpi sge, %87, %88 : vector<1x256xi32>
    %c-1_i32_33 = arith.constant -1 : i32
    %90 = vector.broadcast %c-1_i32_33 : i32 to vector<1x256xi32>
    %91 = arith.addi %67, %90 : vector<1x256xi32>
    %c16_i32_34 = arith.constant 16 : i32
    %92 = vector.broadcast %c16_i32_34 : i32 to vector<1x256xi32>
    %93 = arith.cmpi slt, %91, %92 : vector<1x256xi32>
    %94 = arith.andi %89, %93 : vector<1x256xi1>
    %c1_i32_35 = arith.constant 1 : i32
    %95 = vector.broadcast %c1_i32_35 : i32 to vector<1x256xi32>
    %96 = arith.addi %67, %95 : vector<1x256xi32>
    %c0_i32_36 = arith.constant 0 : i32
    %97 = vector.broadcast %c0_i32_36 : i32 to vector<1x256xi32>
    %98 = arith.cmpi sge, %96, %97 : vector<1x256xi32>
    %c1_i32_37 = arith.constant 1 : i32
    %99 = vector.broadcast %c1_i32_37 : i32 to vector<1x256xi32>
    %100 = arith.addi %67, %99 : vector<1x256xi32>
    %c16_i32_38 = arith.constant 16 : i32
    %101 = vector.broadcast %c16_i32_38 : i32 to vector<1x256xi32>
    %102 = arith.cmpi slt, %100, %101 : vector<1x256xi32>
    %103 = arith.andi %98, %102 : vector<1x256xi1>
    %c2_i32 = arith.constant 2 : i32
    %104 = vector.broadcast %c2_i32 : i32 to vector<1x256xi32>
    %105 = arith.addi %67, %104 : vector<1x256xi32>
    %c0_i32_39 = arith.constant 0 : i32
    %106 = vector.broadcast %c0_i32_39 : i32 to vector<1x256xi32>
    %107 = arith.cmpi sge, %105, %106 : vector<1x256xi32>
    %c2_i32_40 = arith.constant 2 : i32
    %108 = vector.broadcast %c2_i32_40 : i32 to vector<1x256xi32>
    %109 = arith.addi %67, %108 : vector<1x256xi32>
    %c16_i32_41 = arith.constant 16 : i32
    %110 = vector.broadcast %c16_i32_41 : i32 to vector<1x256xi32>
    %111 = arith.cmpi slt, %109, %110 : vector<1x256xi32>
    %112 = arith.andi %107, %111 : vector<1x256xi1>
    %c3_i32 = arith.constant 3 : i32
    %113 = vector.broadcast %c3_i32 : i32 to vector<1x256xi32>
    %114 = arith.addi %67, %113 : vector<1x256xi32>
    %c0_i32_42 = arith.constant 0 : i32
    %115 = vector.broadcast %c0_i32_42 : i32 to vector<1x256xi32>
    %116 = arith.cmpi sge, %114, %115 : vector<1x256xi32>
    %c3_i32_43 = arith.constant 3 : i32
    %117 = vector.broadcast %c3_i32_43 : i32 to vector<1x256xi32>
    %118 = arith.addi %67, %117 : vector<1x256xi32>
    %c16_i32_44 = arith.constant 16 : i32
    %119 = vector.broadcast %c16_i32_44 : i32 to vector<1x256xi32>
    %120 = arith.cmpi slt, %118, %119 : vector<1x256xi32>
    %121 = arith.andi %116, %120 : vector<1x256xi1>
    %c98 = arith.constant 98 : index
    %122 = memref.load %arg6[%c98] : memref<99xf32, #tpu.memory_space<smem>>
    %123 = vector.broadcast %122 : f32 to vector<2x256xf32>
    %c0_45 = arith.constant 0 : index
    %124 = memref.load %arg6[%c0_45] : memref<99xf32, #tpu.memory_space<smem>>
    %125 = vector.extract_strided_slice %49 {offsets = [0, 0], sizes = [2, 256], strides = [1, 1]} : vector<2x358xf32> to vector<2x256xf32>
    %cst_46 = arith.constant 0.000000e+00 : f32
    %126 = vector.shape_cast %76 : vector<1x256xi1> to vector<1x256xi1>
    %127 = vector.broadcast %126 : vector<1x256xi1> to vector<2x256xi1>
    %128 = vector.broadcast %cst_46 : f32 to vector<2x256xf32>
    %129 = arith.select %127, %125, %128 : vector<2x256xi1>, vector<2x256xf32>
    %130 = vector.broadcast %124 : f32 to vector<2x256xf32>
    %131 = arith.mulf %130, %129 : vector<2x256xf32>
    %132 = arith.addf %123, %131 : vector<2x256xf32>
    %c1_47 = arith.constant 1 : index
    %133 = memref.load %arg6[%c1_47] : memref<99xf32, #tpu.memory_space<smem>>
    %134 = vector.extract_strided_slice %49 {offsets = [0, 1], sizes = [2, 256], strides = [1, 1]} : vector<2x358xf32> to vector<2x256xf32>
    %cst_48 = arith.constant 0.000000e+00 : f32
    %135 = vector.shape_cast %85 : vector<1x256xi1> to vector<1x256xi1>
    %136 = vector.broadcast %135 : vector<1x256xi1> to vector<2x256xi1>
    %137 = vector.broadcast %cst_48 : f32 to vector<2x256xf32>
    %138 = arith.select %136, %134, %137 : vector<2x256xi1>, vector<2x256xf32>
    %139 = vector.broadcast %133 : f32 to vector<2x256xf32>
    %140 = arith.mulf %139, %138 : vector<2x256xf32>
    %141 = arith.addf %132, %140 : vector<2x256xf32>
    %c2 = arith.constant 2 : index
    %142 = memref.load %arg6[%c2] : memref<99xf32, #tpu.memory_space<smem>>
    %143 = vector.extract_strided_slice %49 {offsets = [0, 2], sizes = [2, 256], strides = [1, 1]} : vector<2x358xf32> to vector<2x256xf32>
    %cst_49 = arith.constant 0.000000e+00 : f32
    %144 = vector.shape_cast %94 : vector<1x256xi1> to vector<1x256xi1>
    %145 = vector.broadcast %144 : vector<1x256xi1> to vector<2x256xi1>
    %146 = vector.broadcast %cst_49 : f32 to vector<2x256xf32>
    %147 = arith.select %145, %143, %146 : vector<2x256xi1>, vector<2x256xf32>
    %148 = vector.broadcast %142 : f32 to vector<2x256xf32>
    %149 = arith.mulf %148, %147 : vector<2x256xf32>
    %150 = arith.addf %141, %149 : vector<2x256xf32>
    %c3 = arith.constant 3 : index
    %151 = memref.load %arg6[%c3] : memref<99xf32, #tpu.memory_space<smem>>
    %152 = vector.extract_strided_slice %49 {offsets = [0, 3], sizes = [2, 256], strides = [1, 1]} : vector<2x358xf32> to vector<2x256xf32>
    %153 = vector.broadcast %151 : f32 to vector<2x256xf32>
    %154 = arith.mulf %153, %152 : vector<2x256xf32>
    %155 = arith.addf %150, %154 : vector<2x256xf32>
    %c4 = arith.constant 4 : index
    %156 = memref.load %arg6[%c4] : memref<99xf32, #tpu.memory_space<smem>>
    %157 = vector.extract_strided_slice %49 {offsets = [0, 4], sizes = [2, 256], strides = [1, 1]} : vector<2x358xf32> to vector<2x256xf32>
    %cst_50 = arith.constant 0.000000e+00 : f32
    %158 = vector.shape_cast %103 : vector<1x256xi1> to vector<1x256xi1>
    %159 = vector.broadcast %158 : vector<1x256xi1> to vector<2x256xi1>
    %160 = vector.broadcast %cst_50 : f32 to vector<2x256xf32>
    %161 = arith.select %159, %157, %160 : vector<2x256xi1>, vector<2x256xf32>
    %162 = vector.broadcast %156 : f32 to vector<2x256xf32>
    %163 = arith.mulf %162, %161 : vector<2x256xf32>
    %164 = arith.addf %155, %163 : vector<2x256xf32>
    %c5 = arith.constant 5 : index
    %165 = memref.load %arg6[%c5] : memref<99xf32, #tpu.memory_space<smem>>
    %166 = vector.extract_strided_slice %49 {offsets = [0, 5], sizes = [2, 256], strides = [1, 1]} : vector<2x358xf32> to vector<2x256xf32>
    %cst_51 = arith.constant 0.000000e+00 : f32
    %167 = vector.shape_cast %112 : vector<1x256xi1> to vector<1x256xi1>
    %168 = vector.broadcast %167 : vector<1x256xi1> to vector<2x256xi1>
    %169 = vector.broadcast %cst_51 : f32 to vector<2x256xf32>
    %170 = arith.select %168, %166, %169 : vector<2x256xi1>, vector<2x256xf32>
    %171 = vector.broadcast %165 : f32 to vector<2x256xf32>
    %172 = arith.mulf %171, %170 : vector<2x256xf32>
    %173 = arith.addf %164, %172 : vector<2x256xf32>
    %c6 = arith.constant 6 : index
    %174 = memref.load %arg6[%c6] : memref<99xf32, #tpu.memory_space<smem>>
    %175 = vector.extract_strided_slice %49 {offsets = [0, 6], sizes = [2, 256], strides = [1, 1]} : vector<2x358xf32> to vector<2x256xf32>
    %cst_52 = arith.constant 0.000000e+00 : f32
    %176 = vector.shape_cast %121 : vector<1x256xi1> to vector<1x256xi1>
    %177 = vector.broadcast %176 : vector<1x256xi1> to vector<2x256xi1>
    %178 = vector.broadcast %cst_52 : f32 to vector<2x256xf32>
    %179 = arith.select %177, %175, %178 : vector<2x256xi1>, vector<2x256xf32>
    %180 = vector.broadcast %174 : f32 to vector<2x256xf32>
    %181 = arith.mulf %180, %179 : vector<2x256xf32>
    %182 = arith.addf %173, %181 : vector<2x256xf32>
    %c7 = arith.constant 7 : index
    %183 = memref.load %arg6[%c7] : memref<99xf32, #tpu.memory_space<smem>>
    %184 = vector.extract_strided_slice %49 {offsets = [0, 16], sizes = [2, 256], strides = [1, 1]} : vector<2x358xf32> to vector<2x256xf32>
    %cst_53 = arith.constant 0.000000e+00 : f32
    %185 = vector.shape_cast %76 : vector<1x256xi1> to vector<1x256xi1>
    %186 = vector.broadcast %185 : vector<1x256xi1> to vector<2x256xi1>
    %187 = vector.broadcast %cst_53 : f32 to vector<2x256xf32>
    %188 = arith.select %186, %184, %187 : vector<2x256xi1>, vector<2x256xf32>
    %189 = vector.broadcast %183 : f32 to vector<2x256xf32>
    %190 = arith.mulf %189, %188 : vector<2x256xf32>
    %191 = arith.addf %182, %190 : vector<2x256xf32>
    %c8 = arith.constant 8 : index
    %192 = memref.load %arg6[%c8] : memref<99xf32, #tpu.memory_space<smem>>
    %193 = vector.extract_strided_slice %49 {offsets = [0, 17], sizes = [2, 256], strides = [1, 1]} : vector<2x358xf32> to vector<2x256xf32>
    %cst_54 = arith.constant 0.000000e+00 : f32
    %194 = vector.shape_cast %85 : vector<1x256xi1> to vector<1x256xi1>
    %195 = vector.broadcast %194 : vector<1x256xi1> to vector<2x256xi1>
    %196 = vector.broadcast %cst_54 : f32 to vector<2x256xf32>
    %197 = arith.select %195, %193, %196 : vector<2x256xi1>, vector<2x256xf32>
    %198 = vector.broadcast %192 : f32 to vector<2x256xf32>
    %199 = arith.mulf %198, %197 : vector<2x256xf32>
    %200 = arith.addf %191, %199 : vector<2x256xf32>
    %c9 = arith.constant 9 : index
    %201 = memref.load %arg6[%c9] : memref<99xf32, #tpu.memory_space<smem>>
    %202 = vector.extract_strided_slice %49 {offsets = [0, 18], sizes = [2, 256], strides = [1, 1]} : vector<2x358xf32> to vector<2x256xf32>
    %cst_55 = arith.constant 0.000000e+00 : f32
    %203 = vector.shape_cast %94 : vector<1x256xi1> to vector<1x256xi1>
    %204 = vector.broadcast %203 : vector<1x256xi1> to vector<2x256xi1>
    %205 = vector.broadcast %cst_55 : f32 to vector<2x256xf32>
    %206 = arith.select %204, %202, %205 : vector<2x256xi1>, vector<2x256xf32>
    %207 = vector.broadcast %201 : f32 to vector<2x256xf32>
    %208 = arith.mulf %207, %206 : vector<2x256xf32>
    %209 = arith.addf %200, %208 : vector<2x256xf32>
    %c10 = arith.constant 10 : index
    %210 = memref.load %arg6[%c10] : memref<99xf32, #tpu.memory_space<smem>>
    %211 = vector.extract_strided_slice %49 {offsets = [0, 19], sizes = [2, 256], strides = [1, 1]} : vector<2x358xf32> to vector<2x256xf32>
    %212 = vector.broadcast %210 : f32 to vector<2x256xf32>
    %213 = arith.mulf %212, %211 : vector<2x256xf32>
    %214 = arith.addf %209, %213 : vector<2x256xf32>
    %c11 = arith.constant 11 : index
    %215 = memref.load %arg6[%c11] : memref<99xf32, #tpu.memory_space<smem>>
    %216 = vector.extract_strided_slice %49 {offsets = [0, 20], sizes = [2, 256], strides = [1, 1]} : vector<2x358xf32> to vector<2x256xf32>
    %cst_56 = arith.constant 0.000000e+00 : f32
    %217 = vector.shape_cast %103 : vector<1x256xi1> to vector<1x256xi1>
    %218 = vector.broadcast %217 : vector<1x256xi1> to vector<2x256xi1>
    %219 = vector.broadcast %cst_56 : f32 to vector<2x256xf32>
    %220 = arith.select %218, %216, %219 : vector<2x256xi1>, vector<2x256xf32>
    %221 = vector.broadcast %215 : f32 to vector<2x256xf32>
    %222 = arith.mulf %221, %220 : vector<2x256xf32>
    %223 = arith.addf %214, %222 : vector<2x256xf32>
    %c12 = arith.constant 12 : index
    %224 = memref.load %arg6[%c12] : memref<99xf32, #tpu.memory_space<smem>>
    %225 = vector.extract_strided_slice %49 {offsets = [0, 21], sizes = [2, 256], strides = [1, 1]} : vector<2x358xf32> to vector<2x256xf32>
    %cst_57 = arith.constant 0.000000e+00 : f32
    %226 = vector.shape_cast %112 : vector<1x256xi1> to vector<1x256xi1>
    %227 = vector.broadcast %226 : vector<1x256xi1> to vector<2x256xi1>
    %228 = vector.broadcast %cst_57 : f32 to vector<2x256xf32>
    %229 = arith.select %227, %225, %228 : vector<2x256xi1>, vector<2x256xf32>
    %230 = vector.broadcast %224 : f32 to vector<2x256xf32>
    %231 = arith.mulf %230, %229 : vector<2x256xf32>
    %232 = arith.addf %223, %231 : vector<2x256xf32>
    %c13 = arith.constant 13 : index
    %233 = memref.load %arg6[%c13] : memref<99xf32, #tpu.memory_space<smem>>
    %234 = vector.extract_strided_slice %49 {offsets = [0, 22], sizes = [2, 256], strides = [1, 1]} : vector<2x358xf32> to vector<2x256xf32>
    %cst_58 = arith.constant 0.000000e+00 : f32
    %235 = vector.shape_cast %121 : vector<1x256xi1> to vector<1x256xi1>
    %236 = vector.broadcast %235 : vector<1x256xi1> to vector<2x256xi1>
    %237 = vector.broadcast %cst_58 : f32 to vector<2x256xf32>
    %238 = arith.select %236, %234, %237 : vector<2x256xi1>, vector<2x256xf32>
    %239 = vector.broadcast %233 : f32 to vector<2x256xf32>
    %240 = arith.mulf %239, %238 : vector<2x256xf32>
    %241 = arith.addf %232, %240 : vector<2x256xf32>
    %c14 = arith.constant 14 : index
    %242 = memref.load %arg6[%c14] : memref<99xf32, #tpu.memory_space<smem>>
    %243 = vector.extract_strided_slice %49 {offsets = [0, 32], sizes = [2, 256], strides = [1, 1]} : vector<2x358xf32> to vector<2x256xf32>
    %cst_59 = arith.constant 0.000000e+00 : f32
    %244 = vector.shape_cast %76 : vector<1x256xi1> to vector<1x256xi1>
    %245 = vector.broadcast %244 : vector<1x256xi1> to vector<2x256xi1>
    %246 = vector.broadcast %cst_59 : f32 to vector<2x256xf32>
    %247 = arith.select %245, %243, %246 : vector<2x256xi1>, vector<2x256xf32>
    %248 = vector.broadcast %242 : f32 to vector<2x256xf32>
    %249 = arith.mulf %248, %247 : vector<2x256xf32>
    %250 = arith.addf %241, %249 : vector<2x256xf32>
    %c15 = arith.constant 15 : index
    %251 = memref.load %arg6[%c15] : memref<99xf32, #tpu.memory_space<smem>>
    %252 = vector.extract_strided_slice %49 {offsets = [0, 33], sizes = [2, 256], strides = [1, 1]} : vector<2x358xf32> to vector<2x256xf32>
    %cst_60 = arith.constant 0.000000e+00 : f32
    %253 = vector.shape_cast %85 : vector<1x256xi1> to vector<1x256xi1>
    %254 = vector.broadcast %253 : vector<1x256xi1> to vector<2x256xi1>
    %255 = vector.broadcast %cst_60 : f32 to vector<2x256xf32>
    %256 = arith.select %254, %252, %255 : vector<2x256xi1>, vector<2x256xf32>
    %257 = vector.broadcast %251 : f32 to vector<2x256xf32>
    %258 = arith.mulf %257, %256 : vector<2x256xf32>
    %259 = arith.addf %250, %258 : vector<2x256xf32>
    %c16 = arith.constant 16 : index
    %260 = memref.load %arg6[%c16] : memref<99xf32, #tpu.memory_space<smem>>
    %261 = vector.extract_strided_slice %49 {offsets = [0, 34], sizes = [2, 256], strides = [1, 1]} : vector<2x358xf32> to vector<2x256xf32>
    %cst_61 = arith.constant 0.000000e+00 : f32
    %262 = vector.shape_cast %94 : vector<1x256xi1> to vector<1x256xi1>
    %263 = vector.broadcast %262 : vector<1x256xi1> to vector<2x256xi1>
    %264 = vector.broadcast %cst_61 : f32 to vector<2x256xf32>
    %265 = arith.select %263, %261, %264 : vector<2x256xi1>, vector<2x256xf32>
    %266 = vector.broadcast %260 : f32 to vector<2x256xf32>
    %267 = arith.mulf %266, %265 : vector<2x256xf32>
    %268 = arith.addf %259, %267 : vector<2x256xf32>
    %c17 = arith.constant 17 : index
    %269 = memref.load %arg6[%c17] : memref<99xf32, #tpu.memory_space<smem>>
    %270 = vector.extract_strided_slice %49 {offsets = [0, 35], sizes = [2, 256], strides = [1, 1]} : vector<2x358xf32> to vector<2x256xf32>
    %271 = vector.broadcast %269 : f32 to vector<2x256xf32>
    %272 = arith.mulf %271, %270 : vector<2x256xf32>
    %273 = arith.addf %268, %272 : vector<2x256xf32>
    %c18 = arith.constant 18 : index
    %274 = memref.load %arg6[%c18] : memref<99xf32, #tpu.memory_space<smem>>
    %275 = vector.extract_strided_slice %49 {offsets = [0, 36], sizes = [2, 256], strides = [1, 1]} : vector<2x358xf32> to vector<2x256xf32>
    %cst_62 = arith.constant 0.000000e+00 : f32
    %276 = vector.shape_cast %103 : vector<1x256xi1> to vector<1x256xi1>
    %277 = vector.broadcast %276 : vector<1x256xi1> to vector<2x256xi1>
    %278 = vector.broadcast %cst_62 : f32 to vector<2x256xf32>
    %279 = arith.select %277, %275, %278 : vector<2x256xi1>, vector<2x256xf32>
    %280 = vector.broadcast %274 : f32 to vector<2x256xf32>
    %281 = arith.mulf %280, %279 : vector<2x256xf32>
    %282 = arith.addf %273, %281 : vector<2x256xf32>
    %c19 = arith.constant 19 : index
    %283 = memref.load %arg6[%c19] : memref<99xf32, #tpu.memory_space<smem>>
    %284 = vector.extract_strided_slice %49 {offsets = [0, 37], sizes = [2, 256], strides = [1, 1]} : vector<2x358xf32> to vector<2x256xf32>
    %cst_63 = arith.constant 0.000000e+00 : f32
    %285 = vector.shape_cast %112 : vector<1x256xi1> to vector<1x256xi1>
    %286 = vector.broadcast %285 : vector<1x256xi1> to vector<2x256xi1>
    %287 = vector.broadcast %cst_63 : f32 to vector<2x256xf32>
    %288 = arith.select %286, %284, %287 : vector<2x256xi1>, vector<2x256xf32>
    %289 = vector.broadcast %283 : f32 to vector<2x256xf32>
    %290 = arith.mulf %289, %288 : vector<2x256xf32>
    %291 = arith.addf %282, %290 : vector<2x256xf32>
    %c20 = arith.constant 20 : index
    %292 = memref.load %arg6[%c20] : memref<99xf32, #tpu.memory_space<smem>>
    %293 = vector.extract_strided_slice %49 {offsets = [0, 38], sizes = [2, 256], strides = [1, 1]} : vector<2x358xf32> to vector<2x256xf32>
    %cst_64 = arith.constant 0.000000e+00 : f32
    %294 = vector.shape_cast %121 : vector<1x256xi1> to vector<1x256xi1>
    %295 = vector.broadcast %294 : vector<1x256xi1> to vector<2x256xi1>
    %296 = vector.broadcast %cst_64 : f32 to vector<2x256xf32>
    %297 = arith.select %295, %293, %296 : vector<2x256xi1>, vector<2x256xf32>
    %298 = vector.broadcast %292 : f32 to vector<2x256xf32>
    %299 = arith.mulf %298, %297 : vector<2x256xf32>
    %300 = arith.addf %291, %299 : vector<2x256xf32>
    %c21 = arith.constant 21 : index
    %301 = memref.load %arg6[%c21] : memref<99xf32, #tpu.memory_space<smem>>
    %302 = vector.extract_strided_slice %49 {offsets = [0, 48], sizes = [2, 256], strides = [1, 1]} : vector<2x358xf32> to vector<2x256xf32>
    %cst_65 = arith.constant 0.000000e+00 : f32
    %303 = vector.shape_cast %76 : vector<1x256xi1> to vector<1x256xi1>
    %304 = vector.broadcast %303 : vector<1x256xi1> to vector<2x256xi1>
    %305 = vector.broadcast %cst_65 : f32 to vector<2x256xf32>
    %306 = arith.select %304, %302, %305 : vector<2x256xi1>, vector<2x256xf32>
    %307 = vector.broadcast %301 : f32 to vector<2x256xf32>
    %308 = arith.mulf %307, %306 : vector<2x256xf32>
    %309 = arith.addf %300, %308 : vector<2x256xf32>
    %c22 = arith.constant 22 : index
    %310 = memref.load %arg6[%c22] : memref<99xf32, #tpu.memory_space<smem>>
    %311 = vector.extract_strided_slice %49 {offsets = [0, 49], sizes = [2, 256], strides = [1, 1]} : vector<2x358xf32> to vector<2x256xf32>
    %cst_66 = arith.constant 0.000000e+00 : f32
    %312 = vector.shape_cast %85 : vector<1x256xi1> to vector<1x256xi1>
    %313 = vector.broadcast %312 : vector<1x256xi1> to vector<2x256xi1>
    %314 = vector.broadcast %cst_66 : f32 to vector<2x256xf32>
    %315 = arith.select %313, %311, %314 : vector<2x256xi1>, vector<2x256xf32>
    %316 = vector.broadcast %310 : f32 to vector<2x256xf32>
    %317 = arith.mulf %316, %315 : vector<2x256xf32>
    %318 = arith.addf %309, %317 : vector<2x256xf32>
    %c23 = arith.constant 23 : index
    %319 = memref.load %arg6[%c23] : memref<99xf32, #tpu.memory_space<smem>>
    %320 = vector.extract_strided_slice %49 {offsets = [0, 50], sizes = [2, 256], strides = [1, 1]} : vector<2x358xf32> to vector<2x256xf32>
    %cst_67 = arith.constant 0.000000e+00 : f32
    %321 = vector.shape_cast %94 : vector<1x256xi1> to vector<1x256xi1>
    %322 = vector.broadcast %321 : vector<1x256xi1> to vector<2x256xi1>
    %323 = vector.broadcast %cst_67 : f32 to vector<2x256xf32>
    %324 = arith.select %322, %320, %323 : vector<2x256xi1>, vector<2x256xf32>
    %325 = vector.broadcast %319 : f32 to vector<2x256xf32>
    %326 = arith.mulf %325, %324 : vector<2x256xf32>
    %327 = arith.addf %318, %326 : vector<2x256xf32>
    %c24 = arith.constant 24 : index
    %328 = memref.load %arg6[%c24] : memref<99xf32, #tpu.memory_space<smem>>
    %329 = vector.extract_strided_slice %49 {offsets = [0, 51], sizes = [2, 256], strides = [1, 1]} : vector<2x358xf32> to vector<2x256xf32>
    %330 = vector.broadcast %328 : f32 to vector<2x256xf32>
    %331 = arith.mulf %330, %329 : vector<2x256xf32>
    %332 = arith.addf %327, %331 : vector<2x256xf32>
    %c25 = arith.constant 25 : index
    %333 = memref.load %arg6[%c25] : memref<99xf32, #tpu.memory_space<smem>>
    %334 = vector.extract_strided_slice %49 {offsets = [0, 52], sizes = [2, 256], strides = [1, 1]} : vector<2x358xf32> to vector<2x256xf32>
    %cst_68 = arith.constant 0.000000e+00 : f32
    %335 = vector.shape_cast %103 : vector<1x256xi1> to vector<1x256xi1>
    %336 = vector.broadcast %335 : vector<1x256xi1> to vector<2x256xi1>
    %337 = vector.broadcast %cst_68 : f32 to vector<2x256xf32>
    %338 = arith.select %336, %334, %337 : vector<2x256xi1>, vector<2x256xf32>
    %339 = vector.broadcast %333 : f32 to vector<2x256xf32>
    %340 = arith.mulf %339, %338 : vector<2x256xf32>
    %341 = arith.addf %332, %340 : vector<2x256xf32>
    %c26 = arith.constant 26 : index
    %342 = memref.load %arg6[%c26] : memref<99xf32, #tpu.memory_space<smem>>
    %343 = vector.extract_strided_slice %49 {offsets = [0, 53], sizes = [2, 256], strides = [1, 1]} : vector<2x358xf32> to vector<2x256xf32>
    %cst_69 = arith.constant 0.000000e+00 : f32
    %344 = vector.shape_cast %112 : vector<1x256xi1> to vector<1x256xi1>
    %345 = vector.broadcast %344 : vector<1x256xi1> to vector<2x256xi1>
    %346 = vector.broadcast %cst_69 : f32 to vector<2x256xf32>
    %347 = arith.select %345, %343, %346 : vector<2x256xi1>, vector<2x256xf32>
    %348 = vector.broadcast %342 : f32 to vector<2x256xf32>
    %349 = arith.mulf %348, %347 : vector<2x256xf32>
    %350 = arith.addf %341, %349 : vector<2x256xf32>
    %c27 = arith.constant 27 : index
    %351 = memref.load %arg6[%c27] : memref<99xf32, #tpu.memory_space<smem>>
    %352 = vector.extract_strided_slice %49 {offsets = [0, 54], sizes = [2, 256], strides = [1, 1]} : vector<2x358xf32> to vector<2x256xf32>
    %cst_70 = arith.constant 0.000000e+00 : f32
    %353 = vector.shape_cast %121 : vector<1x256xi1> to vector<1x256xi1>
    %354 = vector.broadcast %353 : vector<1x256xi1> to vector<2x256xi1>
    %355 = vector.broadcast %cst_70 : f32 to vector<2x256xf32>
    %356 = arith.select %354, %352, %355 : vector<2x256xi1>, vector<2x256xf32>
    %357 = vector.broadcast %351 : f32 to vector<2x256xf32>
    %358 = arith.mulf %357, %356 : vector<2x256xf32>
    %359 = arith.addf %350, %358 : vector<2x256xf32>
    %c28 = arith.constant 28 : index
    %360 = memref.load %arg6[%c28] : memref<99xf32, #tpu.memory_space<smem>>
    %361 = vector.extract_strided_slice %49 {offsets = [0, 64], sizes = [2, 256], strides = [1, 1]} : vector<2x358xf32> to vector<2x256xf32>
    %cst_71 = arith.constant 0.000000e+00 : f32
    %362 = vector.shape_cast %76 : vector<1x256xi1> to vector<1x256xi1>
    %363 = vector.broadcast %362 : vector<1x256xi1> to vector<2x256xi1>
    %364 = vector.broadcast %cst_71 : f32 to vector<2x256xf32>
    %365 = arith.select %363, %361, %364 : vector<2x256xi1>, vector<2x256xf32>
    %366 = vector.broadcast %360 : f32 to vector<2x256xf32>
    %367 = arith.mulf %366, %365 : vector<2x256xf32>
    %368 = arith.addf %359, %367 : vector<2x256xf32>
    %c29 = arith.constant 29 : index
    %369 = memref.load %arg6[%c29] : memref<99xf32, #tpu.memory_space<smem>>
    %370 = vector.extract_strided_slice %49 {offsets = [0, 65], sizes = [2, 256], strides = [1, 1]} : vector<2x358xf32> to vector<2x256xf32>
    %cst_72 = arith.constant 0.000000e+00 : f32
    %371 = vector.shape_cast %85 : vector<1x256xi1> to vector<1x256xi1>
    %372 = vector.broadcast %371 : vector<1x256xi1> to vector<2x256xi1>
    %373 = vector.broadcast %cst_72 : f32 to vector<2x256xf32>
    %374 = arith.select %372, %370, %373 : vector<2x256xi1>, vector<2x256xf32>
    %375 = vector.broadcast %369 : f32 to vector<2x256xf32>
    %376 = arith.mulf %375, %374 : vector<2x256xf32>
    %377 = arith.addf %368, %376 : vector<2x256xf32>
    %c30 = arith.constant 30 : index
    %378 = memref.load %arg6[%c30] : memref<99xf32, #tpu.memory_space<smem>>
    %379 = vector.extract_strided_slice %49 {offsets = [0, 66], sizes = [2, 256], strides = [1, 1]} : vector<2x358xf32> to vector<2x256xf32>
    %cst_73 = arith.constant 0.000000e+00 : f32
    %380 = vector.shape_cast %94 : vector<1x256xi1> to vector<1x256xi1>
    %381 = vector.broadcast %380 : vector<1x256xi1> to vector<2x256xi1>
    %382 = vector.broadcast %cst_73 : f32 to vector<2x256xf32>
    %383 = arith.select %381, %379, %382 : vector<2x256xi1>, vector<2x256xf32>
    %384 = vector.broadcast %378 : f32 to vector<2x256xf32>
    %385 = arith.mulf %384, %383 : vector<2x256xf32>
    %386 = arith.addf %377, %385 : vector<2x256xf32>
    %c31 = arith.constant 31 : index
    %387 = memref.load %arg6[%c31] : memref<99xf32, #tpu.memory_space<smem>>
    %388 = vector.extract_strided_slice %49 {offsets = [0, 67], sizes = [2, 256], strides = [1, 1]} : vector<2x358xf32> to vector<2x256xf32>
    %389 = vector.broadcast %387 : f32 to vector<2x256xf32>
    %390 = arith.mulf %389, %388 : vector<2x256xf32>
    %391 = arith.addf %386, %390 : vector<2x256xf32>
    %c32 = arith.constant 32 : index
    %392 = memref.load %arg6[%c32] : memref<99xf32, #tpu.memory_space<smem>>
    %393 = vector.extract_strided_slice %49 {offsets = [0, 68], sizes = [2, 256], strides = [1, 1]} : vector<2x358xf32> to vector<2x256xf32>
    %cst_74 = arith.constant 0.000000e+00 : f32
    %394 = vector.shape_cast %103 : vector<1x256xi1> to vector<1x256xi1>
    %395 = vector.broadcast %394 : vector<1x256xi1> to vector<2x256xi1>
    %396 = vector.broadcast %cst_74 : f32 to vector<2x256xf32>
    %397 = arith.select %395, %393, %396 : vector<2x256xi1>, vector<2x256xf32>
    %398 = vector.broadcast %392 : f32 to vector<2x256xf32>
    %399 = arith.mulf %398, %397 : vector<2x256xf32>
    %400 = arith.addf %391, %399 : vector<2x256xf32>
    %c33 = arith.constant 33 : index
    %401 = memref.load %arg6[%c33] : memref<99xf32, #tpu.memory_space<smem>>
    %402 = vector.extract_strided_slice %49 {offsets = [0, 69], sizes = [2, 256], strides = [1, 1]} : vector<2x358xf32> to vector<2x256xf32>
    %cst_75 = arith.constant 0.000000e+00 : f32
    %403 = vector.shape_cast %112 : vector<1x256xi1> to vector<1x256xi1>
    %404 = vector.broadcast %403 : vector<1x256xi1> to vector<2x256xi1>
    %405 = vector.broadcast %cst_75 : f32 to vector<2x256xf32>
    %406 = arith.select %404, %402, %405 : vector<2x256xi1>, vector<2x256xf32>
    %407 = vector.broadcast %401 : f32 to vector<2x256xf32>
    %408 = arith.mulf %407, %406 : vector<2x256xf32>
    %409 = arith.addf %400, %408 : vector<2x256xf32>
    %c34 = arith.constant 34 : index
    %410 = memref.load %arg6[%c34] : memref<99xf32, #tpu.memory_space<smem>>
    %411 = vector.extract_strided_slice %49 {offsets = [0, 70], sizes = [2, 256], strides = [1, 1]} : vector<2x358xf32> to vector<2x256xf32>
    %cst_76 = arith.constant 0.000000e+00 : f32
    %412 = vector.shape_cast %121 : vector<1x256xi1> to vector<1x256xi1>
    %413 = vector.broadcast %412 : vector<1x256xi1> to vector<2x256xi1>
    %414 = vector.broadcast %cst_76 : f32 to vector<2x256xf32>
    %415 = arith.select %413, %411, %414 : vector<2x256xi1>, vector<2x256xf32>
    %416 = vector.broadcast %410 : f32 to vector<2x256xf32>
    %417 = arith.mulf %416, %415 : vector<2x256xf32>
    %418 = arith.addf %409, %417 : vector<2x256xf32>
    %c35 = arith.constant 35 : index
    %419 = memref.load %arg6[%c35] : memref<99xf32, #tpu.memory_space<smem>>
    %420 = vector.extract_strided_slice %49 {offsets = [0, 80], sizes = [2, 256], strides = [1, 1]} : vector<2x358xf32> to vector<2x256xf32>
    %cst_77 = arith.constant 0.000000e+00 : f32
    %421 = vector.shape_cast %76 : vector<1x256xi1> to vector<1x256xi1>
    %422 = vector.broadcast %421 : vector<1x256xi1> to vector<2x256xi1>
    %423 = vector.broadcast %cst_77 : f32 to vector<2x256xf32>
    %424 = arith.select %422, %420, %423 : vector<2x256xi1>, vector<2x256xf32>
    %425 = vector.broadcast %419 : f32 to vector<2x256xf32>
    %426 = arith.mulf %425, %424 : vector<2x256xf32>
    %427 = arith.addf %418, %426 : vector<2x256xf32>
    %c36 = arith.constant 36 : index
    %428 = memref.load %arg6[%c36] : memref<99xf32, #tpu.memory_space<smem>>
    %429 = vector.extract_strided_slice %49 {offsets = [0, 81], sizes = [2, 256], strides = [1, 1]} : vector<2x358xf32> to vector<2x256xf32>
    %cst_78 = arith.constant 0.000000e+00 : f32
    %430 = vector.shape_cast %85 : vector<1x256xi1> to vector<1x256xi1>
    %431 = vector.broadcast %430 : vector<1x256xi1> to vector<2x256xi1>
    %432 = vector.broadcast %cst_78 : f32 to vector<2x256xf32>
    %433 = arith.select %431, %429, %432 : vector<2x256xi1>, vector<2x256xf32>
    %434 = vector.broadcast %428 : f32 to vector<2x256xf32>
    %435 = arith.mulf %434, %433 : vector<2x256xf32>
    %436 = arith.addf %427, %435 : vector<2x256xf32>
    %c37 = arith.constant 37 : index
    %437 = memref.load %arg6[%c37] : memref<99xf32, #tpu.memory_space<smem>>
    %438 = vector.extract_strided_slice %49 {offsets = [0, 82], sizes = [2, 256], strides = [1, 1]} : vector<2x358xf32> to vector<2x256xf32>
    %cst_79 = arith.constant 0.000000e+00 : f32
    %439 = vector.shape_cast %94 : vector<1x256xi1> to vector<1x256xi1>
    %440 = vector.broadcast %439 : vector<1x256xi1> to vector<2x256xi1>
    %441 = vector.broadcast %cst_79 : f32 to vector<2x256xf32>
    %442 = arith.select %440, %438, %441 : vector<2x256xi1>, vector<2x256xf32>
    %443 = vector.broadcast %437 : f32 to vector<2x256xf32>
    %444 = arith.mulf %443, %442 : vector<2x256xf32>
    %445 = arith.addf %436, %444 : vector<2x256xf32>
    %c38 = arith.constant 38 : index
    %446 = memref.load %arg6[%c38] : memref<99xf32, #tpu.memory_space<smem>>
    %447 = vector.extract_strided_slice %49 {offsets = [0, 83], sizes = [2, 256], strides = [1, 1]} : vector<2x358xf32> to vector<2x256xf32>
    %448 = vector.broadcast %446 : f32 to vector<2x256xf32>
    %449 = arith.mulf %448, %447 : vector<2x256xf32>
    %450 = arith.addf %445, %449 : vector<2x256xf32>
    %c39 = arith.constant 39 : index
    %451 = memref.load %arg6[%c39] : memref<99xf32, #tpu.memory_space<smem>>
    %452 = vector.extract_strided_slice %49 {offsets = [0, 84], sizes = [2, 256], strides = [1, 1]} : vector<2x358xf32> to vector<2x256xf32>
    %cst_80 = arith.constant 0.000000e+00 : f32
    %453 = vector.shape_cast %103 : vector<1x256xi1> to vector<1x256xi1>
    %454 = vector.broadcast %453 : vector<1x256xi1> to vector<2x256xi1>
    %455 = vector.broadcast %cst_80 : f32 to vector<2x256xf32>
    %456 = arith.select %454, %452, %455 : vector<2x256xi1>, vector<2x256xf32>
    %457 = vector.broadcast %451 : f32 to vector<2x256xf32>
    %458 = arith.mulf %457, %456 : vector<2x256xf32>
    %459 = arith.addf %450, %458 : vector<2x256xf32>
    %c40 = arith.constant 40 : index
    %460 = memref.load %arg6[%c40] : memref<99xf32, #tpu.memory_space<smem>>
    %461 = vector.extract_strided_slice %49 {offsets = [0, 85], sizes = [2, 256], strides = [1, 1]} : vector<2x358xf32> to vector<2x256xf32>
    %cst_81 = arith.constant 0.000000e+00 : f32
    %462 = vector.shape_cast %112 : vector<1x256xi1> to vector<1x256xi1>
    %463 = vector.broadcast %462 : vector<1x256xi1> to vector<2x256xi1>
    %464 = vector.broadcast %cst_81 : f32 to vector<2x256xf32>
    %465 = arith.select %463, %461, %464 : vector<2x256xi1>, vector<2x256xf32>
    %466 = vector.broadcast %460 : f32 to vector<2x256xf32>
    %467 = arith.mulf %466, %465 : vector<2x256xf32>
    %468 = arith.addf %459, %467 : vector<2x256xf32>
    %c41 = arith.constant 41 : index
    %469 = memref.load %arg6[%c41] : memref<99xf32, #tpu.memory_space<smem>>
    %470 = vector.extract_strided_slice %49 {offsets = [0, 86], sizes = [2, 256], strides = [1, 1]} : vector<2x358xf32> to vector<2x256xf32>
    %cst_82 = arith.constant 0.000000e+00 : f32
    %471 = vector.shape_cast %121 : vector<1x256xi1> to vector<1x256xi1>
    %472 = vector.broadcast %471 : vector<1x256xi1> to vector<2x256xi1>
    %473 = vector.broadcast %cst_82 : f32 to vector<2x256xf32>
    %474 = arith.select %472, %470, %473 : vector<2x256xi1>, vector<2x256xf32>
    %475 = vector.broadcast %469 : f32 to vector<2x256xf32>
    %476 = arith.mulf %475, %474 : vector<2x256xf32>
    %477 = arith.addf %468, %476 : vector<2x256xf32>
    %c42 = arith.constant 42 : index
    %478 = memref.load %arg6[%c42] : memref<99xf32, #tpu.memory_space<smem>>
    %479 = vector.extract_strided_slice %49 {offsets = [0, 96], sizes = [2, 256], strides = [1, 1]} : vector<2x358xf32> to vector<2x256xf32>
    %cst_83 = arith.constant 0.000000e+00 : f32
    %480 = vector.shape_cast %76 : vector<1x256xi1> to vector<1x256xi1>
    %481 = vector.broadcast %480 : vector<1x256xi1> to vector<2x256xi1>
    %482 = vector.broadcast %cst_83 : f32 to vector<2x256xf32>
    %483 = arith.select %481, %479, %482 : vector<2x256xi1>, vector<2x256xf32>
    %484 = vector.broadcast %478 : f32 to vector<2x256xf32>
    %485 = arith.mulf %484, %483 : vector<2x256xf32>
    %486 = arith.addf %477, %485 : vector<2x256xf32>
    %c43 = arith.constant 43 : index
    %487 = memref.load %arg6[%c43] : memref<99xf32, #tpu.memory_space<smem>>
    %488 = vector.extract_strided_slice %49 {offsets = [0, 97], sizes = [2, 256], strides = [1, 1]} : vector<2x358xf32> to vector<2x256xf32>
    %cst_84 = arith.constant 0.000000e+00 : f32
    %489 = vector.shape_cast %85 : vector<1x256xi1> to vector<1x256xi1>
    %490 = vector.broadcast %489 : vector<1x256xi1> to vector<2x256xi1>
    %491 = vector.broadcast %cst_84 : f32 to vector<2x256xf32>
    %492 = arith.select %490, %488, %491 : vector<2x256xi1>, vector<2x256xf32>
    %493 = vector.broadcast %487 : f32 to vector<2x256xf32>
    %494 = arith.mulf %493, %492 : vector<2x256xf32>
    %495 = arith.addf %486, %494 : vector<2x256xf32>
    %c44 = arith.constant 44 : index
    %496 = memref.load %arg6[%c44] : memref<99xf32, #tpu.memory_space<smem>>
    %497 = vector.extract_strided_slice %49 {offsets = [0, 98], sizes = [2, 256], strides = [1, 1]} : vector<2x358xf32> to vector<2x256xf32>
    %cst_85 = arith.constant 0.000000e+00 : f32
    %498 = vector.shape_cast %94 : vector<1x256xi1> to vector<1x256xi1>
    %499 = vector.broadcast %498 : vector<1x256xi1> to vector<2x256xi1>
    %500 = vector.broadcast %cst_85 : f32 to vector<2x256xf32>
    %501 = arith.select %499, %497, %500 : vector<2x256xi1>, vector<2x256xf32>
    %502 = vector.broadcast %496 : f32 to vector<2x256xf32>
    %503 = arith.mulf %502, %501 : vector<2x256xf32>
    %504 = arith.addf %495, %503 : vector<2x256xf32>
    %c45 = arith.constant 45 : index
    %505 = memref.load %arg6[%c45] : memref<99xf32, #tpu.memory_space<smem>>
    %506 = vector.extract_strided_slice %49 {offsets = [0, 99], sizes = [2, 256], strides = [1, 1]} : vector<2x358xf32> to vector<2x256xf32>
    %507 = vector.broadcast %505 : f32 to vector<2x256xf32>
    %508 = arith.mulf %507, %506 : vector<2x256xf32>
    %509 = arith.addf %504, %508 : vector<2x256xf32>
    %c46 = arith.constant 46 : index
    %510 = memref.load %arg6[%c46] : memref<99xf32, #tpu.memory_space<smem>>
    %511 = vector.extract_strided_slice %49 {offsets = [0, 100], sizes = [2, 256], strides = [1, 1]} : vector<2x358xf32> to vector<2x256xf32>
    %cst_86 = arith.constant 0.000000e+00 : f32
    %512 = vector.shape_cast %103 : vector<1x256xi1> to vector<1x256xi1>
    %513 = vector.broadcast %512 : vector<1x256xi1> to vector<2x256xi1>
    %514 = vector.broadcast %cst_86 : f32 to vector<2x256xf32>
    %515 = arith.select %513, %511, %514 : vector<2x256xi1>, vector<2x256xf32>
    %516 = vector.broadcast %510 : f32 to vector<2x256xf32>
    %517 = arith.mulf %516, %515 : vector<2x256xf32>
    %518 = arith.addf %509, %517 : vector<2x256xf32>
    %c47 = arith.constant 47 : index
    %519 = memref.load %arg6[%c47] : memref<99xf32, #tpu.memory_space<smem>>
    %520 = vector.extract_strided_slice %49 {offsets = [0, 101], sizes = [2, 256], strides = [1, 1]} : vector<2x358xf32> to vector<2x256xf32>
    %cst_87 = arith.constant 0.000000e+00 : f32
    %521 = vector.shape_cast %112 : vector<1x256xi1> to vector<1x256xi1>
    %522 = vector.broadcast %521 : vector<1x256xi1> to vector<2x256xi1>
    %523 = vector.broadcast %cst_87 : f32 to vector<2x256xf32>
    %524 = arith.select %522, %520, %523 : vector<2x256xi1>, vector<2x256xf32>
    %525 = vector.broadcast %519 : f32 to vector<2x256xf32>
    %526 = arith.mulf %525, %524 : vector<2x256xf32>
    %527 = arith.addf %518, %526 : vector<2x256xf32>
    %c48 = arith.constant 48 : index
    %528 = memref.load %arg6[%c48] : memref<99xf32, #tpu.memory_space<smem>>
    %529 = vector.extract_strided_slice %49 {offsets = [0, 102], sizes = [2, 256], strides = [1, 1]} : vector<2x358xf32> to vector<2x256xf32>
    %cst_88 = arith.constant 0.000000e+00 : f32
    %530 = vector.shape_cast %121 : vector<1x256xi1> to vector<1x256xi1>
    %531 = vector.broadcast %530 : vector<1x256xi1> to vector<2x256xi1>
    %532 = vector.broadcast %cst_88 : f32 to vector<2x256xf32>
    %533 = arith.select %531, %529, %532 : vector<2x256xi1>, vector<2x256xf32>
    %534 = vector.broadcast %528 : f32 to vector<2x256xf32>
    %535 = arith.mulf %534, %533 : vector<2x256xf32>
    %536 = arith.addf %527, %535 : vector<2x256xf32>
    %c49 = arith.constant 49 : index
    %537 = memref.load %arg6[%c49] : memref<99xf32, #tpu.memory_space<smem>>
    %538 = vector.extract_strided_slice %50 {offsets = [0, 0], sizes = [2, 256], strides = [1, 1]} : vector<2x358xf32> to vector<2x256xf32>
    %cst_89 = arith.constant 0.000000e+00 : f32
    %539 = vector.shape_cast %76 : vector<1x256xi1> to vector<1x256xi1>
    %540 = vector.broadcast %539 : vector<1x256xi1> to vector<2x256xi1>
    %541 = vector.broadcast %cst_89 : f32 to vector<2x256xf32>
    %542 = arith.select %540, %538, %541 : vector<2x256xi1>, vector<2x256xf32>
    %543 = vector.broadcast %537 : f32 to vector<2x256xf32>
    %544 = arith.mulf %543, %542 : vector<2x256xf32>
    %545 = arith.addf %536, %544 : vector<2x256xf32>
    %c50 = arith.constant 50 : index
    %546 = memref.load %arg6[%c50] : memref<99xf32, #tpu.memory_space<smem>>
    %547 = vector.extract_strided_slice %50 {offsets = [0, 1], sizes = [2, 256], strides = [1, 1]} : vector<2x358xf32> to vector<2x256xf32>
    %cst_90 = arith.constant 0.000000e+00 : f32
    %548 = vector.shape_cast %85 : vector<1x256xi1> to vector<1x256xi1>
    %549 = vector.broadcast %548 : vector<1x256xi1> to vector<2x256xi1>
    %550 = vector.broadcast %cst_90 : f32 to vector<2x256xf32>
    %551 = arith.select %549, %547, %550 : vector<2x256xi1>, vector<2x256xf32>
    %552 = vector.broadcast %546 : f32 to vector<2x256xf32>
    %553 = arith.mulf %552, %551 : vector<2x256xf32>
    %554 = arith.addf %545, %553 : vector<2x256xf32>
    %c51 = arith.constant 51 : index
    %555 = memref.load %arg6[%c51] : memref<99xf32, #tpu.memory_space<smem>>
    %556 = vector.extract_strided_slice %50 {offsets = [0, 2], sizes = [2, 256], strides = [1, 1]} : vector<2x358xf32> to vector<2x256xf32>
    %cst_91 = arith.constant 0.000000e+00 : f32
    %557 = vector.shape_cast %94 : vector<1x256xi1> to vector<1x256xi1>
    %558 = vector.broadcast %557 : vector<1x256xi1> to vector<2x256xi1>
    %559 = vector.broadcast %cst_91 : f32 to vector<2x256xf32>
    %560 = arith.select %558, %556, %559 : vector<2x256xi1>, vector<2x256xf32>
    %561 = vector.broadcast %555 : f32 to vector<2x256xf32>
    %562 = arith.mulf %561, %560 : vector<2x256xf32>
    %563 = arith.addf %554, %562 : vector<2x256xf32>
    %c52 = arith.constant 52 : index
    %564 = memref.load %arg6[%c52] : memref<99xf32, #tpu.memory_space<smem>>
    %565 = vector.extract_strided_slice %50 {offsets = [0, 3], sizes = [2, 256], strides = [1, 1]} : vector<2x358xf32> to vector<2x256xf32>
    %566 = vector.broadcast %564 : f32 to vector<2x256xf32>
    %567 = arith.mulf %566, %565 : vector<2x256xf32>
    %568 = arith.addf %563, %567 : vector<2x256xf32>
    %c53 = arith.constant 53 : index
    %569 = memref.load %arg6[%c53] : memref<99xf32, #tpu.memory_space<smem>>
    %570 = vector.extract_strided_slice %50 {offsets = [0, 4], sizes = [2, 256], strides = [1, 1]} : vector<2x358xf32> to vector<2x256xf32>
    %cst_92 = arith.constant 0.000000e+00 : f32
    %571 = vector.shape_cast %103 : vector<1x256xi1> to vector<1x256xi1>
    %572 = vector.broadcast %571 : vector<1x256xi1> to vector<2x256xi1>
    %573 = vector.broadcast %cst_92 : f32 to vector<2x256xf32>
    %574 = arith.select %572, %570, %573 : vector<2x256xi1>, vector<2x256xf32>
    %575 = vector.broadcast %569 : f32 to vector<2x256xf32>
    %576 = arith.mulf %575, %574 : vector<2x256xf32>
    %577 = arith.addf %568, %576 : vector<2x256xf32>
    %c54 = arith.constant 54 : index
    %578 = memref.load %arg6[%c54] : memref<99xf32, #tpu.memory_space<smem>>
    %579 = vector.extract_strided_slice %50 {offsets = [0, 5], sizes = [2, 256], strides = [1, 1]} : vector<2x358xf32> to vector<2x256xf32>
    %cst_93 = arith.constant 0.000000e+00 : f32
    %580 = vector.shape_cast %112 : vector<1x256xi1> to vector<1x256xi1>
    %581 = vector.broadcast %580 : vector<1x256xi1> to vector<2x256xi1>
    %582 = vector.broadcast %cst_93 : f32 to vector<2x256xf32>
    %583 = arith.select %581, %579, %582 : vector<2x256xi1>, vector<2x256xf32>
    %584 = vector.broadcast %578 : f32 to vector<2x256xf32>
    %585 = arith.mulf %584, %583 : vector<2x256xf32>
    %586 = arith.addf %577, %585 : vector<2x256xf32>
    %c55 = arith.constant 55 : index
    %587 = memref.load %arg6[%c55] : memref<99xf32, #tpu.memory_space<smem>>
    %588 = vector.extract_strided_slice %50 {offsets = [0, 6], sizes = [2, 256], strides = [1, 1]} : vector<2x358xf32> to vector<2x256xf32>
    %cst_94 = arith.constant 0.000000e+00 : f32
    %589 = vector.shape_cast %121 : vector<1x256xi1> to vector<1x256xi1>
    %590 = vector.broadcast %589 : vector<1x256xi1> to vector<2x256xi1>
    %591 = vector.broadcast %cst_94 : f32 to vector<2x256xf32>
    %592 = arith.select %590, %588, %591 : vector<2x256xi1>, vector<2x256xf32>
    %593 = vector.broadcast %587 : f32 to vector<2x256xf32>
    %594 = arith.mulf %593, %592 : vector<2x256xf32>
    %595 = arith.addf %586, %594 : vector<2x256xf32>
    %c56 = arith.constant 56 : index
    %596 = memref.load %arg6[%c56] : memref<99xf32, #tpu.memory_space<smem>>
    %597 = vector.extract_strided_slice %50 {offsets = [0, 16], sizes = [2, 256], strides = [1, 1]} : vector<2x358xf32> to vector<2x256xf32>
    %cst_95 = arith.constant 0.000000e+00 : f32
    %598 = vector.shape_cast %76 : vector<1x256xi1> to vector<1x256xi1>
    %599 = vector.broadcast %598 : vector<1x256xi1> to vector<2x256xi1>
    %600 = vector.broadcast %cst_95 : f32 to vector<2x256xf32>
    %601 = arith.select %599, %597, %600 : vector<2x256xi1>, vector<2x256xf32>
    %602 = vector.broadcast %596 : f32 to vector<2x256xf32>
    %603 = arith.mulf %602, %601 : vector<2x256xf32>
    %604 = arith.addf %595, %603 : vector<2x256xf32>
    %c57 = arith.constant 57 : index
    %605 = memref.load %arg6[%c57] : memref<99xf32, #tpu.memory_space<smem>>
    %606 = vector.extract_strided_slice %50 {offsets = [0, 17], sizes = [2, 256], strides = [1, 1]} : vector<2x358xf32> to vector<2x256xf32>
    %cst_96 = arith.constant 0.000000e+00 : f32
    %607 = vector.shape_cast %85 : vector<1x256xi1> to vector<1x256xi1>
    %608 = vector.broadcast %607 : vector<1x256xi1> to vector<2x256xi1>
    %609 = vector.broadcast %cst_96 : f32 to vector<2x256xf32>
    %610 = arith.select %608, %606, %609 : vector<2x256xi1>, vector<2x256xf32>
    %611 = vector.broadcast %605 : f32 to vector<2x256xf32>
    %612 = arith.mulf %611, %610 : vector<2x256xf32>
    %613 = arith.addf %604, %612 : vector<2x256xf32>
    %c58 = arith.constant 58 : index
    %614 = memref.load %arg6[%c58] : memref<99xf32, #tpu.memory_space<smem>>
    %615 = vector.extract_strided_slice %50 {offsets = [0, 18], sizes = [2, 256], strides = [1, 1]} : vector<2x358xf32> to vector<2x256xf32>
    %cst_97 = arith.constant 0.000000e+00 : f32
    %616 = vector.shape_cast %94 : vector<1x256xi1> to vector<1x256xi1>
    %617 = vector.broadcast %616 : vector<1x256xi1> to vector<2x256xi1>
    %618 = vector.broadcast %cst_97 : f32 to vector<2x256xf32>
    %619 = arith.select %617, %615, %618 : vector<2x256xi1>, vector<2x256xf32>
    %620 = vector.broadcast %614 : f32 to vector<2x256xf32>
    %621 = arith.mulf %620, %619 : vector<2x256xf32>
    %622 = arith.addf %613, %621 : vector<2x256xf32>
    %c59 = arith.constant 59 : index
    %623 = memref.load %arg6[%c59] : memref<99xf32, #tpu.memory_space<smem>>
    %624 = vector.extract_strided_slice %50 {offsets = [0, 19], sizes = [2, 256], strides = [1, 1]} : vector<2x358xf32> to vector<2x256xf32>
    %625 = vector.broadcast %623 : f32 to vector<2x256xf32>
    %626 = arith.mulf %625, %624 : vector<2x256xf32>
    %627 = arith.addf %622, %626 : vector<2x256xf32>
    %c60 = arith.constant 60 : index
    %628 = memref.load %arg6[%c60] : memref<99xf32, #tpu.memory_space<smem>>
    %629 = vector.extract_strided_slice %50 {offsets = [0, 20], sizes = [2, 256], strides = [1, 1]} : vector<2x358xf32> to vector<2x256xf32>
    %cst_98 = arith.constant 0.000000e+00 : f32
    %630 = vector.shape_cast %103 : vector<1x256xi1> to vector<1x256xi1>
    %631 = vector.broadcast %630 : vector<1x256xi1> to vector<2x256xi1>
    %632 = vector.broadcast %cst_98 : f32 to vector<2x256xf32>
    %633 = arith.select %631, %629, %632 : vector<2x256xi1>, vector<2x256xf32>
    %634 = vector.broadcast %628 : f32 to vector<2x256xf32>
    %635 = arith.mulf %634, %633 : vector<2x256xf32>
    %636 = arith.addf %627, %635 : vector<2x256xf32>
    %c61 = arith.constant 61 : index
    %637 = memref.load %arg6[%c61] : memref<99xf32, #tpu.memory_space<smem>>
    %638 = vector.extract_strided_slice %50 {offsets = [0, 21], sizes = [2, 256], strides = [1, 1]} : vector<2x358xf32> to vector<2x256xf32>
    %cst_99 = arith.constant 0.000000e+00 : f32
    %639 = vector.shape_cast %112 : vector<1x256xi1> to vector<1x256xi1>
    %640 = vector.broadcast %639 : vector<1x256xi1> to vector<2x256xi1>
    %641 = vector.broadcast %cst_99 : f32 to vector<2x256xf32>
    %642 = arith.select %640, %638, %641 : vector<2x256xi1>, vector<2x256xf32>
    %643 = vector.broadcast %637 : f32 to vector<2x256xf32>
    %644 = arith.mulf %643, %642 : vector<2x256xf32>
    %645 = arith.addf %636, %644 : vector<2x256xf32>
    %c62 = arith.constant 62 : index
    %646 = memref.load %arg6[%c62] : memref<99xf32, #tpu.memory_space<smem>>
    %647 = vector.extract_strided_slice %50 {offsets = [0, 22], sizes = [2, 256], strides = [1, 1]} : vector<2x358xf32> to vector<2x256xf32>
    %cst_100 = arith.constant 0.000000e+00 : f32
    %648 = vector.shape_cast %121 : vector<1x256xi1> to vector<1x256xi1>
    %649 = vector.broadcast %648 : vector<1x256xi1> to vector<2x256xi1>
    %650 = vector.broadcast %cst_100 : f32 to vector<2x256xf32>
    %651 = arith.select %649, %647, %650 : vector<2x256xi1>, vector<2x256xf32>
    %652 = vector.broadcast %646 : f32 to vector<2x256xf32>
    %653 = arith.mulf %652, %651 : vector<2x256xf32>
    %654 = arith.addf %645, %653 : vector<2x256xf32>
    %c63 = arith.constant 63 : index
    %655 = memref.load %arg6[%c63] : memref<99xf32, #tpu.memory_space<smem>>
    %656 = vector.extract_strided_slice %50 {offsets = [0, 32], sizes = [2, 256], strides = [1, 1]} : vector<2x358xf32> to vector<2x256xf32>
    %cst_101 = arith.constant 0.000000e+00 : f32
    %657 = vector.shape_cast %76 : vector<1x256xi1> to vector<1x256xi1>
    %658 = vector.broadcast %657 : vector<1x256xi1> to vector<2x256xi1>
    %659 = vector.broadcast %cst_101 : f32 to vector<2x256xf32>
    %660 = arith.select %658, %656, %659 : vector<2x256xi1>, vector<2x256xf32>
    %661 = vector.broadcast %655 : f32 to vector<2x256xf32>
    %662 = arith.mulf %661, %660 : vector<2x256xf32>
    %663 = arith.addf %654, %662 : vector<2x256xf32>
    %c64 = arith.constant 64 : index
    %664 = memref.load %arg6[%c64] : memref<99xf32, #tpu.memory_space<smem>>
    %665 = vector.extract_strided_slice %50 {offsets = [0, 33], sizes = [2, 256], strides = [1, 1]} : vector<2x358xf32> to vector<2x256xf32>
    %cst_102 = arith.constant 0.000000e+00 : f32
    %666 = vector.shape_cast %85 : vector<1x256xi1> to vector<1x256xi1>
    %667 = vector.broadcast %666 : vector<1x256xi1> to vector<2x256xi1>
    %668 = vector.broadcast %cst_102 : f32 to vector<2x256xf32>
    %669 = arith.select %667, %665, %668 : vector<2x256xi1>, vector<2x256xf32>
    %670 = vector.broadcast %664 : f32 to vector<2x256xf32>
    %671 = arith.mulf %670, %669 : vector<2x256xf32>
    %672 = arith.addf %663, %671 : vector<2x256xf32>
    %c65 = arith.constant 65 : index
    %673 = memref.load %arg6[%c65] : memref<99xf32, #tpu.memory_space<smem>>
    %674 = vector.extract_strided_slice %50 {offsets = [0, 34], sizes = [2, 256], strides = [1, 1]} : vector<2x358xf32> to vector<2x256xf32>
    %cst_103 = arith.constant 0.000000e+00 : f32
    %675 = vector.shape_cast %94 : vector<1x256xi1> to vector<1x256xi1>
    %676 = vector.broadcast %675 : vector<1x256xi1> to vector<2x256xi1>
    %677 = vector.broadcast %cst_103 : f32 to vector<2x256xf32>
    %678 = arith.select %676, %674, %677 : vector<2x256xi1>, vector<2x256xf32>
    %679 = vector.broadcast %673 : f32 to vector<2x256xf32>
    %680 = arith.mulf %679, %678 : vector<2x256xf32>
    %681 = arith.addf %672, %680 : vector<2x256xf32>
    %c66 = arith.constant 66 : index
    %682 = memref.load %arg6[%c66] : memref<99xf32, #tpu.memory_space<smem>>
    %683 = vector.extract_strided_slice %50 {offsets = [0, 35], sizes = [2, 256], strides = [1, 1]} : vector<2x358xf32> to vector<2x256xf32>
    %684 = vector.broadcast %682 : f32 to vector<2x256xf32>
    %685 = arith.mulf %684, %683 : vector<2x256xf32>
    %686 = arith.addf %681, %685 : vector<2x256xf32>
    %c67 = arith.constant 67 : index
    %687 = memref.load %arg6[%c67] : memref<99xf32, #tpu.memory_space<smem>>
    %688 = vector.extract_strided_slice %50 {offsets = [0, 36], sizes = [2, 256], strides = [1, 1]} : vector<2x358xf32> to vector<2x256xf32>
    %cst_104 = arith.constant 0.000000e+00 : f32
    %689 = vector.shape_cast %103 : vector<1x256xi1> to vector<1x256xi1>
    %690 = vector.broadcast %689 : vector<1x256xi1> to vector<2x256xi1>
    %691 = vector.broadcast %cst_104 : f32 to vector<2x256xf32>
    %692 = arith.select %690, %688, %691 : vector<2x256xi1>, vector<2x256xf32>
    %693 = vector.broadcast %687 : f32 to vector<2x256xf32>
    %694 = arith.mulf %693, %692 : vector<2x256xf32>
    %695 = arith.addf %686, %694 : vector<2x256xf32>
    %c68 = arith.constant 68 : index
    %696 = memref.load %arg6[%c68] : memref<99xf32, #tpu.memory_space<smem>>
    %697 = vector.extract_strided_slice %50 {offsets = [0, 37], sizes = [2, 256], strides = [1, 1]} : vector<2x358xf32> to vector<2x256xf32>
    %cst_105 = arith.constant 0.000000e+00 : f32
    %698 = vector.shape_cast %112 : vector<1x256xi1> to vector<1x256xi1>
    %699 = vector.broadcast %698 : vector<1x256xi1> to vector<2x256xi1>
    %700 = vector.broadcast %cst_105 : f32 to vector<2x256xf32>
    %701 = arith.select %699, %697, %700 : vector<2x256xi1>, vector<2x256xf32>
    %702 = vector.broadcast %696 : f32 to vector<2x256xf32>
    %703 = arith.mulf %702, %701 : vector<2x256xf32>
    %704 = arith.addf %695, %703 : vector<2x256xf32>
    %c69 = arith.constant 69 : index
    %705 = memref.load %arg6[%c69] : memref<99xf32, #tpu.memory_space<smem>>
    %706 = vector.extract_strided_slice %50 {offsets = [0, 38], sizes = [2, 256], strides = [1, 1]} : vector<2x358xf32> to vector<2x256xf32>
    %cst_106 = arith.constant 0.000000e+00 : f32
    %707 = vector.shape_cast %121 : vector<1x256xi1> to vector<1x256xi1>
    %708 = vector.broadcast %707 : vector<1x256xi1> to vector<2x256xi1>
    %709 = vector.broadcast %cst_106 : f32 to vector<2x256xf32>
    %710 = arith.select %708, %706, %709 : vector<2x256xi1>, vector<2x256xf32>
    %711 = vector.broadcast %705 : f32 to vector<2x256xf32>
    %712 = arith.mulf %711, %710 : vector<2x256xf32>
    %713 = arith.addf %704, %712 : vector<2x256xf32>
    %c70 = arith.constant 70 : index
    %714 = memref.load %arg6[%c70] : memref<99xf32, #tpu.memory_space<smem>>
    %715 = vector.extract_strided_slice %50 {offsets = [0, 48], sizes = [2, 256], strides = [1, 1]} : vector<2x358xf32> to vector<2x256xf32>
    %cst_107 = arith.constant 0.000000e+00 : f32
    %716 = vector.shape_cast %76 : vector<1x256xi1> to vector<1x256xi1>
    %717 = vector.broadcast %716 : vector<1x256xi1> to vector<2x256xi1>
    %718 = vector.broadcast %cst_107 : f32 to vector<2x256xf32>
    %719 = arith.select %717, %715, %718 : vector<2x256xi1>, vector<2x256xf32>
    %720 = vector.broadcast %714 : f32 to vector<2x256xf32>
    %721 = arith.mulf %720, %719 : vector<2x256xf32>
    %722 = arith.addf %713, %721 : vector<2x256xf32>
    %c71 = arith.constant 71 : index
    %723 = memref.load %arg6[%c71] : memref<99xf32, #tpu.memory_space<smem>>
    %724 = vector.extract_strided_slice %50 {offsets = [0, 49], sizes = [2, 256], strides = [1, 1]} : vector<2x358xf32> to vector<2x256xf32>
    %cst_108 = arith.constant 0.000000e+00 : f32
    %725 = vector.shape_cast %85 : vector<1x256xi1> to vector<1x256xi1>
    %726 = vector.broadcast %725 : vector<1x256xi1> to vector<2x256xi1>
    %727 = vector.broadcast %cst_108 : f32 to vector<2x256xf32>
    %728 = arith.select %726, %724, %727 : vector<2x256xi1>, vector<2x256xf32>
    %729 = vector.broadcast %723 : f32 to vector<2x256xf32>
    %730 = arith.mulf %729, %728 : vector<2x256xf32>
    %731 = arith.addf %722, %730 : vector<2x256xf32>
    %c72 = arith.constant 72 : index
    %732 = memref.load %arg6[%c72] : memref<99xf32, #tpu.memory_space<smem>>
    %733 = vector.extract_strided_slice %50 {offsets = [0, 50], sizes = [2, 256], strides = [1, 1]} : vector<2x358xf32> to vector<2x256xf32>
    %cst_109 = arith.constant 0.000000e+00 : f32
    %734 = vector.shape_cast %94 : vector<1x256xi1> to vector<1x256xi1>
    %735 = vector.broadcast %734 : vector<1x256xi1> to vector<2x256xi1>
    %736 = vector.broadcast %cst_109 : f32 to vector<2x256xf32>
    %737 = arith.select %735, %733, %736 : vector<2x256xi1>, vector<2x256xf32>
    %738 = vector.broadcast %732 : f32 to vector<2x256xf32>
    %739 = arith.mulf %738, %737 : vector<2x256xf32>
    %740 = arith.addf %731, %739 : vector<2x256xf32>
    %c73 = arith.constant 73 : index
    %741 = memref.load %arg6[%c73] : memref<99xf32, #tpu.memory_space<smem>>
    %742 = vector.extract_strided_slice %50 {offsets = [0, 51], sizes = [2, 256], strides = [1, 1]} : vector<2x358xf32> to vector<2x256xf32>
    %743 = vector.broadcast %741 : f32 to vector<2x256xf32>
    %744 = arith.mulf %743, %742 : vector<2x256xf32>
    %745 = arith.addf %740, %744 : vector<2x256xf32>
    %c74 = arith.constant 74 : index
    %746 = memref.load %arg6[%c74] : memref<99xf32, #tpu.memory_space<smem>>
    %747 = vector.extract_strided_slice %50 {offsets = [0, 52], sizes = [2, 256], strides = [1, 1]} : vector<2x358xf32> to vector<2x256xf32>
    %cst_110 = arith.constant 0.000000e+00 : f32
    %748 = vector.shape_cast %103 : vector<1x256xi1> to vector<1x256xi1>
    %749 = vector.broadcast %748 : vector<1x256xi1> to vector<2x256xi1>
    %750 = vector.broadcast %cst_110 : f32 to vector<2x256xf32>
    %751 = arith.select %749, %747, %750 : vector<2x256xi1>, vector<2x256xf32>
    %752 = vector.broadcast %746 : f32 to vector<2x256xf32>
    %753 = arith.mulf %752, %751 : vector<2x256xf32>
    %754 = arith.addf %745, %753 : vector<2x256xf32>
    %c75 = arith.constant 75 : index
    %755 = memref.load %arg6[%c75] : memref<99xf32, #tpu.memory_space<smem>>
    %756 = vector.extract_strided_slice %50 {offsets = [0, 53], sizes = [2, 256], strides = [1, 1]} : vector<2x358xf32> to vector<2x256xf32>
    %cst_111 = arith.constant 0.000000e+00 : f32
    %757 = vector.shape_cast %112 : vector<1x256xi1> to vector<1x256xi1>
    %758 = vector.broadcast %757 : vector<1x256xi1> to vector<2x256xi1>
    %759 = vector.broadcast %cst_111 : f32 to vector<2x256xf32>
    %760 = arith.select %758, %756, %759 : vector<2x256xi1>, vector<2x256xf32>
    %761 = vector.broadcast %755 : f32 to vector<2x256xf32>
    %762 = arith.mulf %761, %760 : vector<2x256xf32>
    %763 = arith.addf %754, %762 : vector<2x256xf32>
    %c76 = arith.constant 76 : index
    %764 = memref.load %arg6[%c76] : memref<99xf32, #tpu.memory_space<smem>>
    %765 = vector.extract_strided_slice %50 {offsets = [0, 54], sizes = [2, 256], strides = [1, 1]} : vector<2x358xf32> to vector<2x256xf32>
    %cst_112 = arith.constant 0.000000e+00 : f32
    %766 = vector.shape_cast %121 : vector<1x256xi1> to vector<1x256xi1>
    %767 = vector.broadcast %766 : vector<1x256xi1> to vector<2x256xi1>
    %768 = vector.broadcast %cst_112 : f32 to vector<2x256xf32>
    %769 = arith.select %767, %765, %768 : vector<2x256xi1>, vector<2x256xf32>
    %770 = vector.broadcast %764 : f32 to vector<2x256xf32>
    %771 = arith.mulf %770, %769 : vector<2x256xf32>
    %772 = arith.addf %763, %771 : vector<2x256xf32>
    %c77 = arith.constant 77 : index
    %773 = memref.load %arg6[%c77] : memref<99xf32, #tpu.memory_space<smem>>
    %774 = vector.extract_strided_slice %50 {offsets = [0, 64], sizes = [2, 256], strides = [1, 1]} : vector<2x358xf32> to vector<2x256xf32>
    %cst_113 = arith.constant 0.000000e+00 : f32
    %775 = vector.shape_cast %76 : vector<1x256xi1> to vector<1x256xi1>
    %776 = vector.broadcast %775 : vector<1x256xi1> to vector<2x256xi1>
    %777 = vector.broadcast %cst_113 : f32 to vector<2x256xf32>
    %778 = arith.select %776, %774, %777 : vector<2x256xi1>, vector<2x256xf32>
    %779 = vector.broadcast %773 : f32 to vector<2x256xf32>
    %780 = arith.mulf %779, %778 : vector<2x256xf32>
    %781 = arith.addf %772, %780 : vector<2x256xf32>
    %c78 = arith.constant 78 : index
    %782 = memref.load %arg6[%c78] : memref<99xf32, #tpu.memory_space<smem>>
    %783 = vector.extract_strided_slice %50 {offsets = [0, 65], sizes = [2, 256], strides = [1, 1]} : vector<2x358xf32> to vector<2x256xf32>
    %cst_114 = arith.constant 0.000000e+00 : f32
    %784 = vector.shape_cast %85 : vector<1x256xi1> to vector<1x256xi1>
    %785 = vector.broadcast %784 : vector<1x256xi1> to vector<2x256xi1>
    %786 = vector.broadcast %cst_114 : f32 to vector<2x256xf32>
    %787 = arith.select %785, %783, %786 : vector<2x256xi1>, vector<2x256xf32>
    %788 = vector.broadcast %782 : f32 to vector<2x256xf32>
    %789 = arith.mulf %788, %787 : vector<2x256xf32>
    %790 = arith.addf %781, %789 : vector<2x256xf32>
    %c79 = arith.constant 79 : index
    %791 = memref.load %arg6[%c79] : memref<99xf32, #tpu.memory_space<smem>>
    %792 = vector.extract_strided_slice %50 {offsets = [0, 66], sizes = [2, 256], strides = [1, 1]} : vector<2x358xf32> to vector<2x256xf32>
    %cst_115 = arith.constant 0.000000e+00 : f32
    %793 = vector.shape_cast %94 : vector<1x256xi1> to vector<1x256xi1>
    %794 = vector.broadcast %793 : vector<1x256xi1> to vector<2x256xi1>
    %795 = vector.broadcast %cst_115 : f32 to vector<2x256xf32>
    %796 = arith.select %794, %792, %795 : vector<2x256xi1>, vector<2x256xf32>
    %797 = vector.broadcast %791 : f32 to vector<2x256xf32>
    %798 = arith.mulf %797, %796 : vector<2x256xf32>
    %799 = arith.addf %790, %798 : vector<2x256xf32>
    %c80 = arith.constant 80 : index
    %800 = memref.load %arg6[%c80] : memref<99xf32, #tpu.memory_space<smem>>
    %801 = vector.extract_strided_slice %50 {offsets = [0, 67], sizes = [2, 256], strides = [1, 1]} : vector<2x358xf32> to vector<2x256xf32>
    %802 = vector.broadcast %800 : f32 to vector<2x256xf32>
    %803 = arith.mulf %802, %801 : vector<2x256xf32>
    %804 = arith.addf %799, %803 : vector<2x256xf32>
    %c81 = arith.constant 81 : index
    %805 = memref.load %arg6[%c81] : memref<99xf32, #tpu.memory_space<smem>>
    %806 = vector.extract_strided_slice %50 {offsets = [0, 68], sizes = [2, 256], strides = [1, 1]} : vector<2x358xf32> to vector<2x256xf32>
    %cst_116 = arith.constant 0.000000e+00 : f32
    %807 = vector.shape_cast %103 : vector<1x256xi1> to vector<1x256xi1>
    %808 = vector.broadcast %807 : vector<1x256xi1> to vector<2x256xi1>
    %809 = vector.broadcast %cst_116 : f32 to vector<2x256xf32>
    %810 = arith.select %808, %806, %809 : vector<2x256xi1>, vector<2x256xf32>
    %811 = vector.broadcast %805 : f32 to vector<2x256xf32>
    %812 = arith.mulf %811, %810 : vector<2x256xf32>
    %813 = arith.addf %804, %812 : vector<2x256xf32>
    %c82 = arith.constant 82 : index
    %814 = memref.load %arg6[%c82] : memref<99xf32, #tpu.memory_space<smem>>
    %815 = vector.extract_strided_slice %50 {offsets = [0, 69], sizes = [2, 256], strides = [1, 1]} : vector<2x358xf32> to vector<2x256xf32>
    %cst_117 = arith.constant 0.000000e+00 : f32
    %816 = vector.shape_cast %112 : vector<1x256xi1> to vector<1x256xi1>
    %817 = vector.broadcast %816 : vector<1x256xi1> to vector<2x256xi1>
    %818 = vector.broadcast %cst_117 : f32 to vector<2x256xf32>
    %819 = arith.select %817, %815, %818 : vector<2x256xi1>, vector<2x256xf32>
    %820 = vector.broadcast %814 : f32 to vector<2x256xf32>
    %821 = arith.mulf %820, %819 : vector<2x256xf32>
    %822 = arith.addf %813, %821 : vector<2x256xf32>
    %c83 = arith.constant 83 : index
    %823 = memref.load %arg6[%c83] : memref<99xf32, #tpu.memory_space<smem>>
    %824 = vector.extract_strided_slice %50 {offsets = [0, 70], sizes = [2, 256], strides = [1, 1]} : vector<2x358xf32> to vector<2x256xf32>
    %cst_118 = arith.constant 0.000000e+00 : f32
    %825 = vector.shape_cast %121 : vector<1x256xi1> to vector<1x256xi1>
    %826 = vector.broadcast %825 : vector<1x256xi1> to vector<2x256xi1>
    %827 = vector.broadcast %cst_118 : f32 to vector<2x256xf32>
    %828 = arith.select %826, %824, %827 : vector<2x256xi1>, vector<2x256xf32>
    %829 = vector.broadcast %823 : f32 to vector<2x256xf32>
    %830 = arith.mulf %829, %828 : vector<2x256xf32>
    %831 = arith.addf %822, %830 : vector<2x256xf32>
    %c84 = arith.constant 84 : index
    %832 = memref.load %arg6[%c84] : memref<99xf32, #tpu.memory_space<smem>>
    %833 = vector.extract_strided_slice %50 {offsets = [0, 80], sizes = [2, 256], strides = [1, 1]} : vector<2x358xf32> to vector<2x256xf32>
    %cst_119 = arith.constant 0.000000e+00 : f32
    %834 = vector.shape_cast %76 : vector<1x256xi1> to vector<1x256xi1>
    %835 = vector.broadcast %834 : vector<1x256xi1> to vector<2x256xi1>
    %836 = vector.broadcast %cst_119 : f32 to vector<2x256xf32>
    %837 = arith.select %835, %833, %836 : vector<2x256xi1>, vector<2x256xf32>
    %838 = vector.broadcast %832 : f32 to vector<2x256xf32>
    %839 = arith.mulf %838, %837 : vector<2x256xf32>
    %840 = arith.addf %831, %839 : vector<2x256xf32>
    %c85 = arith.constant 85 : index
    %841 = memref.load %arg6[%c85] : memref<99xf32, #tpu.memory_space<smem>>
    %842 = vector.extract_strided_slice %50 {offsets = [0, 81], sizes = [2, 256], strides = [1, 1]} : vector<2x358xf32> to vector<2x256xf32>
    %cst_120 = arith.constant 0.000000e+00 : f32
    %843 = vector.shape_cast %85 : vector<1x256xi1> to vector<1x256xi1>
    %844 = vector.broadcast %843 : vector<1x256xi1> to vector<2x256xi1>
    %845 = vector.broadcast %cst_120 : f32 to vector<2x256xf32>
    %846 = arith.select %844, %842, %845 : vector<2x256xi1>, vector<2x256xf32>
    %847 = vector.broadcast %841 : f32 to vector<2x256xf32>
    %848 = arith.mulf %847, %846 : vector<2x256xf32>
    %849 = arith.addf %840, %848 : vector<2x256xf32>
    %c86 = arith.constant 86 : index
    %850 = memref.load %arg6[%c86] : memref<99xf32, #tpu.memory_space<smem>>
    %851 = vector.extract_strided_slice %50 {offsets = [0, 82], sizes = [2, 256], strides = [1, 1]} : vector<2x358xf32> to vector<2x256xf32>
    %cst_121 = arith.constant 0.000000e+00 : f32
    %852 = vector.shape_cast %94 : vector<1x256xi1> to vector<1x256xi1>
    %853 = vector.broadcast %852 : vector<1x256xi1> to vector<2x256xi1>
    %854 = vector.broadcast %cst_121 : f32 to vector<2x256xf32>
    %855 = arith.select %853, %851, %854 : vector<2x256xi1>, vector<2x256xf32>
    %856 = vector.broadcast %850 : f32 to vector<2x256xf32>
    %857 = arith.mulf %856, %855 : vector<2x256xf32>
    %858 = arith.addf %849, %857 : vector<2x256xf32>
    %c87 = arith.constant 87 : index
    %859 = memref.load %arg6[%c87] : memref<99xf32, #tpu.memory_space<smem>>
    %860 = vector.extract_strided_slice %50 {offsets = [0, 83], sizes = [2, 256], strides = [1, 1]} : vector<2x358xf32> to vector<2x256xf32>
    %861 = vector.broadcast %859 : f32 to vector<2x256xf32>
    %862 = arith.mulf %861, %860 : vector<2x256xf32>
    %863 = arith.addf %858, %862 : vector<2x256xf32>
    %c88 = arith.constant 88 : index
    %864 = memref.load %arg6[%c88] : memref<99xf32, #tpu.memory_space<smem>>
    %865 = vector.extract_strided_slice %50 {offsets = [0, 84], sizes = [2, 256], strides = [1, 1]} : vector<2x358xf32> to vector<2x256xf32>
    %cst_122 = arith.constant 0.000000e+00 : f32
    %866 = vector.shape_cast %103 : vector<1x256xi1> to vector<1x256xi1>
    %867 = vector.broadcast %866 : vector<1x256xi1> to vector<2x256xi1>
    %868 = vector.broadcast %cst_122 : f32 to vector<2x256xf32>
    %869 = arith.select %867, %865, %868 : vector<2x256xi1>, vector<2x256xf32>
    %870 = vector.broadcast %864 : f32 to vector<2x256xf32>
    %871 = arith.mulf %870, %869 : vector<2x256xf32>
    %872 = arith.addf %863, %871 : vector<2x256xf32>
    %c89 = arith.constant 89 : index
    %873 = memref.load %arg6[%c89] : memref<99xf32, #tpu.memory_space<smem>>
    %874 = vector.extract_strided_slice %50 {offsets = [0, 85], sizes = [2, 256], strides = [1, 1]} : vector<2x358xf32> to vector<2x256xf32>
    %cst_123 = arith.constant 0.000000e+00 : f32
    %875 = vector.shape_cast %112 : vector<1x256xi1> to vector<1x256xi1>
    %876 = vector.broadcast %875 : vector<1x256xi1> to vector<2x256xi1>
    %877 = vector.broadcast %cst_123 : f32 to vector<2x256xf32>
    %878 = arith.select %876, %874, %877 : vector<2x256xi1>, vector<2x256xf32>
    %879 = vector.broadcast %873 : f32 to vector<2x256xf32>
    %880 = arith.mulf %879, %878 : vector<2x256xf32>
    %881 = arith.addf %872, %880 : vector<2x256xf32>
    %c90 = arith.constant 90 : index
    %882 = memref.load %arg6[%c90] : memref<99xf32, #tpu.memory_space<smem>>
    %883 = vector.extract_strided_slice %50 {offsets = [0, 86], sizes = [2, 256], strides = [1, 1]} : vector<2x358xf32> to vector<2x256xf32>
    %cst_124 = arith.constant 0.000000e+00 : f32
    %884 = vector.shape_cast %121 : vector<1x256xi1> to vector<1x256xi1>
    %885 = vector.broadcast %884 : vector<1x256xi1> to vector<2x256xi1>
    %886 = vector.broadcast %cst_124 : f32 to vector<2x256xf32>
    %887 = arith.select %885, %883, %886 : vector<2x256xi1>, vector<2x256xf32>
    %888 = vector.broadcast %882 : f32 to vector<2x256xf32>
    %889 = arith.mulf %888, %887 : vector<2x256xf32>
    %890 = arith.addf %881, %889 : vector<2x256xf32>
    %c91 = arith.constant 91 : index
    %891 = memref.load %arg6[%c91] : memref<99xf32, #tpu.memory_space<smem>>
    %892 = vector.extract_strided_slice %50 {offsets = [0, 96], sizes = [2, 256], strides = [1, 1]} : vector<2x358xf32> to vector<2x256xf32>
    %cst_125 = arith.constant 0.000000e+00 : f32
    %893 = vector.shape_cast %76 : vector<1x256xi1> to vector<1x256xi1>
    %894 = vector.broadcast %893 : vector<1x256xi1> to vector<2x256xi1>
    %895 = vector.broadcast %cst_125 : f32 to vector<2x256xf32>
    %896 = arith.select %894, %892, %895 : vector<2x256xi1>, vector<2x256xf32>
    %897 = vector.broadcast %891 : f32 to vector<2x256xf32>
    %898 = arith.mulf %897, %896 : vector<2x256xf32>
    %899 = arith.addf %890, %898 : vector<2x256xf32>
    %c92 = arith.constant 92 : index
    %900 = memref.load %arg6[%c92] : memref<99xf32, #tpu.memory_space<smem>>
    %901 = vector.extract_strided_slice %50 {offsets = [0, 97], sizes = [2, 256], strides = [1, 1]} : vector<2x358xf32> to vector<2x256xf32>
    %cst_126 = arith.constant 0.000000e+00 : f32
    %902 = vector.shape_cast %85 : vector<1x256xi1> to vector<1x256xi1>
    %903 = vector.broadcast %902 : vector<1x256xi1> to vector<2x256xi1>
    %904 = vector.broadcast %cst_126 : f32 to vector<2x256xf32>
    %905 = arith.select %903, %901, %904 : vector<2x256xi1>, vector<2x256xf32>
    %906 = vector.broadcast %900 : f32 to vector<2x256xf32>
    %907 = arith.mulf %906, %905 : vector<2x256xf32>
    %908 = arith.addf %899, %907 : vector<2x256xf32>
    %c93 = arith.constant 93 : index
    %909 = memref.load %arg6[%c93] : memref<99xf32, #tpu.memory_space<smem>>
    %910 = vector.extract_strided_slice %50 {offsets = [0, 98], sizes = [2, 256], strides = [1, 1]} : vector<2x358xf32> to vector<2x256xf32>
    %cst_127 = arith.constant 0.000000e+00 : f32
    %911 = vector.shape_cast %94 : vector<1x256xi1> to vector<1x256xi1>
    %912 = vector.broadcast %911 : vector<1x256xi1> to vector<2x256xi1>
    %913 = vector.broadcast %cst_127 : f32 to vector<2x256xf32>
    %914 = arith.select %912, %910, %913 : vector<2x256xi1>, vector<2x256xf32>
    %915 = vector.broadcast %909 : f32 to vector<2x256xf32>
    %916 = arith.mulf %915, %914 : vector<2x256xf32>
    %917 = arith.addf %908, %916 : vector<2x256xf32>
    %c94 = arith.constant 94 : index
    %918 = memref.load %arg6[%c94] : memref<99xf32, #tpu.memory_space<smem>>
    %919 = vector.extract_strided_slice %50 {offsets = [0, 99], sizes = [2, 256], strides = [1, 1]} : vector<2x358xf32> to vector<2x256xf32>
    %920 = vector.broadcast %918 : f32 to vector<2x256xf32>
    %921 = arith.mulf %920, %919 : vector<2x256xf32>
    %922 = arith.addf %917, %921 : vector<2x256xf32>
    %c95 = arith.constant 95 : index
    %923 = memref.load %arg6[%c95] : memref<99xf32, #tpu.memory_space<smem>>
    %924 = vector.extract_strided_slice %50 {offsets = [0, 100], sizes = [2, 256], strides = [1, 1]} : vector<2x358xf32> to vector<2x256xf32>
    %cst_128 = arith.constant 0.000000e+00 : f32
    %925 = vector.shape_cast %103 : vector<1x256xi1> to vector<1x256xi1>
    %926 = vector.broadcast %925 : vector<1x256xi1> to vector<2x256xi1>
    %927 = vector.broadcast %cst_128 : f32 to vector<2x256xf32>
    %928 = arith.select %926, %924, %927 : vector<2x256xi1>, vector<2x256xf32>
    %929 = vector.broadcast %923 : f32 to vector<2x256xf32>
    %930 = arith.mulf %929, %928 : vector<2x256xf32>
    %931 = arith.addf %922, %930 : vector<2x256xf32>
    %c96 = arith.constant 96 : index
    %932 = memref.load %arg6[%c96] : memref<99xf32, #tpu.memory_space<smem>>
    %933 = vector.extract_strided_slice %50 {offsets = [0, 101], sizes = [2, 256], strides = [1, 1]} : vector<2x358xf32> to vector<2x256xf32>
    %cst_129 = arith.constant 0.000000e+00 : f32
    %934 = vector.shape_cast %112 : vector<1x256xi1> to vector<1x256xi1>
    %935 = vector.broadcast %934 : vector<1x256xi1> to vector<2x256xi1>
    %936 = vector.broadcast %cst_129 : f32 to vector<2x256xf32>
    %937 = arith.select %935, %933, %936 : vector<2x256xi1>, vector<2x256xf32>
    %938 = vector.broadcast %932 : f32 to vector<2x256xf32>
    %939 = arith.mulf %938, %937 : vector<2x256xf32>
    %940 = arith.addf %931, %939 : vector<2x256xf32>
    %c97 = arith.constant 97 : index
    %941 = memref.load %arg6[%c97] : memref<99xf32, #tpu.memory_space<smem>>
    %942 = vector.extract_strided_slice %50 {offsets = [0, 102], sizes = [2, 256], strides = [1, 1]} : vector<2x358xf32> to vector<2x256xf32>
    %cst_130 = arith.constant 0.000000e+00 : f32
    %943 = vector.shape_cast %121 : vector<1x256xi1> to vector<1x256xi1>
    %944 = vector.broadcast %943 : vector<1x256xi1> to vector<2x256xi1>
    %945 = vector.broadcast %cst_130 : f32 to vector<2x256xf32>
    %946 = arith.select %944, %942, %945 : vector<2x256xi1>, vector<2x256xf32>
    %947 = vector.broadcast %941 : f32 to vector<2x256xf32>
    %948 = arith.mulf %947, %946 : vector<2x256xf32>
    %949 = arith.addf %940, %948 : vector<2x256xf32>
    %950 = arith.negf %949 : vector<2x256xf32>
    %951 = math.exp %950 : vector<2x256xf32>
    %cst_131 = arith.constant 1.000000e+00 : f32
    %952 = vector.broadcast %cst_131 : f32 to vector<2x256xf32>
    %953 = arith.addf %952, %951 : vector<2x256xf32>
    %954 = arith.divf %952, %953 : vector<2x256xf32>
    %955 = vector.shape_cast %954 : vector<2x256xf32> to vector<2x1x256xf32>
    %956 = vector.broadcast %955 : vector<2x1x256xf32> to vector<2x32x256xf32>
    %957 = arith.mulf %43, %956 : vector<2x32x256xf32>
    %c0_132 = arith.constant 0 : index
    %c0_133 = arith.constant 0 : index
    %c0_134 = arith.constant 0 : index
    %958 = vector.load %arg7[%c0_132, %c0_133, %c0_134] : memref<2x32x256xf32, #tpu.memory_space<vmem>>, vector<2x32x256xf32>
    tpu.vector_store %arg7[%c0_132, %c0_133, %c0_134], %957 {strides = array<i32>} : memref<2x32x256xf32, #tpu.memory_space<vmem>>, vector<2x32x256xf32>,
    return
  }
  func.func @transform_0(%arg0: i32) -> (i32, i32, i32) {
    %c0_i32 = arith.constant 0 : i32
    %c0_i32_0 = arith.constant 0 : i32
    %c0_i32_1 = arith.constant 0 : i32
    return %arg0, %c0_i32, %c0_i32_0 : i32, i32, i32
  }
  func.func @transform_1(%arg0: i32) -> (i32, i32) {
    %c0_i32 = arith.constant 0 : i32
    %c0_i32_0 = arith.constant 0 : i32
    %c0_i32_1 = arith.constant 0 : i32
    return %c0_i32, %c0_i32_0 : i32, i32
  }
  func.func @transform_2(%arg0: i32) -> i32 {
    %c0_i32 = arith.constant 0 : i32
    %c0_i32_0 = arith.constant 0 : i32
    return %c0_i32 : i32
  }
  func.func @transform_3(%arg0: i32) -> (i32, i32) {
    %c0_i32 = arith.constant 0 : i32
    %c0_i32_0 = arith.constant 0 : i32
    %c0_i32_1 = arith.constant 0 : i32
    return %c0_i32, %c0_i32_0 : i32, i32
  }
  func.func @transform_4(%arg0: i32) -> (i32, i32) {
    %c0_i32 = arith.constant 0 : i32
    %c0_i32_0 = arith.constant 0 : i32
    %c0_i32_1 = arith.constant 0 : i32
    return %c0_i32, %c0_i32_0 : i32, i32
  }
  func.func @transform_5(%arg0: i32) -> i32 {
    %c0_i32 = arith.constant 0 : i32
    %c0_i32_0 = arith.constant 0 : i32
    return %c0_i32 : i32
  }
  func.func @transform_6(%arg0: i32) -> (i32, i32, i32) {
    %c0_i32 = arith.constant 0 : i32
    %c0_i32_0 = arith.constant 0 : i32
    %c0_i32_1 = arith.constant 0 : i32
    return %arg0, %c0_i32, %c0_i32_0 : i32, i32, i32
  }
}

</mosaic_0001>

<llo_original>
// kernel: tpu_custom_call.1
$region0: #{tpu_custom_call.1}
  #allocation0 [shape = 'u32[]', space=smem, size = 0x4, offset = 0x4, fixed_abs, tag = 'smem constant byte address 0x4 - core index']
  #allocation1 [shape = 'u32[72,128]{1,0:T(1,128)}', space=vmem, size = 0x9000, scoped, tag = 'internal scratch']
  %s0 = inlined_call_operand.hbm [shape: f32[2,32,256], index: 0, kind: input, shape index: {}]
  %s1 = inlined_call_operand.hbm [shape: f32[2,32], index: 1, kind: input, shape index: {}]
  %s2 = inlined_call_operand.hbm [shape: f32[2], index: 2, kind: input, shape index: {}]
  %s3 = inlined_call_operand.vmem [shape: f32[2,32], index: 3, kind: input, shape index: {}]
  %s4 = inlined_call_operand.vmem [shape: f32[1,32], index: 4, kind: input, shape index: {}]
  %s5 = inlined_call_operand.vmem [shape: f32[99], index: 5, kind: input, shape index: {}]
  %s6 = inlined_call_operand.hbm [shape: f32[2,32,256], index: 6, kind: output, shape index: {}]
  %s7 = sld [smem:[#allocation0]]
  $region50: #{tpu_custom_call.1} parent=0
    _
  %s9 = ssub.s32 1, %s7
  %s10 = scalar_select 0, %s9, %s7
  $region1: #{tpu_custom_call.1} parent=0
    #allocation2 [shape = 'u8[65536]{0}', space=vmem, size = 0x10000, scoped, tag = 'input window, operand 0, single buffered']
    #allocation3 [shape = 's32[1]{0}', space=sflag, size = 0x4, scoped, tag = 'scoped memory for tpu_custom_call.1']
    #allocation4 [shape = 's32[1]{0}', space=sflag, size = 0x4, scoped, tag = 'scoped memory for tpu_custom_call.1']
    #allocation5 [shape = 's32[1]{0}', space=sflag, size = 0x4, scoped, tag = 'scoped memory for tpu_custom_call.1']
    #allocation6 [shape = 's32[1]{0}', space=sflag, size = 0x4, scoped, tag = 'scoped memory for tpu_custom_call.1']
    #allocation7 [shape = 'u8[1024]{0}', space=vmem, size = 0x400, scoped, tag = 'input window, operand 1, single buffered']
    #allocation8 [shape = 's32[1]{0}', space=sflag, size = 0x4, scoped, tag = 'scoped memory for tpu_custom_call.1']
    #allocation9 [shape = 'u8[512]{0}', space=smem, size = 0x200, scoped, tag = 'input window, operand 2, single buffered']
    #allocation10 [shape = 'u8[512]{0}', space=smem, size = 0x200, scoped, tag = 'input window, operand 5, single buffered']
    #allocation11 [shape = 'u8[65536]{0}', space=vmem, size = 0x10000, scoped, tag = 'output window, operand 0, single buffered']
    %11 = vsyncpa [#allocation3], 0
    %12 = vsyncpa [#allocation8], 0
    %13 = vsyncpa [#allocation5], 0
    %14 = vsyncpa [#allocation6], 0
    %15 = vsyncpa [#allocation4], 0
    // Predicated region
    $region2: #{tpu_custom_call.1} parent=1 // pred_check
      _
    $region3: #{tpu_custom_call.1} parent=1 // pred_check_branch
      %17 = sbr.rel (0) target = $region5
    $region4: #{tpu_custom_call.1} parent=1 // pred_region
      %19 = vsyncadd [#allocation3], 0
      %s20 = sshll.u32 %s0, 4
      %s21 = int_to_ptr.hbm [resolvable:$true] %s20
      %s22 = sshll.u32 [#allocation2], 4
      %s23 = int_to_ptr.vmem [resolvable:$true] %s22
      %28 = dma.hbm_to_vmem [thread:$0]  %s21, 2048, %s23, [#allocation3], 256, 256, 16
    $region5: #{tpu_custom_call.1} parent=1 // pred_fallthru
      _
    // Predicated region
    $region6: #{tpu_custom_call.1} parent=1 // pred_check
      _
    $region7: #{tpu_custom_call.1} parent=1 // pred_check_branch
      %30 = sbr.rel (0) target = $region9
    $region8: #{tpu_custom_call.1} parent=1 // pred_region
      %32 = vsyncadd [#allocation8], 0
      %s34 = sshll.u32 %s1, 4
      %s35 = int_to_ptr.hbm [resolvable:$true] %s34
      %s36 = sshll.u32 [#allocation7], 4
      %s37 = int_to_ptr.vmem [resolvable:$true] %s36
      %39 = dma.hbm_to_vmem [thread:$0]  %s35, 32, %s37, [#allocation8]
    $region9: #{tpu_custom_call.1} parent=1 // pred_fallthru
      _
    // Predicated region
    $region10: #{tpu_custom_call.1} parent=1 // pred_check
      _
    $region11: #{tpu_custom_call.1} parent=1 // pred_check_branch
      %41 = sbr.rel (0) target = $region13
    $region12: #{tpu_custom_call.1} parent=1 // pred_region
      %43 = vsyncadd [#allocation5], 0
      %s45 = sshll.u32 %s2, 4
      %s46 = int_to_ptr.hbm [resolvable:$true] %s45
      %48 = dma.hbm_to_smem %s46, 16, [#allocation9], [#allocation5]
    $region13: #{tpu_custom_call.1} parent=1 // pred_fallthru
      _
    // Predicated region
    $region14: #{tpu_custom_call.1} parent=1 // pred_check
      _
    $region15: #{tpu_custom_call.1} parent=1 // pred_check_branch
      %50 = sbr.rel (0) target = $region17
    $region16: #{tpu_custom_call.1} parent=1 // pred_region
      _
    $region17: #{tpu_custom_call.1} parent=1 // pred_fallthru
      _
    // Predicated region
    $region18: #{tpu_custom_call.1} parent=1 // pred_check
      _
    $region19: #{tpu_custom_call.1} parent=1 // pred_check_branch
      %52 = sbr.rel (0) target = $region21
    $region20: #{tpu_custom_call.1} parent=1 // pred_region
      _
    $region21: #{tpu_custom_call.1} parent=1 // pred_fallthru
      _
    // Predicated region
    $region22: #{tpu_custom_call.1} parent=1 // pred_check
      _
    $region23: #{tpu_custom_call.1} parent=1 // pred_check_branch
      %54 = sbr.rel (0) target = $region25
    $region24: #{tpu_custom_call.1} parent=1 // pred_region
      %56 = vsyncadd [#allocation6], 0
      %s58 = sshll.u32 %s5, 4
      %s59 = int_to_ptr.vmem [resolvable:$true] %s58
      %61 = dma.vmem_to_smem %s59, 16, [#allocation10], [#allocation6]
    $region25: #{tpu_custom_call.1} parent=1 // pred_fallthru
      _
    // Predicated region
    $region26: #{tpu_custom_call.1} parent=1 // pred_check
      _
    $region27: #{tpu_custom_call.1} parent=1 // pred_check_branch
      %63 = sbr.rel (0) target = $region29
    $region28: #{tpu_custom_call.1} parent=1 // pred_region
      %65 = dma.done [#allocation3], 2048
    $region29: #{tpu_custom_call.1} parent=1 // pred_fallthru
      _
    // Predicated region
    $region30: #{tpu_custom_call.1} parent=1 // pred_check
      _
    $region31: #{tpu_custom_call.1} parent=1 // pred_check_branch
      %67 = sbr.rel (0) target = $region33
    $region32: #{tpu_custom_call.1} parent=1 // pred_region
      %69 = dma.done [#allocation8], 32
    $region33: #{tpu_custom_call.1} parent=1 // pred_fallthru
      _
    // Predicated region
    $region34: #{tpu_custom_call.1} parent=1 // pred_check
      _
    $region35: #{tpu_custom_call.1} parent=1 // pred_check_branch
      %71 = sbr.rel (0) target = $region37
    $region36: #{tpu_custom_call.1} parent=1 // pred_region
      %73 = dma.done [#allocation5], 16
    $region37: #{tpu_custom_call.1} parent=1 // pred_fallthru
      _
    // Predicated region
    $region38: #{tpu_custom_call.1} parent=1 // pred_check
      _
    $region39: #{tpu_custom_call.1} parent=1 // pred_check_branch
      %75 = sbr.rel (0) target = $region41
    $region40: #{tpu_custom_call.1} parent=1 // pred_region
      %77 = dma.done [#allocation6], 16
    $region41: #{tpu_custom_call.1} parent=1 // pred_fallthru
      _
    %78 = sfence
    %v79 = vld [vmem:[#allocation2] sm:$0xff]
    %v80 = vld [vmem:[#allocation2 + $0x8] sm:$0xff]
    %v81 = vld [vmem:[#allocation2 + $0x10] sm:$0xff]
    %v82 = vld [vmem:[#allocation2 + $0x18] sm:$0xff]
    %v83 = vld [vmem:[#allocation2 + $0x20] sm:$0xff]
    %v84 = vld [vmem:[#allocation2 + $0x28] sm:$0xff]
    %v85 = vld [vmem:[#allocation2 + $0x30] sm:$0xff]
    %v86 = vld [vmem:[#allocation2 + $0x38] sm:$0xff]
    %v87 = vld [vmem:[#allocation2 + $0x40] sm:$0xff]
    %v88 = vld [vmem:[#allocation2 + $0x48] sm:$0xff]
    %v89 = vld [vmem:[#allocation2 + $0x50] sm:$0xff]
    %v90 = vld [vmem:[#allocation2 + $0x58] sm:$0xff]
    %v91 = vld [vmem:[#allocation2 + $0x60] sm:$0xff]
    %v92 = vld [vmem:[#allocation2 + $0x68] sm:$0xff]
    %v93 = vld [vmem:[#allocation2 + $0x70] sm:$0xff]
    %v94 = vld [vmem:[#allocation2 + $0x78] sm:$0xff]
    %v95 = vadd.f32 %v79, %v80
    %96 = vadd.xlane.f32.xlu0 %v95
    %v97 = vpop.xlane.xlu0 %96
    %v98 = vadd.f32 %v81, %v82
    %99 = vadd.xlane.f32.xlu0 %v98
    %v100 = vpop.xlane.xlu0 %99
    %v101 = vadd.f32 %v83, %v84
    %102 = vadd.xlane.f32.xlu0 %v101
    %v103 = vpop.xlane.xlu0 %102
    %v104 = vadd.f32 %v85, %v86
    %105 = vadd.xlane.f32.xlu0 %v104
    %v106 = vpop.xlane.xlu0 %105
    %v107 = vadd.f32 %v87, %v88
    %108 = vadd.xlane.f32.xlu0 %v107
    %v109 = vpop.xlane.xlu0 %108
    %v110 = vadd.f32 %v89, %v90
    %111 = vadd.xlane.f32.xlu0 %v110
    %v112 = vpop.xlane.xlu0 %111
    %v113 = vadd.f32 %v91, %v92
    %114 = vadd.xlane.f32.xlu0 %v113
    %v115 = vpop.xlane.xlu0 %114
    %v116 = vadd.f32 %v93, %v94
    %117 = vadd.xlane.f32.xlu0 %v116
    %v118 = vpop.xlane.xlu0 %117
    %v119 = vmul.f32 %v97, 0.00390625
    %v120 = vmul.f32 %v100, 0.00390625
    %v121 = vmul.f32 %v103, 0.00390625
    %v122 = vmul.f32 %v106, 0.00390625
    %v123 = vmul.f32 %v109, 0.00390625
    %v124 = vmul.f32 %v112, 0.00390625
    %v125 = vmul.f32 %v115, 0.00390625
    %v126 = vmul.f32 %v118, 0.00390625
    %v127 = vld [vmem:[%s4] sm:$0x1]
    %v128 = vld [vmem:[#allocation7] sm:$0x1]
    %v129 = vperm.slane %v128, 0
    %v131 = vlaneseq
    %v132 = vshrl.u32 %v131, 7
    %134 = vset.pattern.permute.xlu0 %v132
    %135 = vperm.xlu0 %134, %v129
    %v136 = vpop.permute.xlu0 %135
    %v137 = vlaneseq
    %v138 = vshrl.u32 %v137, 7
    %v139 = vadd.s32 %v138, 8
    %140 = vset.pattern.permute.xlu0 %v139
    %141 = vperm.xlu0 %140, %v129
    %v142 = vpop.permute.xlu0 %141
    %v143 = vlaneseq
    %v144 = vshrl.u32 %v143, 7
    %v145 = vadd.s32 %v144, 16
    %146 = vset.pattern.permute.xlu0 %v145
    %147 = vperm.xlu0 %146, %v129
    %v148 = vpop.permute.xlu0 %147
    %v149 = vlaneseq
    %v150 = vshrl.u32 %v149, 7
    %v151 = vadd.s32 %v150, 24
    %152 = vset.pattern.permute.xlu0 %v151
    %153 = vperm.xlu0 %152, %v129
    %v154 = vpop.permute.xlu0 %153
    %v159 = vmul.f32 %v119, %v136
    %v160 = vmul.f32 %v120, %v142
    %v161 = vmul.f32 %v121, %v148
    %v162 = vmul.f32 %v122, %v154
    %v163 = vmul.f32 %v123, %v136
    %v164 = vmul.f32 %v124, %v142
    %v165 = vmul.f32 %v125, %v148
    %v166 = vmul.f32 %v126, %v154
    %175 = vset.pattern.permute.xlu0 0
    %176 = vperm.xlu0 %175, %v159
    %v177 = vpop.permute.xlu0 %176
    %178 = vset.pattern.permute.xlu0 0
    %179 = vperm.xlu0 %178, %v160
    %v180 = vpop.permute.xlu0 %179
    %181 = vset.pattern.permute.xlu0 0
    %182 = vperm.xlu0 %181, %v161
    %v183 = vpop.permute.xlu0 %182
    %184 = vset.pattern.permute.xlu0 0
    %185 = vperm.xlu0 %184, %v162
    %v186 = vpop.permute.xlu0 %185
    %187 = vset.pattern.permute.xlu0 0
    %188 = vperm.xlu0 %187, %v163
    %v189 = vpop.permute.xlu0 %188
    %190 = vset.pattern.permute.xlu0 0
    %191 = vperm.xlu0 %190, %v164
    %v192 = vpop.permute.xlu0 %191
    %193 = vset.pattern.permute.xlu0 0
    %194 = vperm.xlu0 %193, %v165
    %v195 = vpop.permute.xlu0 %194
    %196 = vset.pattern.permute.xlu0 0
    %197 = vperm.xlu0 %196, %v166
    %v198 = vpop.permute.xlu0 %197
    %v199 = vlaneseq
    %v200 = vand.u32 %v199, 127
    %v201 = vperm.slane %v177, %v200
    %v202 = vadd.s32 %v200, 4294967288
    %v203 = vperm.slane %v180, %v202
    %vm204 = vcmask 130112
    %v205 = vsel %vm204, %v203, %v201
    %v206 = vadd.s32 %v200, 4294967280
    %v207 = vperm.slane %v183, %v206
    %vm208 = vcmask 195712
    %v209 = vsel %vm208, %v207, %v205
    %v210 = vadd.s32 %v200, 4294967272
    %v211 = vperm.slane %v186, %v210
    %vm212 = vcmask 261312
    %v213 = vsel %vm212, %v211, %v209
    %v214 = vperm.slane %v189, %v200
    %v215 = vperm.slane %v192, %v202
    %v216 = vsel %vm204, %v215, %v214
    %v217 = vperm.slane %v195, %v206
    %v218 = vsel %vm208, %v217, %v216
    %v219 = vperm.slane %v198, %v210
    %v220 = vsel %vm212, %v219, %v218
    %vm221 = vcmask 1041409
    %v222 = vsel %vm221, %v220, %v213
    %vm224 = vcmask 254976
    %v225 = vsel %vm224, %v222, 0.0
    %226 = vadd.xlane.f32.xlu0 %v225
    %v227 = vpop.xlane.xlu0 %226
    %s228 = sld [smem:[#allocation9]]
    %v229 = vstv %s228
    %v230 = vadd.f32 %v227, %v229
    %v231 = vmax.f32 %v230, 0.0
    %v232 = vld [vmem:[%s3] sm:$0x1]
    %v233 = vperm.slane %v232, 0
    %v234 = vmul.f32 %v231, %v233
    %v236 = vperm.slane %v127, 0
    %v238 = vadd.f32 %v236, %v234
    %v239 = vld [vmem:[#allocation7 + $0x1] sm:$0x1]
    %v240 = vperm.slane %v239, 0
    %v242 = vlaneseq
    %v243 = vshrl.u32 %v242, 7
    %245 = vset.pattern.permute.xlu0 %v243
    %246 = vperm.xlu0 %245, %v240
    %v247 = vpop.permute.xlu0 %246
    %v248 = vlaneseq
    %v249 = vshrl.u32 %v248, 7
    %v250 = vadd.s32 %v249, 8
    %251 = vset.pattern.permute.xlu0 %v250
    %252 = vperm.xlu0 %251, %v240
    %v253 = vpop.permute.xlu0 %252
    %v254 = vlaneseq
    %v255 = vshrl.u32 %v254, 7
    %v256 = vadd.s32 %v255, 16
    %257 = vset.pattern.permute.xlu0 %v256
    %258 = vperm.xlu0 %257, %v240
    %v259 = vpop.permute.xlu0 %258
    %v260 = vlaneseq
    %v261 = vshrl.u32 %v260, 7
    %v262 = vadd.s32 %v261, 24
    %263 = vset.pattern.permute.xlu0 %v262
    %264 = vperm.xlu0 %263, %v240
    %v265 = vpop.permute.xlu0 %264
    %v270 = vmul.f32 %v119, %v247
    %v271 = vmul.f32 %v120, %v253
    %v272 = vmul.f32 %v121, %v259
    %v273 = vmul.f32 %v122, %v265
    %v274 = vmul.f32 %v123, %v247
    %v275 = vmul.f32 %v124, %v253
    %v276 = vmul.f32 %v125, %v259
    %v277 = vmul.f32 %v126, %v265
    %286 = vset.pattern.permute.xlu0 0
    %287 = vperm.xlu0 %286, %v270
    %v288 = vpop.permute.xlu0 %287
    %289 = vset.pattern.permute.xlu0 0
    %290 = vperm.xlu0 %289, %v271
    %v291 = vpop.permute.xlu0 %290
    %292 = vset.pattern.permute.xlu0 0
    %293 = vperm.xlu0 %292, %v272
    %v294 = vpop.permute.xlu0 %293
    %295 = vset.pattern.permute.xlu0 0
    %296 = vperm.xlu0 %295, %v273
    %v297 = vpop.permute.xlu0 %296
    %298 = vset.pattern.permute.xlu0 0
    %299 = vperm.xlu0 %298, %v274
    %v300 = vpop.permute.xlu0 %299
    %301 = vset.pattern.permute.xlu0 0
    %302 = vperm.xlu0 %301, %v275
    %v303 = vpop.permute.xlu0 %302
    %304 = vset.pattern.permute.xlu0 0
    %305 = vperm.xlu0 %304, %v276
    %v306 = vpop.permute.xlu0 %305
    %307 = vset.pattern.permute.xlu0 0
    %308 = vperm.xlu0 %307, %v277
    %v309 = vpop.permute.xlu0 %308
    %v310 = vperm.slane %v288, %v200
    %v311 = vperm.slane %v291, %v202
    %v312 = vsel %vm204, %v311, %v310
    %v313 = vperm.slane %v294, %v206
    %v314 = vsel %vm208, %v313, %v312
    %v315 = vperm.slane %v297, %v210
    %v316 = vsel %vm212, %v315, %v314
    %v317 = vperm.slane %v300, %v200
    %v318 = vperm.slane %v303, %v202
    %v319 = vsel %vm204, %v318, %v317
    %v320 = vperm.slane %v306, %v206
    %v321 = vsel %vm208, %v320, %v319
    %v322 = vperm.slane %v309, %v210
    %v323 = vsel %vm212, %v322, %v321
    %v324 = vsel %vm221, %v323, %v316
    %v326 = vsel %vm224, %v324, 0.0
    %327 = vadd.xlane.f32.xlu0 %v326
    %v328 = vpop.xlane.xlu0 %327
    %s329 = sld [smem:[#allocation9 + $0x1]]
    %v330 = vstv %s329
    %v331 = vadd.f32 %v328, %v330
    %v332 = vmax.f32 %v331, 0.0
    %v333 = vld [vmem:[%s3 + $0x1] sm:$0x1]
    %v334 = vperm.slane %v333, 0
    %v335 = vmul.f32 %v332, %v334
    %v336 = vadd.f32 %v238, %v335
    %v337 = vxor.u32 %v336, 2147483648
    %v338 = vmul.f32 %v337, 1.442695
    %v339 = vpow.pop %v338
    %v340 = vadd.f32 %v339, 1.0
    %v341 = vrcp.pop %v340
    %v342 = vmul.f32 %v340, %v341
    %v343 = vsub.f32 1.0, %v342
    %v344 = vmul.f32 %v341, %v343
    %v345 = vadd.f32 %v341, %v344
    %vm346 = vweird.f32 %v340
    %vm347 = vweird.f32 %v341
    %vm348 = vmor %vm346, %vm347
    %v349 = vsel %vm348, %v341, %v345
    %v350 = vand.u32 2147483647, %v340
    %vm351 = vcmp.eq.f32.partialorder %v350, 8.507059e+37
    %v352 = vand.u32 %v340, 2147483648
    %v353 = vor.u32 1.1754944e-38, %v352
    %v354 = vsel %vm351, %v353, %v349
    %v355 = vmul.f32 1.0, %v354
    %v356 = vperm.slane %v355, 0
    %v357 = vlaneseq
    %v358 = vshrl.u32 %v357, 7
    %360 = vset.pattern.permute.xlu0 %v358
    %361 = vperm.xlu0 %360, %v356
    %v362 = vpop.permute.xlu0 %361
    %v363 = vlaneseq
    %v364 = vshrl.u32 %v363, 7
    %v365 = vadd.s32 %v364, 8
    %366 = vset.pattern.permute.xlu0 %v365
    %367 = vperm.xlu0 %366, %v356
    %v368 = vpop.permute.xlu0 %367
    %v369 = vlaneseq
    %v370 = vshrl.u32 %v369, 7
    %v371 = vadd.s32 %v370, 16
    %372 = vset.pattern.permute.xlu0 %v371
    %373 = vperm.xlu0 %372, %v356
    %v374 = vpop.permute.xlu0 %373
    %v375 = vlaneseq
    %v376 = vshrl.u32 %v375, 7
    %v377 = vadd.s32 %v376, 24
    %378 = vset.pattern.permute.xlu0 %v377
    %379 = vperm.xlu0 %378, %v356
    %v380 = vpop.permute.xlu0 %379
    %v381 = vperm.slane %v355, 1
    %v382 = vlaneseq
    %v383 = vshrl.u32 %v382, 7
    %385 = vset.pattern.permute.xlu0 %v383
    %386 = vperm.xlu0 %385, %v381
    %v387 = vpop.permute.xlu0 %386
    %v388 = vlaneseq
    %v389 = vshrl.u32 %v388, 7
    %v390 = vadd.s32 %v389, 8
    %391 = vset.pattern.permute.xlu0 %v390
    %392 = vperm.xlu0 %391, %v381
    %v393 = vpop.permute.xlu0 %392
    %v394 = vlaneseq
    %v395 = vshrl.u32 %v394, 7
    %v396 = vadd.s32 %v395, 16
    %397 = vset.pattern.permute.xlu0 %v396
    %398 = vperm.xlu0 %397, %v381
    %v399 = vpop.permute.xlu0 %398
    %v400 = vlaneseq
    %v401 = vshrl.u32 %v400, 7
    %v402 = vadd.s32 %v401, 24
    %403 = vset.pattern.permute.xlu0 %v402
    %404 = vperm.xlu0 %403, %v381
    %v405 = vpop.permute.xlu0 %404
    %v406 = vmul.f32 %v79, %v362
    %v407 = vmul.f32 %v80, %v362
    %v408 = vmul.f32 %v81, %v368
    %v409 = vmul.f32 %v82, %v368
    %v410 = vmul.f32 %v83, %v374
    %v411 = vmul.f32 %v84, %v374
    %v412 = vmul.f32 %v85, %v380
    %v413 = vmul.f32 %v86, %v380
    %v414 = vmul.f32 %v87, %v387
    %v415 = vmul.f32 %v88, %v387
    %v416 = vmul.f32 %v89, %v393
    %v417 = vmul.f32 %v90, %v393
    %v418 = vmul.f32 %v91, %v399
    %v419 = vmul.f32 %v92, %v399
    %v420 = vmul.f32 %v93, %v405
    %v421 = vmul.f32 %v94, %v405
    %v422 = vmax.f32 %v406, %v408
    %v423 = vmax.f32 %v422, %v410
    %v424 = vmax.f32 %v423, %v412
    %v425 = vrot.slane %v424, 4
    %v426 = vmax.f32 %v424, %v425
    %v427 = vrot.slane %v426, 2
    %v428 = vmax.f32 %v426, %v427
    %v429 = vrot.slane %v428, 1
    %v430 = vmax.f32 %v428, %v429
    %v431 = vmax.f32 %v407, %v409
    %v432 = vmax.f32 %v431, %v411
    %v433 = vmax.f32 %v432, %v413
    %v434 = vrot.slane %v433, 4
    %v435 = vmax.f32 %v433, %v434
    %v436 = vrot.slane %v435, 2
    %v437 = vmax.f32 %v435, %v436
    %v438 = vrot.slane %v437, 1
    %v439 = vmax.f32 %v437, %v438
    %v440 = vmax.f32 %v414, %v416
    %v441 = vmax.f32 %v440, %v418
    %v442 = vmax.f32 %v441, %v420
    %v443 = vrot.slane %v442, 4
    %v444 = vmax.f32 %v442, %v443
    %v445 = vrot.slane %v444, 2
    %v446 = vmax.f32 %v444, %v445
    %v447 = vrot.slane %v446, 1
    %v448 = vmax.f32 %v446, %v447
    %v449 = vmax.f32 %v415, %v417
    %v450 = vmax.f32 %v449, %v419
    %v451 = vmax.f32 %v450, %v421
    %v452 = vrot.slane %v451, 4
    %v453 = vmax.f32 %v451, %v452
    %v454 = vrot.slane %v453, 2
    %v455 = vmax.f32 %v453, %v454
    %v456 = vrot.slane %v455, 1
    %v457 = vmax.f32 %v455, %v456
    %v458 = vadd.f32 %v406, %v408
    %v459 = vadd.f32 %v458, %v410
    %v460 = vadd.f32 %v459, %v412
    %v461 = vrot.slane %v460, 4
    %v462 = vadd.f32 %v460, %v461
    %v463 = vrot.slane %v462, 2
    %v464 = vadd.f32 %v462, %v463
    %v465 = vrot.slane %v464, 1
    %v466 = vadd.f32 %v464, %v465
    %v467 = vadd.f32 %v407, %v409
    %v468 = vadd.f32 %v467, %v411
    %v469 = vadd.f32 %v468, %v413
    %v470 = vrot.slane %v469, 4
    %v471 = vadd.f32 %v469, %v470
    %v472 = vrot.slane %v471, 2
    %v473 = vadd.f32 %v471, %v472
    %v474 = vrot.slane %v473, 1
    %v475 = vadd.f32 %v473, %v474
    %v476 = vadd.f32 %v414, %v416
    %v477 = vadd.f32 %v476, %v418
    %v478 = vadd.f32 %v477, %v420
    %v479 = vrot.slane %v478, 4
    %v480 = vadd.f32 %v478, %v479
    %v481 = vrot.slane %v480, 2
    %v482 = vadd.f32 %v480, %v481
    %v483 = vrot.slane %v482, 1
    %v484 = vadd.f32 %v482, %v483
    %v485 = vadd.f32 %v415, %v417
    %v486 = vadd.f32 %v485, %v419
    %v487 = vadd.f32 %v486, %v421
    %v488 = vrot.slane %v487, 4
    %v489 = vadd.f32 %v487, %v488
    %v490 = vrot.slane %v489, 2
    %v491 = vadd.f32 %v489, %v490
    %v492 = vrot.slane %v491, 1
    %v493 = vadd.f32 %v491, %v492
    %v494 = vmul.f32 %v466, 0.03125
    %v495 = vmul.f32 %v475, 0.03125
    %v496 = vmul.f32 %v484, 0.03125
    %v497 = vmul.f32 %v493, 0.03125
    %v502 = vsel %vm221, %v448, %v430
    %v503 = vsel %vm221, %v457, %v439
    %504 = vrot.lane.b32.xlu0 %v502, 51
    %v505 = vpop.permute.xlu0 %504
    %506 = vrot.lane.b32.xlu0 %v503, 51
    %v507 = vpop.permute.xlu0 %506
    %vm508 = vcmask 416768
    %v509 = vsel %vm508, %v505, %v507
    %v513 = vsel %vm508, 0.0, %v505
    %v514 = vsel %vm508, %v507, 0.0
    %v519 = vsel %vm221, %v496, %v494
    %v520 = vsel %vm221, %v497, %v495
    %521 = vrot.lane.b32.xlu0 %v519, 51
    %v522 = vpop.permute.xlu0 %521
    %523 = vrot.lane.b32.xlu0 %v520, 51
    %v524 = vpop.permute.xlu0 %523
    %v525 = vsel %vm508, %v522, %v524
    %v529 = vsel %vm508, 0.0, %v522
    %v530 = vsel %vm508, %v524, 0.0
    %v531 = vadd.s32 %v200, 128
    %vm532 = vcmp.lt.s32.totalorder %v200, 0
    %v533 = vsub.s32 0, %v200
    %v534 = vsel %vm532, %v533, %v200
    %v535 = vshrl.u32 %v534, 4
    %v536 = vand.u32 %v534, 15
    %v537 = vsub.s32 0, %v536
    %v538 = vsel %vm532, %v537, %v536
    %vm539 = vcmp.lt.s32.totalorder %v531, 0
    %v540 = vsub.s32 0, %v531
    %v541 = vsel %vm539, %v540, %v531
    %v542 = vshrl.u32 %v541, 4
    %v543 = vand.u32 %v541, 15
    %v544 = vsub.s32 0, %v543
    %v545 = vsel %vm539, %v544, %v543
    %vm546 = vcmp.ne.s32.totalorder %v538, 0
    %vm547 = vcmp.ne.s32.totalorder %v545, 0
    %vm548 = vcmp.lt.s32.totalorder %v538, 0
    %vm549 = vcmp.lt.s32.totalorder %v545, 0
    %vm550 = vmand %vm548, %vm546
    %vm551 = vmand %vm549, %vm547
    %v552 = vadd.s32 %v538, 16
    %v553 = vadd.s32 %v545, 16
    %v554 = vsel %vm550, %v552, %v538
    %v555 = vsel %vm551, %v553, %v545
    %v556 = vadd.s32 %v554, 4294967293
    %v557 = vadd.s32 %v555, 4294967293
    %vm558 = vcmp.ge.s32.totalorder %v556, 0
    %vm559 = vcmp.ge.s32.totalorder %v557, 0
    %vm560 = vcmp.lt.s32.totalorder %v556, 16
    %vm561 = vcmp.lt.s32.totalorder %v557, 16
    %vm562 = vmand %vm558, %vm560
    %vm563 = vmand %vm559, %vm561
    %v564 = vadd.s32 %v554, 4294967294
    %v565 = vadd.s32 %v555, 4294967294
    %vm566 = vcmp.ge.s32.totalorder %v564, 0
    %vm567 = vcmp.ge.s32.totalorder %v565, 0
    %vm568 = vcmp.lt.s32.totalorder %v564, 16
    %vm569 = vcmp.lt.s32.totalorder %v565, 16
    %vm570 = vmand %vm566, %vm568
    %vm571 = vmand %vm567, %vm569
    %v572 = vadd.s32 %v554, 4294967295
    %v573 = vadd.s32 %v555, 4294967295
    %vm574 = vcmp.ge.s32.totalorder %v572, 0
    %vm575 = vcmp.ge.s32.totalorder %v573, 0
    %vm576 = vcmp.lt.s32.totalorder %v572, 16
    %vm577 = vcmp.lt.s32.totalorder %v573, 16
    %vm578 = vmand %vm574, %vm576
    %vm579 = vmand %vm575, %vm577
    %v580 = vadd.s32 %v554, 1
    %v581 = vadd.s32 %v555, 1
    %vm582 = vcmp.ge.s32.totalorder %v580, 0
    %vm583 = vcmp.ge.s32.totalorder %v581, 0
    %vm584 = vcmp.lt.s32.totalorder %v580, 16
    %vm585 = vcmp.lt.s32.totalorder %v581, 16
    %vm586 = vmand %vm582, %vm584
    %vm587 = vmand %vm583, %vm585
    %v588 = vadd.s32 %v554, 2
    %v589 = vadd.s32 %v555, 2
    %vm590 = vcmp.ge.s32.totalorder %v588, 0
    %vm591 = vcmp.ge.s32.totalorder %v589, 0
    %vm592 = vcmp.lt.s32.totalorder %v588, 16
    %vm593 = vcmp.lt.s32.totalorder %v589, 16
    %vm594 = vmand %vm590, %vm592
    %vm595 = vmand %vm591, %vm593
    %v596 = vadd.s32 %v554, 3
    %v597 = vadd.s32 %v555, 3
    %vm598 = vcmp.ge.s32.totalorder %v596, 0
    %vm599 = vcmp.ge.s32.totalorder %v597, 0
    %vm600 = vcmp.lt.s32.totalorder %v596, 16
    %vm601 = vcmp.lt.s32.totalorder %v597, 16
    %vm602 = vmand %vm598, %vm600
    %vm603 = vmand %vm599, %vm601
    %s604 = sld [smem:[#allocation10 + $0x62]]
    %v605 = vstv %s604
    %s606 = sld [smem:[#allocation10]]
    %v607 = vsel %vm562, 1, 0
    %v608 = vsel %vm563, 1, 0
    %vm609 = vcmp.eq.s32.totalorder %v607, 1
    %vm610 = vcmp.eq.s32.totalorder %v608, 1
    %v611 = vsel %vm609, %v513, 0.0
    %v612 = vsel %vm610, %v509, 0.0
    %v613 = vstv %s606
    %v614 = vmul.f32 %v613, %v611
    %v615 = vmul.f32 %v613, %v612
    %v616 = vadd.f32 %v605, %v614
    %v617 = vadd.f32 %v605, %v615
    %s618 = sld [smem:[#allocation10 + $0x1]]
    %v619 = vsel %vm570, 1, 0
    %v620 = vsel %vm571, 1, 0
    %vm621 = vcmp.eq.s32.totalorder %v619, 1
    %vm622 = vcmp.eq.s32.totalorder %v620, 1
    %625 = vrot.lane.b32.xlu0 %v513, 127
    %v626 = vpop.permute.xlu0 %625
    %627 = vrot.lane.b32.xlu0 %v509, 127
    %v628 = vpop.permute.xlu0 %627
    %629 = vrot.lane.b32.xlu0 %v514, 127
    %v630 = vpop.permute.xlu0 %629
    %vm631 = vcmask 1039360
    %v632 = vsel %vm631, %v626, %v628
    %v633 = vsel %vm631, %v628, %v630
    %v636 = vsel %vm621, %v632, 0.0
    %v637 = vsel %vm622, %v633, 0.0
    %v638 = vstv %s618
    %v639 = vmul.f32 %v638, %v636
    %v640 = vmul.f32 %v638, %v637
    %v641 = vadd.f32 %v616, %v639
    %v642 = vadd.f32 %v617, %v640
    %s643 = sld [smem:[#allocation10 + $0x2]]
    %v644 = vsel %vm578, 1, 0
    %v645 = vsel %vm579, 1, 0
    %vm646 = vcmp.eq.s32.totalorder %v644, 1
    %vm647 = vcmp.eq.s32.totalorder %v645, 1
    %648 = vrot.lane.b32.xlu0 %v513, 126
    %v649 = vpop.permute.xlu0 %648
    %650 = vrot.lane.b32.xlu0 %v509, 126
    %v651 = vpop.permute.xlu0 %650
    %652 = vrot.lane.b32.xlu0 %v514, 126
    %v653 = vpop.permute.xlu0 %652
    %vm654 = vcmask 1031168
    %v655 = vsel %vm654, %v649, %v651
    %v656 = vsel %vm654, %v651, %v653
    %v659 = vsel %vm646, %v655, 0.0
    %v660 = vsel %vm647, %v656, 0.0
    %v661 = vstv %s643
    %v662 = vmul.f32 %v661, %v659
    %v663 = vmul.f32 %v661, %v660
    %v664 = vadd.f32 %v641, %v662
    %v665 = vadd.f32 %v642, %v663
    %s666 = sld [smem:[#allocation10 + $0x3]]
    %v667 = vstv %s666
    %v668 = vmul.f32 %v667, %v513
    %v669 = vmul.f32 %v667, %v509
    %v670 = vmul.f32 %v667, %v514
    %674 = vrot.lane.b32.xlu0 %v668, 125
    %v675 = vpop.permute.xlu0 %674
    %676 = vrot.lane.b32.xlu0 %v669, 125
    %v677 = vpop.permute.xlu0 %676
    %678 = vrot.lane.b32.xlu0 %v670, 125
    %v679 = vpop.permute.xlu0 %678
    %vm680 = vcmask 1022976
    %v681 = vsel %vm680, %v675, %v677
    %v682 = vsel %vm680, %v677, %v679
    %v685 = vadd.f32 %v664, %v681
    %v686 = vadd.f32 %v665, %v682
    %s687 = sld [smem:[#allocation10 + $0x4]]
    %v688 = vsel %vm586, 1, 0
    %v689 = vsel %vm587, 1, 0
    %vm690 = vcmp.eq.s32.totalorder %v688, 1
    %vm691 = vcmp.eq.s32.totalorder %v689, 1
    %692 = vrot.lane.b32.xlu0 %v513, 124
    %v693 = vpop.permute.xlu0 %692
    %694 = vrot.lane.b32.xlu0 %v509, 124
    %v695 = vpop.permute.xlu0 %694
    %696 = vrot.lane.b32.xlu0 %v514, 124
    %v697 = vpop.permute.xlu0 %696
    %vm698 = vcmask 1014784
    %v699 = vsel %vm698, %v693, %v695
    %v700 = vsel %vm698, %v695, %v697
    %v703 = vsel %vm690, %v699, 0.0
    %v704 = vsel %vm691, %v700, 0.0
    %v705 = vstv %s687
    %v706 = vmul.f32 %v705, %v703
    %v707 = vmul.f32 %v705, %v704
    %v708 = vadd.f32 %v685, %v706
    %v709 = vadd.f32 %v686, %v707
    %s710 = sld [smem:[#allocation10 + $0x5]]
    %v711 = vsel %vm594, 1, 0
    %v712 = vsel %vm595, 1, 0
    %vm713 = vcmp.eq.s32.totalorder %v711, 1
    %vm714 = vcmp.eq.s32.totalorder %v712, 1
    %715 = vrot.lane.b32.xlu0 %v513, 123
    %v716 = vpop.permute.xlu0 %715
    %717 = vrot.lane.b32.xlu0 %v509, 123
    %v718 = vpop.permute.xlu0 %717
    %719 = vrot.lane.b32.xlu0 %v514, 123
    %v720 = vpop.permute.xlu0 %719
    %vm721 = vcmask 1006592
    %v722 = vsel %vm721, %v716, %v718
    %v723 = vsel %vm721, %v718, %v720
    %v726 = vsel %vm713, %v722, 0.0
    %v727 = vsel %vm714, %v723, 0.0
    %v728 = vstv %s710
    %v729 = vmul.f32 %v728, %v726
    %v730 = vmul.f32 %v728, %v727
    %v731 = vadd.f32 %v708, %v729
    %v732 = vadd.f32 %v709, %v730
    %s733 = sld [smem:[#allocation10 + $0x6]]
    %v734 = vsel %vm602, 1, 0
    %v735 = vsel %vm603, 1, 0
    %vm736 = vcmp.eq.s32.totalorder %v734, 1
    %vm737 = vcmp.eq.s32.totalorder %v735, 1
    %738 = vrot.lane.b32.xlu0 %v513, 122
    %v739 = vpop.permute.xlu0 %738
    %740 = vrot.lane.b32.xlu0 %v509, 122
    %v741 = vpop.permute.xlu0 %740
    %742 = vrot.lane.b32.xlu0 %v514, 122
    %v743 = vpop.permute.xlu0 %742
    %vm744 = vcmask 998400
    %v745 = vsel %vm744, %v739, %v741
    %v746 = vsel %vm744, %v741, %v743
    %v749 = vsel %vm736, %v745, 0.0
    %v750 = vsel %vm737, %v746, 0.0
    %v751 = vstv %s733
    %v752 = vmul.f32 %v751, %v749
    %v753 = vmul.f32 %v751, %v750
    %v754 = vadd.f32 %v731, %v752
    %v755 = vadd.f32 %v732, %v753
    %s756 = sld [smem:[#allocation10 + $0x7]]
    %757 = vrot.lane.b32.xlu0 %v513, 112
    %v758 = vpop.permute.xlu0 %757
    %759 = vrot.lane.b32.xlu0 %v509, 112
    %v760 = vpop.permute.xlu0 %759
    %761 = vrot.lane.b32.xlu0 %v514, 112
    %v762 = vpop.permute.xlu0 %761
    %vm763 = vcmask 916480
    %v764 = vsel %vm763, %v758, %v760
    %v765 = vsel %vm763, %v760, %v762
    %v768 = vsel %vm609, %v764, 0.0
    %v769 = vsel %vm610, %v765, 0.0
    %v770 = vstv %s756
    %v771 = vmul.f32 %v770, %v768
    %v772 = vmul.f32 %v770, %v769
    %v773 = vadd.f32 %v754, %v771
    %v774 = vadd.f32 %v755, %v772
    %s775 = sld [smem:[#allocation10 + $0x8]]
    %776 = vrot.lane.b32.xlu0 %v513, 111
    %v777 = vpop.permute.xlu0 %776
    %778 = vrot.lane.b32.xlu0 %v509, 111
    %v779 = vpop.permute.xlu0 %778
    %780 = vrot.lane.b32.xlu0 %v514, 111
    %v781 = vpop.permute.xlu0 %780
    %vm782 = vcmask 908288
    %v783 = vsel %vm782, %v777, %v779
    %v784 = vsel %vm782, %v779, %v781
    %v787 = vsel %vm621, %v783, 0.0
    %v788 = vsel %vm622, %v784, 0.0
    %v789 = vstv %s775
    %v790 = vmul.f32 %v789, %v787
    %v791 = vmul.f32 %v789, %v788
    %v792 = vadd.f32 %v773, %v790
    %v793 = vadd.f32 %v774, %v791
    %s794 = sld [smem:[#allocation10 + $0x9]]
    %795 = vrot.lane.b32.xlu0 %v513, 110
    %v796 = vpop.permute.xlu0 %795
    %797 = vrot.lane.b32.xlu0 %v509, 110
    %v798 = vpop.permute.xlu0 %797
    %799 = vrot.lane.b32.xlu0 %v514, 110
    %v800 = vpop.permute.xlu0 %799
    %vm801 = vcmask 900096
    %v802 = vsel %vm801, %v796, %v798
    %v803 = vsel %vm801, %v798, %v800
    %v806 = vsel %vm646, %v802, 0.0
    %v807 = vsel %vm647, %v803, 0.0
    %v808 = vstv %s794
    %v809 = vmul.f32 %v808, %v806
    %v810 = vmul.f32 %v808, %v807
    %v811 = vadd.f32 %v792, %v809
    %v812 = vadd.f32 %v793, %v810
    %s813 = sld [smem:[#allocation10 + $0xa]]
    %v814 = vstv %s813
    %v815 = vmul.f32 %v814, %v513
    %v816 = vmul.f32 %v814, %v509
    %v817 = vmul.f32 %v814, %v514
    %821 = vrot.lane.b32.xlu0 %v815, 109
    %v822 = vpop.permute.xlu0 %821
    %823 = vrot.lane.b32.xlu0 %v816, 109
    %v824 = vpop.permute.xlu0 %823
    %825 = vrot.lane.b32.xlu0 %v817, 109
    %v826 = vpop.permute.xlu0 %825
    %vm827 = vcmask 891904
    %v828 = vsel %vm827, %v822, %v824
    %v829 = vsel %vm827, %v824, %v826
    %v832 = vadd.f32 %v811, %v828
    %v833 = vadd.f32 %v812, %v829
    %s834 = sld [smem:[#allocation10 + $0xb]]
    %835 = vrot.lane.b32.xlu0 %v513, 108
    %v836 = vpop.permute.xlu0 %835
    %837 = vrot.lane.b32.xlu0 %v509, 108
    %v838 = vpop.permute.xlu0 %837
    %839 = vrot.lane.b32.xlu0 %v514, 108
    %v840 = vpop.permute.xlu0 %839
    %vm841 = vcmask 883712
    %v842 = vsel %vm841, %v836, %v838
    %v843 = vsel %vm841, %v838, %v840
    %v846 = vsel %vm690, %v842, 0.0
    %v847 = vsel %vm691, %v843, 0.0
    %v848 = vstv %s834
    %v849 = vmul.f32 %v848, %v846
    %v850 = vmul.f32 %v848, %v847
    %v851 = vadd.f32 %v832, %v849
    %v852 = vadd.f32 %v833, %v850
    %s853 = sld [smem:[#allocation10 + $0xc]]
    %854 = vrot.lane.b32.xlu0 %v513, 107
    %v855 = vpop.permute.xlu0 %854
    %856 = vrot.lane.b32.xlu0 %v509, 107
    %v857 = vpop.permute.xlu0 %856
    %858 = vrot.lane.b32.xlu0 %v514, 107
    %v859 = vpop.permute.xlu0 %858
    %vm860 = vcmask 875520
    %v861 = vsel %vm860, %v855, %v857
    %v862 = vsel %vm860, %v857, %v859
    %v865 = vsel %vm713, %v861, 0.0
    %v866 = vsel %vm714, %v862, 0.0
    %v867 = vstv %s853
    %v868 = vmul.f32 %v867, %v865
    %v869 = vmul.f32 %v867, %v866
    %v870 = vadd.f32 %v851, %v868
    %v871 = vadd.f32 %v852, %v869
    %s872 = sld [smem:[#allocation10 + $0xd]]
    %873 = vrot.lane.b32.xlu0 %v513, 106
    %v874 = vpop.permute.xlu0 %873
    %875 = vrot.lane.b32.xlu0 %v509, 106
    %v876 = vpop.permute.xlu0 %875
    %877 = vrot.lane.b32.xlu0 %v514, 106
    %v878 = vpop.permute.xlu0 %877
    %vm879 = vcmask 867328
    %v880 = vsel %vm879, %v874, %v876
    %v881 = vsel %vm879, %v876, %v878
    %v884 = vsel %vm736, %v880, 0.0
    %v885 = vsel %vm737, %v881, 0.0
    %v886 = vstv %s872
    %v887 = vmul.f32 %v886, %v884
    %v888 = vmul.f32 %v886, %v885
    %v889 = vadd.f32 %v870, %v887
    %v890 = vadd.f32 %v871, %v888
    %s891 = sld [smem:[#allocation10 + $0xe]]
    %892 = vrot.lane.b32.xlu0 %v513, 96
    %v893 = vpop.permute.xlu0 %892
    %894 = vrot.lane.b32.xlu0 %v509, 96
    %v895 = vpop.permute.xlu0 %894
    %896 = vrot.lane.b32.xlu0 %v514, 96
    %v897 = vpop.permute.xlu0 %896
    %vm898 = vcmask 785408
    %v899 = vsel %vm898, %v893, %v895
    %v900 = vsel %vm898, %v895, %v897
    %v903 = vsel %vm609, %v899, 0.0
    %v904 = vsel %vm610, %v900, 0.0
    %v905 = vstv %s891
    %v906 = vmul.f32 %v905, %v903
    %v907 = vmul.f32 %v905, %v904
    %v908 = vadd.f32 %v889, %v906
    %v909 = vadd.f32 %v890, %v907
    %s910 = sld [smem:[#allocation10 + $0xf]]
    %911 = vrot.lane.b32.xlu0 %v513, 95
    %v912 = vpop.permute.xlu0 %911
    %913 = vrot.lane.b32.xlu0 %v509, 95
    %v914 = vpop.permute.xlu0 %913
    %915 = vrot.lane.b32.xlu0 %v514, 95
    %v916 = vpop.permute.xlu0 %915
    %vm917 = vcmask 777216
    %v918 = vsel %vm917, %v912, %v914
    %v919 = vsel %vm917, %v914, %v916
    %v922 = vsel %vm621, %v918, 0.0
    %v923 = vsel %vm622, %v919, 0.0
    %v924 = vstv %s910
    %v925 = vmul.f32 %v924, %v922
    %v926 = vmul.f32 %v924, %v923
    %v927 = vadd.f32 %v908, %v925
    %v928 = vadd.f32 %v909, %v926
    %s929 = sld [smem:[#allocation10 + $0x10]]
    %930 = vrot.lane.b32.xlu0 %v513, 94
    %v931 = vpop.permute.xlu0 %930
    %932 = vrot.lane.b32.xlu0 %v509, 94
    %v933 = vpop.permute.xlu0 %932
    %934 = vrot.lane.b32.xlu0 %v514, 94
    %v935 = vpop.permute.xlu0 %934
    %vm936 = vcmask 769024
    %v937 = vsel %vm936, %v931, %v933
    %v938 = vsel %vm936, %v933, %v935
    %v941 = vsel %vm646, %v937, 0.0
    %v942 = vsel %vm647, %v938, 0.0
    %v943 = vstv %s929
    %v944 = vmul.f32 %v943, %v941
    %v945 = vmul.f32 %v943, %v942
    %v946 = vadd.f32 %v927, %v944
    %v947 = vadd.f32 %v928, %v945
    %s948 = sld [smem:[#allocation10 + $0x11]]
    %v949 = vstv %s948
    %v950 = vmul.f32 %v949, %v513
    %v951 = vmul.f32 %v949, %v509
    %v952 = vmul.f32 %v949, %v514
    %956 = vrot.lane.b32.xlu0 %v950, 93
    %v957 = vpop.permute.xlu0 %956
    %958 = vrot.lane.b32.xlu0 %v951, 93
    %v959 = vpop.permute.xlu0 %958
    %960 = vrot.lane.b32.xlu0 %v952, 93
    %v961 = vpop.permute.xlu0 %960
    %vm962 = vcmask 760832
    %v963 = vsel %vm962, %v957, %v959
    %v964 = vsel %vm962, %v959, %v961
    %v967 = vadd.f32 %v946, %v963
    %v968 = vadd.f32 %v947, %v964
    %s969 = sld [smem:[#allocation10 + $0x12]]
    %970 = vrot.lane.b32.xlu0 %v513, 92
    %v971 = vpop.permute.xlu0 %970
    %972 = vrot.lane.b32.xlu0 %v509, 92
    %v973 = vpop.permute.xlu0 %972
    %974 = vrot.lane.b32.xlu0 %v514, 92
    %v975 = vpop.permute.xlu0 %974
    %vm976 = vcmask 752640
    %v977 = vsel %vm976, %v971, %v973
    %v978 = vsel %vm976, %v973, %v975
    %v981 = vsel %vm690, %v977, 0.0
    %v982 = vsel %vm691, %v978, 0.0
    %v983 = vstv %s969
    %v984 = vmul.f32 %v983, %v981
    %v985 = vmul.f32 %v983, %v982
    %v986 = vadd.f32 %v967, %v984
    %v987 = vadd.f32 %v968, %v985
    %s988 = sld [smem:[#allocation10 + $0x13]]
    %989 = vrot.lane.b32.xlu0 %v513, 91
    %v990 = vpop.permute.xlu0 %989
    %991 = vrot.lane.b32.xlu0 %v509, 91
    %v992 = vpop.permute.xlu0 %991
    %993 = vrot.lane.b32.xlu0 %v514, 91
    %v994 = vpop.permute.xlu0 %993
    %vm995 = vcmask 744448
    %v996 = vsel %vm995, %v990, %v992
    %v997 = vsel %vm995, %v992, %v994
    %v1000 = vsel %vm713, %v996, 0.0
    %v1001 = vsel %vm714, %v997, 0.0
    %v1002 = vstv %s988
    %v1003 = vmul.f32 %v1002, %v1000
    %v1004 = vmul.f32 %v1002, %v1001
    %v1005 = vadd.f32 %v986, %v1003
    %v1006 = vadd.f32 %v987, %v1004
    %s1007 = sld [smem:[#allocation10 + $0x14]]
    %1008 = vrot.lane.b32.xlu0 %v513, 90
    %v1009 = vpop.permute.xlu0 %1008
    %1010 = vrot.lane.b32.xlu0 %v509, 90
    %v1011 = vpop.permute.xlu0 %1010
    %1012 = vrot.lane.b32.xlu0 %v514, 90
    %v1013 = vpop.permute.xlu0 %1012
    %vm1014 = vcmask 736256
    %v1015 = vsel %vm1014, %v1009, %v1011
    %v1016 = vsel %vm1014, %v1011, %v1013
    %v1019 = vsel %vm736, %v1015, 0.0
    %v1020 = vsel %vm737, %v1016, 0.0
    %v1021 = vstv %s1007
    %v1022 = vmul.f32 %v1021, %v1019
    %v1023 = vmul.f32 %v1021, %v1020
    %v1024 = vadd.f32 %v1005, %v1022
    %v1025 = vadd.f32 %v1006, %v1023
    %s1026 = sld [smem:[#allocation10 + $0x15]]
    %1027 = vrot.lane.b32.xlu0 %v513, 80
    %v1028 = vpop.permute.xlu0 %1027
    %1029 = vrot.lane.b32.xlu0 %v509, 80
    %v1030 = vpop.permute.xlu0 %1029
    %1031 = vrot.lane.b32.xlu0 %v514, 80
    %v1032 = vpop.permute.xlu0 %1031
    %vm1033 = vcmask 654336
    %v1034 = vsel %vm1033, %v1028, %v1030
    %v1035 = vsel %vm1033, %v1030, %v1032
    %v1038 = vsel %vm609, %v1034, 0.0
    %v1039 = vsel %vm610, %v1035, 0.0
    %v1040 = vstv %s1026
    %v1041 = vmul.f32 %v1040, %v1038
    %v1042 = vmul.f32 %v1040, %v1039
    %v1043 = vadd.f32 %v1024, %v1041
    %v1044 = vadd.f32 %v1025, %v1042
    %s1045 = sld [smem:[#allocation10 + $0x16]]
    %1046 = vrot.lane.b32.xlu0 %v513, 79
    %v1047 = vpop.permute.xlu0 %1046
    %1048 = vrot.lane.b32.xlu0 %v509, 79
    %v1049 = vpop.permute.xlu0 %1048
    %1050 = vrot.lane.b32.xlu0 %v514, 79
    %v1051 = vpop.permute.xlu0 %1050
    %vm1052 = vcmask 646144
    %v1053 = vsel %vm1052, %v1047, %v1049
    %v1054 = vsel %vm1052, %v1049, %v1051
    %v1057 = vsel %vm621, %v1053, 0.0
    %v1058 = vsel %vm622, %v1054, 0.0
    %v1059 = vstv %s1045
    %v1060 = vmul.f32 %v1059, %v1057
    %v1061 = vmul.f32 %v1059, %v1058
    %v1062 = vadd.f32 %v1043, %v1060
    %v1063 = vadd.f32 %v1044, %v1061
    %s1064 = sld [smem:[#allocation10 + $0x17]]
    %1065 = vrot.lane.b32.xlu0 %v513, 78
    %v1066 = vpop.permute.xlu0 %1065
    %1067 = vrot.lane.b32.xlu0 %v509, 78
    %v1068 = vpop.permute.xlu0 %1067
    %1069 = vrot.lane.b32.xlu0 %v514, 78
    %v1070 = vpop.permute.xlu0 %1069
    %vm1071 = vcmask 637952
    %v1072 = vsel %vm1071, %v1066, %v1068
    %v1073 = vsel %vm1071, %v1068, %v1070
    %v1076 = vsel %vm646, %v1072, 0.0
    %v1077 = vsel %vm647, %v1073, 0.0
    %v1078 = vstv %s1064
    %v1079 = vmul.f32 %v1078, %v1076
    %v1080 = vmul.f32 %v1078, %v1077
    %v1081 = vadd.f32 %v1062, %v1079
    %v1082 = vadd.f32 %v1063, %v1080
    %s1083 = sld [smem:[#allocation10 + $0x18]]
    %v1084 = vstv %s1083
    %v1085 = vmul.f32 %v1084, %v513
    %v1086 = vmul.f32 %v1084, %v509
    %v1087 = vmul.f32 %v1084, %v514
    %1091 = vrot.lane.b32.xlu0 %v1085, 77
    %v1092 = vpop.permute.xlu0 %1091
    %1093 = vrot.lane.b32.xlu0 %v1086, 77
    %v1094 = vpop.permute.xlu0 %1093
    %1095 = vrot.lane.b32.xlu0 %v1087, 77
    %v1096 = vpop.permute.xlu0 %1095
    %vm1097 = vcmask 629760
    %v1098 = vsel %vm1097, %v1092, %v1094
    %v1099 = vsel %vm1097, %v1094, %v1096
    %v1102 = vadd.f32 %v1081, %v1098
    %v1103 = vadd.f32 %v1082, %v1099
    %s1104 = sld [smem:[#allocation10 + $0x19]]
    %1105 = vrot.lane.b32.xlu0 %v513, 76
    %v1106 = vpop.permute.xlu0 %1105
    %1107 = vrot.lane.b32.xlu0 %v509, 76
    %v1108 = vpop.permute.xlu0 %1107
    %1109 = vrot.lane.b32.xlu0 %v514, 76
    %v1110 = vpop.permute.xlu0 %1109
    %vm1111 = vcmask 621568
    %v1112 = vsel %vm1111, %v1106, %v1108
    %v1113 = vsel %vm1111, %v1108, %v1110
    %v1116 = vsel %vm690, %v1112, 0.0
    %v1117 = vsel %vm691, %v1113, 0.0
    %v1118 = vstv %s1104
    %v1119 = vmul.f32 %v1118, %v1116
    %v1120 = vmul.f32 %v1118, %v1117
    %v1121 = vadd.f32 %v1102, %v1119
    %v1122 = vadd.f32 %v1103, %v1120
    %s1123 = sld [smem:[#allocation10 + $0x1a]]
    %1124 = vrot.lane.b32.xlu0 %v513, 75
    %v1125 = vpop.permute.xlu0 %1124
    %1126 = vrot.lane.b32.xlu0 %v509, 75
    %v1127 = vpop.permute.xlu0 %1126
    %1128 = vrot.lane.b32.xlu0 %v514, 75
    %v1129 = vpop.permute.xlu0 %1128
    %vm1130 = vcmask 613376
    %v1131 = vsel %vm1130, %v1125, %v1127
    %v1132 = vsel %vm1130, %v1127, %v1129
    %v1135 = vsel %vm713, %v1131, 0.0
    %v1136 = vsel %vm714, %v1132, 0.0
    %v1137 = vstv %s1123
    %v1138 = vmul.f32 %v1137, %v1135
    %v1139 = vmul.f32 %v1137, %v1136
    %v1140 = vadd.f32 %v1121, %v1138
    %v1141 = vadd.f32 %v1122, %v1139
    %s1142 = sld [smem:[#allocation10 + $0x1b]]
    %1143 = vrot.lane.b32.xlu0 %v513, 74
    %v1144 = vpop.permute.xlu0 %1143
    %1145 = vrot.lane.b32.xlu0 %v509, 74
    %v1146 = vpop.permute.xlu0 %1145
    %1147 = vrot.lane.b32.xlu0 %v514, 74
    %v1148 = vpop.permute.xlu0 %1147
    %vm1149 = vcmask 605184
    %v1150 = vsel %vm1149, %v1144, %v1146
    %v1151 = vsel %vm1149, %v1146, %v1148
    %v1154 = vsel %vm736, %v1150, 0.0
    %v1155 = vsel %vm737, %v1151, 0.0
    %v1156 = vstv %s1142
    %v1157 = vmul.f32 %v1156, %v1154
    %v1158 = vmul.f32 %v1156, %v1155
    %v1159 = vadd.f32 %v1140, %v1157
    %v1160 = vadd.f32 %v1141, %v1158
    %s1161 = sld [smem:[#allocation10 + $0x1c]]
    %1162 = vrot.lane.b32.xlu0 %v513, 64
    %v1163 = vpop.permute.xlu0 %1162
    %1164 = vrot.lane.b32.xlu0 %v509, 64
    %v1165 = vpop.permute.xlu0 %1164
    %1166 = vrot.lane.b32.xlu0 %v514, 64
    %v1167 = vpop.permute.xlu0 %1166
    %vm1168 = vcmask 523264
    %v1169 = vsel %vm1168, %v1163, %v1165
    %v1170 = vsel %vm1168, %v1165, %v1167
    %v1173 = vsel %vm609, %v1169, 0.0
    %v1174 = vsel %vm610, %v1170, 0.0
    %v1175 = vstv %s1161
    %v1176 = vmul.f32 %v1175, %v1173
    %v1177 = vmul.f32 %v1175, %v1174
    %v1178 = vadd.f32 %v1159, %v1176
    %v1179 = vadd.f32 %v1160, %v1177
    %s1180 = sld [smem:[#allocation10 + $0x1d]]
    %1181 = vrot.lane.b32.xlu0 %v513, 63
    %v1182 = vpop.permute.xlu0 %1181
    %1183 = vrot.lane.b32.xlu0 %v509, 63
    %v1184 = vpop.permute.xlu0 %1183
    %1185 = vrot.lane.b32.xlu0 %v514, 63
    %v1186 = vpop.permute.xlu0 %1185
    %vm1187 = vcmask 515072
    %v1188 = vsel %vm1187, %v1182, %v1184
    %v1189 = vsel %vm1187, %v1184, %v1186
    %v1192 = vsel %vm621, %v1188, 0.0
    %v1193 = vsel %vm622, %v1189, 0.0
    %v1194 = vstv %s1180
    %v1195 = vmul.f32 %v1194, %v1192
    %v1196 = vmul.f32 %v1194, %v1193
    %v1197 = vadd.f32 %v1178, %v1195
    %v1198 = vadd.f32 %v1179, %v1196
    %s1199 = sld [smem:[#allocation10 + $0x1e]]
    %1200 = vrot.lane.b32.xlu0 %v513, 62
    %v1201 = vpop.permute.xlu0 %1200
    %1202 = vrot.lane.b32.xlu0 %v509, 62
    %v1203 = vpop.permute.xlu0 %1202
    %1204 = vrot.lane.b32.xlu0 %v514, 62
    %v1205 = vpop.permute.xlu0 %1204
    %vm1206 = vcmask 506880
    %v1207 = vsel %vm1206, %v1201, %v1203
    %v1208 = vsel %vm1206, %v1203, %v1205
    %v1211 = vsel %vm646, %v1207, 0.0
    %v1212 = vsel %vm647, %v1208, 0.0
    %v1213 = vstv %s1199
    %v1214 = vmul.f32 %v1213, %v1211
    %v1215 = vmul.f32 %v1213, %v1212
    %v1216 = vadd.f32 %v1197, %v1214
    %v1217 = vadd.f32 %v1198, %v1215
    %s1218 = sld [smem:[#allocation10 + $0x1f]]
    %v1219 = vstv %s1218
    %v1220 = vmul.f32 %v1219, %v513
    %v1221 = vmul.f32 %v1219, %v509
    %v1222 = vmul.f32 %v1219, %v514
    %1226 = vrot.lane.b32.xlu0 %v1220, 61
    %v1227 = vpop.permute.xlu0 %1226
    %1228 = vrot.lane.b32.xlu0 %v1221, 61
    %v1229 = vpop.permute.xlu0 %1228
    %1230 = vrot.lane.b32.xlu0 %v1222, 61
    %v1231 = vpop.permute.xlu0 %1230
    %vm1232 = vcmask 498688
    %v1233 = vsel %vm1232, %v1227, %v1229
    %v1234 = vsel %vm1232, %v1229, %v1231
    %v1237 = vadd.f32 %v1216, %v1233
    %v1238 = vadd.f32 %v1217, %v1234
    %s1239 = sld [smem:[#allocation10 + $0x20]]
    %1240 = vrot.lane.b32.xlu0 %v513, 60
    %v1241 = vpop.permute.xlu0 %1240
    %1242 = vrot.lane.b32.xlu0 %v509, 60
    %v1243 = vpop.permute.xlu0 %1242
    %1244 = vrot.lane.b32.xlu0 %v514, 60
    %v1245 = vpop.permute.xlu0 %1244
    %vm1246 = vcmask 490496
    %v1247 = vsel %vm1246, %v1241, %v1243
    %v1248 = vsel %vm1246, %v1243, %v1245
    %v1251 = vsel %vm690, %v1247, 0.0
    %v1252 = vsel %vm691, %v1248, 0.0
    %v1253 = vstv %s1239
    %v1254 = vmul.f32 %v1253, %v1251
    %v1255 = vmul.f32 %v1253, %v1252
    %v1256 = vadd.f32 %v1237, %v1254
    %v1257 = vadd.f32 %v1238, %v1255
    %s1258 = sld [smem:[#allocation10 + $0x21]]
    %1259 = vrot.lane.b32.xlu0 %v513, 59
    %v1260 = vpop.permute.xlu0 %1259
    %1261 = vrot.lane.b32.xlu0 %v509, 59
    %v1262 = vpop.permute.xlu0 %1261
    %1263 = vrot.lane.b32.xlu0 %v514, 59
    %v1264 = vpop.permute.xlu0 %1263
    %vm1265 = vcmask 482304
    %v1266 = vsel %vm1265, %v1260, %v1262
    %v1267 = vsel %vm1265, %v1262, %v1264
    %v1270 = vsel %vm713, %v1266, 0.0
    %v1271 = vsel %vm714, %v1267, 0.0
    %v1272 = vstv %s1258
    %v1273 = vmul.f32 %v1272, %v1270
    %v1274 = vmul.f32 %v1272, %v1271
    %v1275 = vadd.f32 %v1256, %v1273
    %v1276 = vadd.f32 %v1257, %v1274
    %s1277 = sld [smem:[#allocation10 + $0x22]]
    %1278 = vrot.lane.b32.xlu0 %v513, 58
    %v1279 = vpop.permute.xlu0 %1278
    %1280 = vrot.lane.b32.xlu0 %v509, 58
    %v1281 = vpop.permute.xlu0 %1280
    %1282 = vrot.lane.b32.xlu0 %v514, 58
    %v1283 = vpop.permute.xlu0 %1282
    %vm1284 = vcmask 474112
    %v1285 = vsel %vm1284, %v1279, %v1281
    %v1286 = vsel %vm1284, %v1281, %v1283
    %v1289 = vsel %vm736, %v1285, 0.0
    %v1290 = vsel %vm737, %v1286, 0.0
    %v1291 = vstv %s1277
    %v1292 = vmul.f32 %v1291, %v1289
    %v1293 = vmul.f32 %v1291, %v1290
    %v1294 = vadd.f32 %v1275, %v1292
    %v1295 = vadd.f32 %v1276, %v1293
    %s1296 = sld [smem:[#allocation10 + $0x23]]
    %1297 = vrot.lane.b32.xlu0 %v513, 48
    %v1298 = vpop.permute.xlu0 %1297
    %1299 = vrot.lane.b32.xlu0 %v509, 48
    %v1300 = vpop.permute.xlu0 %1299
    %1301 = vrot.lane.b32.xlu0 %v514, 48
    %v1302 = vpop.permute.xlu0 %1301
    %vm1303 = vcmask 392192
    %v1304 = vsel %vm1303, %v1298, %v1300
    %v1305 = vsel %vm1303, %v1300, %v1302
    %v1308 = vsel %vm609, %v1304, 0.0
    %v1309 = vsel %vm610, %v1305, 0.0
    %v1310 = vstv %s1296
    %v1311 = vmul.f32 %v1310, %v1308
    %v1312 = vmul.f32 %v1310, %v1309
    %v1313 = vadd.f32 %v1294, %v1311
    %v1314 = vadd.f32 %v1295, %v1312
    %s1315 = sld [smem:[#allocation10 + $0x24]]
    %1316 = vrot.lane.b32.xlu0 %v513, 47
    %v1317 = vpop.permute.xlu0 %1316
    %1318 = vrot.lane.b32.xlu0 %v509, 47
    %v1319 = vpop.permute.xlu0 %1318
    %1320 = vrot.lane.b32.xlu0 %v514, 47
    %v1321 = vpop.permute.xlu0 %1320
    %vm1322 = vcmask 384000
    %v1323 = vsel %vm1322, %v1317, %v1319
    %v1324 = vsel %vm1322, %v1319, %v1321
    %v1327 = vsel %vm621, %v1323, 0.0
    %v1328 = vsel %vm622, %v1324, 0.0
    %v1329 = vstv %s1315
    %v1330 = vmul.f32 %v1329, %v1327
    %v1331 = vmul.f32 %v1329, %v1328
    %v1332 = vadd.f32 %v1313, %v1330
    %v1333 = vadd.f32 %v1314, %v1331
    %s1334 = sld [smem:[#allocation10 + $0x25]]
    %1335 = vrot.lane.b32.xlu0 %v513, 46
    %v1336 = vpop.permute.xlu0 %1335
    %1337 = vrot.lane.b32.xlu0 %v509, 46
    %v1338 = vpop.permute.xlu0 %1337
    %1339 = vrot.lane.b32.xlu0 %v514, 46
    %v1340 = vpop.permute.xlu0 %1339
    %vm1341 = vcmask 375808
    %v1342 = vsel %vm1341, %v1336, %v1338
    %v1343 = vsel %vm1341, %v1338, %v1340
    %v1346 = vsel %vm646, %v1342, 0.0
    %v1347 = vsel %vm647, %v1343, 0.0
    %v1348 = vstv %s1334
    %v1349 = vmul.f32 %v1348, %v1346
    %v1350 = vmul.f32 %v1348, %v1347
    %v1351 = vadd.f32 %v1332, %v1349
    %v1352 = vadd.f32 %v1333, %v1350
    %s1353 = sld [smem:[#allocation10 + $0x26]]
    %v1354 = vstv %s1353
    %v1355 = vmul.f32 %v1354, %v513
    %v1356 = vmul.f32 %v1354, %v509
    %v1357 = vmul.f32 %v1354, %v514
    %1361 = vrot.lane.b32.xlu0 %v1355, 45
    %v1362 = vpop.permute.xlu0 %1361
    %1363 = vrot.lane.b32.xlu0 %v1356, 45
    %v1364 = vpop.permute.xlu0 %1363
    %1365 = vrot.lane.b32.xlu0 %v1357, 45
    %v1366 = vpop.permute.xlu0 %1365
    %vm1367 = vcmask 367616
    %v1368 = vsel %vm1367, %v1362, %v1364
    %v1369 = vsel %vm1367, %v1364, %v1366
    %v1372 = vadd.f32 %v1351, %v1368
    %v1373 = vadd.f32 %v1352, %v1369
    %s1374 = sld [smem:[#allocation10 + $0x27]]
    %1375 = vrot.lane.b32.xlu0 %v513, 44
    %v1376 = vpop.permute.xlu0 %1375
    %1377 = vrot.lane.b32.xlu0 %v509, 44
    %v1378 = vpop.permute.xlu0 %1377
    %1379 = vrot.lane.b32.xlu0 %v514, 44
    %v1380 = vpop.permute.xlu0 %1379
    %vm1381 = vcmask 359424
    %v1382 = vsel %vm1381, %v1376, %v1378
    %v1383 = vsel %vm1381, %v1378, %v1380
    %v1386 = vsel %vm690, %v1382, 0.0
    %v1387 = vsel %vm691, %v1383, 0.0
    %v1388 = vstv %s1374
    %v1389 = vmul.f32 %v1388, %v1386
    %v1390 = vmul.f32 %v1388, %v1387
    %v1391 = vadd.f32 %v1372, %v1389
    %v1392 = vadd.f32 %v1373, %v1390
    %s1393 = sld [smem:[#allocation10 + $0x28]]
    %1394 = vrot.lane.b32.xlu0 %v513, 43
    %v1395 = vpop.permute.xlu0 %1394
    %1396 = vrot.lane.b32.xlu0 %v509, 43
    %v1397 = vpop.permute.xlu0 %1396
    %1398 = vrot.lane.b32.xlu0 %v514, 43
    %v1399 = vpop.permute.xlu0 %1398
    %vm1400 = vcmask 351232
    %v1401 = vsel %vm1400, %v1395, %v1397
    %v1402 = vsel %vm1400, %v1397, %v1399
    %v1405 = vsel %vm713, %v1401, 0.0
    %v1406 = vsel %vm714, %v1402, 0.0
    %v1407 = vstv %s1393
    %v1408 = vmul.f32 %v1407, %v1405
    %v1409 = vmul.f32 %v1407, %v1406
    %v1410 = vadd.f32 %v1391, %v1408
    %v1411 = vadd.f32 %v1392, %v1409
    %s1412 = sld [smem:[#allocation10 + $0x29]]
    %1413 = vrot.lane.b32.xlu0 %v513, 42
    %v1414 = vpop.permute.xlu0 %1413
    %1415 = vrot.lane.b32.xlu0 %v509, 42
    %v1416 = vpop.permute.xlu0 %1415
    %1417 = vrot.lane.b32.xlu0 %v514, 42
    %v1418 = vpop.permute.xlu0 %1417
    %vm1419 = vcmask 343040
    %v1420 = vsel %vm1419, %v1414, %v1416
    %v1421 = vsel %vm1419, %v1416, %v1418
    %v1424 = vsel %vm736, %v1420, 0.0
    %v1425 = vsel %vm737, %v1421, 0.0
    %v1426 = vstv %s1412
    %v1427 = vmul.f32 %v1426, %v1424
    %v1428 = vmul.f32 %v1426, %v1425
    %v1429 = vadd.f32 %v1410, %v1427
    %v1430 = vadd.f32 %v1411, %v1428
    %s1431 = sld [smem:[#allocation10 + $0x2a]]
    %1432 = vrot.lane.b32.xlu0 %v513, 32
    %v1433 = vpop.permute.xlu0 %1432
    %1434 = vrot.lane.b32.xlu0 %v509, 32
    %v1435 = vpop.permute.xlu0 %1434
    %1436 = vrot.lane.b32.xlu0 %v514, 32
    %v1437 = vpop.permute.xlu0 %1436
    %vm1438 = vcmask 261120
    %v1439 = vsel %vm1438, %v1433, %v1435
    %v1440 = vsel %vm1438, %v1435, %v1437
    %v1443 = vsel %vm609, %v1439, 0.0
    %v1444 = vsel %vm610, %v1440, 0.0
    %v1445 = vstv %s1431
    %v1446 = vmul.f32 %v1445, %v1443
    %v1447 = vmul.f32 %v1445, %v1444
    %v1448 = vadd.f32 %v1429, %v1446
    %v1449 = vadd.f32 %v1430, %v1447
    %s1450 = sld [smem:[#allocation10 + $0x2b]]
    %1451 = vrot.lane.b32.xlu0 %v513, 31
    %v1452 = vpop.permute.xlu0 %1451
    %1453 = vrot.lane.b32.xlu0 %v509, 31
    %v1454 = vpop.permute.xlu0 %1453
    %1455 = vrot.lane.b32.xlu0 %v514, 31
    %v1456 = vpop.permute.xlu0 %1455
    %vm1457 = vcmask 252928
    %v1458 = vsel %vm1457, %v1452, %v1454
    %v1459 = vsel %vm1457, %v1454, %v1456
    %v1462 = vsel %vm621, %v1458, 0.0
    %v1463 = vsel %vm622, %v1459, 0.0
    %v1464 = vstv %s1450
    %v1465 = vmul.f32 %v1464, %v1462
    %v1466 = vmul.f32 %v1464, %v1463
    %v1467 = vadd.f32 %v1448, %v1465
    %v1468 = vadd.f32 %v1449, %v1466
    %s1469 = sld [smem:[#allocation10 + $0x2c]]
    %1470 = vrot.lane.b32.xlu0 %v513, 30
    %v1471 = vpop.permute.xlu0 %1470
    %1472 = vrot.lane.b32.xlu0 %v509, 30
    %v1473 = vpop.permute.xlu0 %1472
    %1474 = vrot.lane.b32.xlu0 %v514, 30
    %v1475 = vpop.permute.xlu0 %1474
    %vm1476 = vcmask 244736
    %v1477 = vsel %vm1476, %v1471, %v1473
    %v1478 = vsel %vm1476, %v1473, %v1475
    %v1481 = vsel %vm646, %v1477, 0.0
    %v1482 = vsel %vm647, %v1478, 0.0
    %v1483 = vstv %s1469
    %v1484 = vmul.f32 %v1483, %v1481
    %v1485 = vmul.f32 %v1483, %v1482
    %v1486 = vadd.f32 %v1467, %v1484
    %v1487 = vadd.f32 %v1468, %v1485
    %s1488 = sld [smem:[#allocation10 + $0x2d]]
    %v1489 = vstv %s1488
    %v1490 = vmul.f32 %v1489, %v513
    %v1491 = vmul.f32 %v1489, %v509
    %v1492 = vmul.f32 %v1489, %v514
    %1496 = vrot.lane.b32.xlu0 %v1490, 29
    %v1497 = vpop.permute.xlu0 %1496
    %1498 = vrot.lane.b32.xlu0 %v1491, 29
    %v1499 = vpop.permute.xlu0 %1498
    %1500 = vrot.lane.b32.xlu0 %v1492, 29
    %v1501 = vpop.permute.xlu0 %1500
    %vm1502 = vcmask 236544
    %v1503 = vsel %vm1502, %v1497, %v1499
    %v1504 = vsel %vm1502, %v1499, %v1501
    %v1507 = vadd.f32 %v1486, %v1503
    %v1508 = vadd.f32 %v1487, %v1504
    %s1509 = sld [smem:[#allocation10 + $0x2e]]
    %1510 = vrot.lane.b32.xlu0 %v513, 28
    %v1511 = vpop.permute.xlu0 %1510
    %1512 = vrot.lane.b32.xlu0 %v509, 28
    %v1513 = vpop.permute.xlu0 %1512
    %1514 = vrot.lane.b32.xlu0 %v514, 28
    %v1515 = vpop.permute.xlu0 %1514
    %vm1516 = vcmask 228352
    %v1517 = vsel %vm1516, %v1511, %v1513
    %v1518 = vsel %vm1516, %v1513, %v1515
    %v1521 = vsel %vm690, %v1517, 0.0
    %v1522 = vsel %vm691, %v1518, 0.0
    %v1523 = vstv %s1509
    %v1524 = vmul.f32 %v1523, %v1521
    %v1525 = vmul.f32 %v1523, %v1522
    %v1526 = vadd.f32 %v1507, %v1524
    %v1527 = vadd.f32 %v1508, %v1525
    %s1528 = sld [smem:[#allocation10 + $0x2f]]
    %1529 = vrot.lane.b32.xlu0 %v513, 27
    %v1530 = vpop.permute.xlu0 %1529
    %1531 = vrot.lane.b32.xlu0 %v509, 27
    %v1532 = vpop.permute.xlu0 %1531
    %1533 = vrot.lane.b32.xlu0 %v514, 27
    %v1534 = vpop.permute.xlu0 %1533
    %vm1535 = vcmask 220160
    %v1536 = vsel %vm1535, %v1530, %v1532
    %v1537 = vsel %vm1535, %v1532, %v1534
    %v1540 = vsel %vm713, %v1536, 0.0
    %v1541 = vsel %vm714, %v1537, 0.0
    %v1542 = vstv %s1528
    %v1543 = vmul.f32 %v1542, %v1540
    %v1544 = vmul.f32 %v1542, %v1541
    %v1545 = vadd.f32 %v1526, %v1543
    %v1546 = vadd.f32 %v1527, %v1544
    %s1547 = sld [smem:[#allocation10 + $0x30]]
    %1548 = vrot.lane.b32.xlu0 %v513, 26
    %v1549 = vpop.permute.xlu0 %1548
    %1550 = vrot.lane.b32.xlu0 %v509, 26
    %v1551 = vpop.permute.xlu0 %1550
    %1552 = vrot.lane.b32.xlu0 %v514, 26
    %v1553 = vpop.permute.xlu0 %1552
    %vm1554 = vcmask 211968
    %v1555 = vsel %vm1554, %v1549, %v1551
    %v1556 = vsel %vm1554, %v1551, %v1553
    %v1559 = vsel %vm736, %v1555, 0.0
    %v1560 = vsel %vm737, %v1556, 0.0
    %v1561 = vstv %s1547
    %v1562 = vmul.f32 %v1561, %v1559
    %v1563 = vmul.f32 %v1561, %v1560
    %v1564 = vadd.f32 %v1545, %v1562
    %v1565 = vadd.f32 %v1546, %v1563
    %s1566 = sld [smem:[#allocation10 + $0x31]]
    %v1567 = vsel %vm609, %v529, 0.0
    %v1568 = vsel %vm610, %v525, 0.0
    %v1569 = vstv %s1566
    %v1570 = vmul.f32 %v1569, %v1567
    %v1571 = vmul.f32 %v1569, %v1568
    %v1572 = vadd.f32 %v1564, %v1570
    %v1573 = vadd.f32 %v1565, %v1571
    %s1574 = sld [smem:[#allocation10 + $0x32]]
    %1577 = vrot.lane.b32.xlu0 %v529, 127
    %v1578 = vpop.permute.xlu0 %1577
    %1579 = vrot.lane.b32.xlu0 %v525, 127
    %v1580 = vpop.permute.xlu0 %1579
    %1581 = vrot.lane.b32.xlu0 %v530, 127
    %v1582 = vpop.permute.xlu0 %1581
    %v1583 = vsel %vm631, %v1578, %v1580
    %v1584 = vsel %vm631, %v1580, %v1582
    %v1587 = vsel %vm621, %v1583, 0.0
    %v1588 = vsel %vm622, %v1584, 0.0
    %v1589 = vstv %s1574
    %v1590 = vmul.f32 %v1589, %v1587
    %v1591 = vmul.f32 %v1589, %v1588
    %v1592 = vadd.f32 %v1572, %v1590
    %v1593 = vadd.f32 %v1573, %v1591
    %s1594 = sld [smem:[#allocation10 + $0x33]]
    %1595 = vrot.lane.b32.xlu0 %v529, 126
    %v1596 = vpop.permute.xlu0 %1595
    %1597 = vrot.lane.b32.xlu0 %v525, 126
    %v1598 = vpop.permute.xlu0 %1597
    %1599 = vrot.lane.b32.xlu0 %v530, 126
    %v1600 = vpop.permute.xlu0 %1599
    %v1601 = vsel %vm654, %v1596, %v1598
    %v1602 = vsel %vm654, %v1598, %v1600
    %v1605 = vsel %vm646, %v1601, 0.0
    %v1606 = vsel %vm647, %v1602, 0.0
    %v1607 = vstv %s1594
    %v1608 = vmul.f32 %v1607, %v1605
    %v1609 = vmul.f32 %v1607, %v1606
    %v1610 = vadd.f32 %v1592, %v1608
    %v1611 = vadd.f32 %v1593, %v1609
    %s1612 = sld [smem:[#allocation10 + $0x34]]
    %v1613 = vstv %s1612
    %v1614 = vmul.f32 %v1613, %v529
    %v1615 = vmul.f32 %v1613, %v525
    %v1616 = vmul.f32 %v1613, %v530
    %1620 = vrot.lane.b32.xlu0 %v1614, 125
    %v1621 = vpop.permute.xlu0 %1620
    %1622 = vrot.lane.b32.xlu0 %v1615, 125
    %v1623 = vpop.permute.xlu0 %1622
    %1624 = vrot.lane.b32.xlu0 %v1616, 125
    %v1625 = vpop.permute.xlu0 %1624
    %v1626 = vsel %vm680, %v1621, %v1623
    %v1627 = vsel %vm680, %v1623, %v1625
    %v1630 = vadd.f32 %v1610, %v1626
    %v1631 = vadd.f32 %v1611, %v1627
    %s1632 = sld [smem:[#allocation10 + $0x35]]
    %1633 = vrot.lane.b32.xlu0 %v529, 124
    %v1634 = vpop.permute.xlu0 %1633
    %1635 = vrot.lane.b32.xlu0 %v525, 124
    %v1636 = vpop.permute.xlu0 %1635
    %1637 = vrot.lane.b32.xlu0 %v530, 124
    %v1638 = vpop.permute.xlu0 %1637
    %v1639 = vsel %vm698, %v1634, %v1636
    %v1640 = vsel %vm698, %v1636, %v1638
    %v1643 = vsel %vm690, %v1639, 0.0
    %v1644 = vsel %vm691, %v1640, 0.0
    %v1645 = vstv %s1632
    %v1646 = vmul.f32 %v1645, %v1643
    %v1647 = vmul.f32 %v1645, %v1644
    %v1648 = vadd.f32 %v1630, %v1646
    %v1649 = vadd.f32 %v1631, %v1647
    %s1650 = sld [smem:[#allocation10 + $0x36]]
    %1651 = vrot.lane.b32.xlu0 %v529, 123
    %v1652 = vpop.permute.xlu0 %1651
    %1653 = vrot.lane.b32.xlu0 %v525, 123
    %v1654 = vpop.permute.xlu0 %1653
    %1655 = vrot.lane.b32.xlu0 %v530, 123
    %v1656 = vpop.permute.xlu0 %1655
    %v1657 = vsel %vm721, %v1652, %v1654
    %v1658 = vsel %vm721, %v1654, %v1656
    %v1661 = vsel %vm713, %v1657, 0.0
    %v1662 = vsel %vm714, %v1658, 0.0
    %v1663 = vstv %s1650
    %v1664 = vmul.f32 %v1663, %v1661
    %v1665 = vmul.f32 %v1663, %v1662
    %v1666 = vadd.f32 %v1648, %v1664
    %v1667 = vadd.f32 %v1649, %v1665
    %s1668 = sld [smem:[#allocation10 + $0x37]]
    %1669 = vrot.lane.b32.xlu0 %v529, 122
    %v1670 = vpop.permute.xlu0 %1669
    %1671 = vrot.lane.b32.xlu0 %v525, 122
    %v1672 = vpop.permute.xlu0 %1671
    %1673 = vrot.lane.b32.xlu0 %v530, 122
    %v1674 = vpop.permute.xlu0 %1673
    %v1675 = vsel %vm744, %v1670, %v1672
    %v1676 = vsel %vm744, %v1672, %v1674
    %v1679 = vsel %vm736, %v1675, 0.0
    %v1680 = vsel %vm737, %v1676, 0.0
    %v1681 = vstv %s1668
    %v1682 = vmul.f32 %v1681, %v1679
    %v1683 = vmul.f32 %v1681, %v1680
    %v1684 = vadd.f32 %v1666, %v1682
    %v1685 = vadd.f32 %v1667, %v1683
    %s1686 = sld [smem:[#allocation10 + $0x38]]
    %1687 = vrot.lane.b32.xlu0 %v529, 112
    %v1688 = vpop.permute.xlu0 %1687
    %1689 = vrot.lane.b32.xlu0 %v525, 112
    %v1690 = vpop.permute.xlu0 %1689
    %1691 = vrot.lane.b32.xlu0 %v530, 112
    %v1692 = vpop.permute.xlu0 %1691
    %v1693 = vsel %vm763, %v1688, %v1690
    %v1694 = vsel %vm763, %v1690, %v1692
    %v1697 = vsel %vm609, %v1693, 0.0
    %v1698 = vsel %vm610, %v1694, 0.0
    %v1699 = vstv %s1686
    %v1700 = vmul.f32 %v1699, %v1697
    %v1701 = vmul.f32 %v1699, %v1698
    %v1702 = vadd.f32 %v1684, %v1700
    %v1703 = vadd.f32 %v1685, %v1701
    %s1704 = sld [smem:[#allocation10 + $0x39]]
    %1705 = vrot.lane.b32.xlu0 %v529, 111
    %v1706 = vpop.permute.xlu0 %1705
    %1707 = vrot.lane.b32.xlu0 %v525, 111
    %v1708 = vpop.permute.xlu0 %1707
    %1709 = vrot.lane.b32.xlu0 %v530, 111
    %v1710 = vpop.permute.xlu0 %1709
    %v1711 = vsel %vm782, %v1706, %v1708
    %v1712 = vsel %vm782, %v1708, %v1710
    %v1715 = vsel %vm621, %v1711, 0.0
    %v1716 = vsel %vm622, %v1712, 0.0
    %v1717 = vstv %s1704
    %v1718 = vmul.f32 %v1717, %v1715
    %v1719 = vmul.f32 %v1717, %v1716
    %v1720 = vadd.f32 %v1702, %v1718
    %v1721 = vadd.f32 %v1703, %v1719
    %s1722 = sld [smem:[#allocation10 + $0x3a]]
    %1723 = vrot.lane.b32.xlu0 %v529, 110
    %v1724 = vpop.permute.xlu0 %1723
    %1725 = vrot.lane.b32.xlu0 %v525, 110
    %v1726 = vpop.permute.xlu0 %1725
    %1727 = vrot.lane.b32.xlu0 %v530, 110
    %v1728 = vpop.permute.xlu0 %1727
    %v1729 = vsel %vm801, %v1724, %v1726
    %v1730 = vsel %vm801, %v1726, %v1728
    %v1733 = vsel %vm646, %v1729, 0.0
    %v1734 = vsel %vm647, %v1730, 0.0
    %v1735 = vstv %s1722
    %v1736 = vmul.f32 %v1735, %v1733
    %v1737 = vmul.f32 %v1735, %v1734
    %v1738 = vadd.f32 %v1720, %v1736
    %v1739 = vadd.f32 %v1721, %v1737
    %s1740 = sld [smem:[#allocation10 + $0x3b]]
    %v1741 = vstv %s1740
    %v1742 = vmul.f32 %v1741, %v529
    %v1743 = vmul.f32 %v1741, %v525
    %v1744 = vmul.f32 %v1741, %v530
    %1748 = vrot.lane.b32.xlu0 %v1742, 109
    %v1749 = vpop.permute.xlu0 %1748
    %1750 = vrot.lane.b32.xlu0 %v1743, 109
    %v1751 = vpop.permute.xlu0 %1750
    %1752 = vrot.lane.b32.xlu0 %v1744, 109
    %v1753 = vpop.permute.xlu0 %1752
    %v1754 = vsel %vm827, %v1749, %v1751
    %v1755 = vsel %vm827, %v1751, %v1753
    %v1758 = vadd.f32 %v1738, %v1754
    %v1759 = vadd.f32 %v1739, %v1755
    %s1760 = sld [smem:[#allocation10 + $0x3c]]
    %1761 = vrot.lane.b32.xlu0 %v529, 108
    %v1762 = vpop.permute.xlu0 %1761
    %1763 = vrot.lane.b32.xlu0 %v525, 108
    %v1764 = vpop.permute.xlu0 %1763
    %1765 = vrot.lane.b32.xlu0 %v530, 108
    %v1766 = vpop.permute.xlu0 %1765
    %v1767 = vsel %vm841, %v1762, %v1764
    %v1768 = vsel %vm841, %v1764, %v1766
    %v1771 = vsel %vm690, %v1767, 0.0
    %v1772 = vsel %vm691, %v1768, 0.0
    %v1773 = vstv %s1760
    %v1774 = vmul.f32 %v1773, %v1771
    %v1775 = vmul.f32 %v1773, %v1772
    %v1776 = vadd.f32 %v1758, %v1774
    %v1777 = vadd.f32 %v1759, %v1775
    %s1778 = sld [smem:[#allocation10 + $0x3d]]
    %1779 = vrot.lane.b32.xlu0 %v529, 107
    %v1780 = vpop.permute.xlu0 %1779
    %1781 = vrot.lane.b32.xlu0 %v525, 107
    %v1782 = vpop.permute.xlu0 %1781
    %1783 = vrot.lane.b32.xlu0 %v530, 107
    %v1784 = vpop.permute.xlu0 %1783
    %v1785 = vsel %vm860, %v1780, %v1782
    %v1786 = vsel %vm860, %v1782, %v1784
    %v1789 = vsel %vm713, %v1785, 0.0
    %v1790 = vsel %vm714, %v1786, 0.0
    %v1791 = vstv %s1778
    %v1792 = vmul.f32 %v1791, %v1789
    %v1793 = vmul.f32 %v1791, %v1790
    %v1794 = vadd.f32 %v1776, %v1792
    %v1795 = vadd.f32 %v1777, %v1793
    %s1796 = sld [smem:[#allocation10 + $0x3e]]
    %1797 = vrot.lane.b32.xlu0 %v529, 106
    %v1798 = vpop.permute.xlu0 %1797
    %1799 = vrot.lane.b32.xlu0 %v525, 106
    %v1800 = vpop.permute.xlu0 %1799
    %1801 = vrot.lane.b32.xlu0 %v530, 106
    %v1802 = vpop.permute.xlu0 %1801
    %v1803 = vsel %vm879, %v1798, %v1800
    %v1804 = vsel %vm879, %v1800, %v1802
    %v1807 = vsel %vm736, %v1803, 0.0
    %v1808 = vsel %vm737, %v1804, 0.0
    %v1809 = vstv %s1796
    %v1810 = vmul.f32 %v1809, %v1807
    %v1811 = vmul.f32 %v1809, %v1808
    %v1812 = vadd.f32 %v1794, %v1810
    %v1813 = vadd.f32 %v1795, %v1811
    %s1814 = sld [smem:[#allocation10 + $0x3f]]
    %1815 = vrot.lane.b32.xlu0 %v529, 96
    %v1816 = vpop.permute.xlu0 %1815
    %1817 = vrot.lane.b32.xlu0 %v525, 96
    %v1818 = vpop.permute.xlu0 %1817
    %1819 = vrot.lane.b32.xlu0 %v530, 96
    %v1820 = vpop.permute.xlu0 %1819
    %v1821 = vsel %vm898, %v1816, %v1818
    %v1822 = vsel %vm898, %v1818, %v1820
    %v1825 = vsel %vm609, %v1821, 0.0
    %v1826 = vsel %vm610, %v1822, 0.0
    %v1827 = vstv %s1814
    %v1828 = vmul.f32 %v1827, %v1825
    %v1829 = vmul.f32 %v1827, %v1826
    %v1830 = vadd.f32 %v1812, %v1828
    %v1831 = vadd.f32 %v1813, %v1829
    %s1832 = sld [smem:[#allocation10 + $0x40]]
    %1833 = vrot.lane.b32.xlu0 %v529, 95
    %v1834 = vpop.permute.xlu0 %1833
    %1835 = vrot.lane.b32.xlu0 %v525, 95
    %v1836 = vpop.permute.xlu0 %1835
    %1837 = vrot.lane.b32.xlu0 %v530, 95
    %v1838 = vpop.permute.xlu0 %1837
    %v1839 = vsel %vm917, %v1834, %v1836
    %v1840 = vsel %vm917, %v1836, %v1838
    %v1843 = vsel %vm621, %v1839, 0.0
    %v1844 = vsel %vm622, %v1840, 0.0
    %v1845 = vstv %s1832
    %v1846 = vmul.f32 %v1845, %v1843
    %v1847 = vmul.f32 %v1845, %v1844
    %v1848 = vadd.f32 %v1830, %v1846
    %v1849 = vadd.f32 %v1831, %v1847
    %s1850 = sld [smem:[#allocation10 + $0x41]]
    %1851 = vrot.lane.b32.xlu0 %v529, 94
    %v1852 = vpop.permute.xlu0 %1851
    %1853 = vrot.lane.b32.xlu0 %v525, 94
    %v1854 = vpop.permute.xlu0 %1853
    %1855 = vrot.lane.b32.xlu0 %v530, 94
    %v1856 = vpop.permute.xlu0 %1855
    %v1857 = vsel %vm936, %v1852, %v1854
    %v1858 = vsel %vm936, %v1854, %v1856
    %v1861 = vsel %vm646, %v1857, 0.0
    %v1862 = vsel %vm647, %v1858, 0.0
    %v1863 = vstv %s1850
    %v1864 = vmul.f32 %v1863, %v1861
    %v1865 = vmul.f32 %v1863, %v1862
    %v1866 = vadd.f32 %v1848, %v1864
    %v1867 = vadd.f32 %v1849, %v1865
    %s1868 = sld [smem:[#allocation10 + $0x42]]
    %v1869 = vstv %s1868
    %v1870 = vmul.f32 %v1869, %v529
    %v1871 = vmul.f32 %v1869, %v525
    %v1872 = vmul.f32 %v1869, %v530
    %1876 = vrot.lane.b32.xlu0 %v1870, 93
    %v1877 = vpop.permute.xlu0 %1876
    %1878 = vrot.lane.b32.xlu0 %v1871, 93
    %v1879 = vpop.permute.xlu0 %1878
    %1880 = vrot.lane.b32.xlu0 %v1872, 93
    %v1881 = vpop.permute.xlu0 %1880
    %v1882 = vsel %vm962, %v1877, %v1879
    %v1883 = vsel %vm962, %v1879, %v1881
    %v1886 = vadd.f32 %v1866, %v1882
    %v1887 = vadd.f32 %v1867, %v1883
    %s1888 = sld [smem:[#allocation10 + $0x43]]
    %1889 = vrot.lane.b32.xlu0 %v529, 92
    %v1890 = vpop.permute.xlu0 %1889
    %1891 = vrot.lane.b32.xlu0 %v525, 92
    %v1892 = vpop.permute.xlu0 %1891
    %1893 = vrot.lane.b32.xlu0 %v530, 92
    %v1894 = vpop.permute.xlu0 %1893
    %v1895 = vsel %vm976, %v1890, %v1892
    %v1896 = vsel %vm976, %v1892, %v1894
    %v1899 = vsel %vm690, %v1895, 0.0
    %v1900 = vsel %vm691, %v1896, 0.0
    %v1901 = vstv %s1888
    %v1902 = vmul.f32 %v1901, %v1899
    %v1903 = vmul.f32 %v1901, %v1900
    %v1904 = vadd.f32 %v1886, %v1902
    %v1905 = vadd.f32 %v1887, %v1903
    %s1906 = sld [smem:[#allocation10 + $0x44]]
    %1907 = vrot.lane.b32.xlu0 %v529, 91
    %v1908 = vpop.permute.xlu0 %1907
    %1909 = vrot.lane.b32.xlu0 %v525, 91
    %v1910 = vpop.permute.xlu0 %1909
    %1911 = vrot.lane.b32.xlu0 %v530, 91
    %v1912 = vpop.permute.xlu0 %1911
    %v1913 = vsel %vm995, %v1908, %v1910
    %v1914 = vsel %vm995, %v1910, %v1912
    %v1917 = vsel %vm713, %v1913, 0.0
    %v1918 = vsel %vm714, %v1914, 0.0
    %v1919 = vstv %s1906
    %v1920 = vmul.f32 %v1919, %v1917
    %v1921 = vmul.f32 %v1919, %v1918
    %v1922 = vadd.f32 %v1904, %v1920
    %v1923 = vadd.f32 %v1905, %v1921
    %s1924 = sld [smem:[#allocation10 + $0x45]]
    %1925 = vrot.lane.b32.xlu0 %v529, 90
    %v1926 = vpop.permute.xlu0 %1925
    %1927 = vrot.lane.b32.xlu0 %v525, 90
    %v1928 = vpop.permute.xlu0 %1927
    %1929 = vrot.lane.b32.xlu0 %v530, 90
    %v1930 = vpop.permute.xlu0 %1929
    %v1931 = vsel %vm1014, %v1926, %v1928
    %v1932 = vsel %vm1014, %v1928, %v1930
    %v1935 = vsel %vm736, %v1931, 0.0
    %v1936 = vsel %vm737, %v1932, 0.0
    %v1937 = vstv %s1924
    %v1938 = vmul.f32 %v1937, %v1935
    %v1939 = vmul.f32 %v1937, %v1936
    %v1940 = vadd.f32 %v1922, %v1938
    %v1941 = vadd.f32 %v1923, %v1939
    %s1942 = sld [smem:[#allocation10 + $0x46]]
    %1943 = vrot.lane.b32.xlu0 %v529, 80
    %v1944 = vpop.permute.xlu0 %1943
    %1945 = vrot.lane.b32.xlu0 %v525, 80
    %v1946 = vpop.permute.xlu0 %1945
    %1947 = vrot.lane.b32.xlu0 %v530, 80
    %v1948 = vpop.permute.xlu0 %1947
    %v1949 = vsel %vm1033, %v1944, %v1946
    %v1950 = vsel %vm1033, %v1946, %v1948
    %v1953 = vsel %vm609, %v1949, 0.0
    %v1954 = vsel %vm610, %v1950, 0.0
    %v1955 = vstv %s1942
    %v1956 = vmul.f32 %v1955, %v1953
    %v1957 = vmul.f32 %v1955, %v1954
    %v1958 = vadd.f32 %v1940, %v1956
    %v1959 = vadd.f32 %v1941, %v1957
    %s1960 = sld [smem:[#allocation10 + $0x47]]
    %1961 = vrot.lane.b32.xlu0 %v529, 79
    %v1962 = vpop.permute.xlu0 %1961
    %1963 = vrot.lane.b32.xlu0 %v525, 79
    %v1964 = vpop.permute.xlu0 %1963
    %1965 = vrot.lane.b32.xlu0 %v530, 79
    %v1966 = vpop.permute.xlu0 %1965
    %v1967 = vsel %vm1052, %v1962, %v1964
    %v1968 = vsel %vm1052, %v1964, %v1966
    %v1971 = vsel %vm621, %v1967, 0.0
    %v1972 = vsel %vm622, %v1968, 0.0
    %v1973 = vstv %s1960
    %v1974 = vmul.f32 %v1973, %v1971
    %v1975 = vmul.f32 %v1973, %v1972
    %v1976 = vadd.f32 %v1958, %v1974
    %v1977 = vadd.f32 %v1959, %v1975
    %s1978 = sld [smem:[#allocation10 + $0x48]]
    %1979 = vrot.lane.b32.xlu0 %v529, 78
    %v1980 = vpop.permute.xlu0 %1979
    %1981 = vrot.lane.b32.xlu0 %v525, 78
    %v1982 = vpop.permute.xlu0 %1981
    %1983 = vrot.lane.b32.xlu0 %v530, 78
    %v1984 = vpop.permute.xlu0 %1983
    %v1985 = vsel %vm1071, %v1980, %v1982
    %v1986 = vsel %vm1071, %v1982, %v1984
    %v1989 = vsel %vm646, %v1985, 0.0
    %v1990 = vsel %vm647, %v1986, 0.0
    %v1991 = vstv %s1978
    %v1992 = vmul.f32 %v1991, %v1989
    %v1993 = vmul.f32 %v1991, %v1990
    %v1994 = vadd.f32 %v1976, %v1992
    %v1995 = vadd.f32 %v1977, %v1993
    %s1996 = sld [smem:[#allocation10 + $0x49]]
    %v1997 = vstv %s1996
    %v1998 = vmul.f32 %v1997, %v529
    %v1999 = vmul.f32 %v1997, %v525
    %v2000 = vmul.f32 %v1997, %v530
    %2004 = vrot.lane.b32.xlu0 %v1998, 77
    %v2005 = vpop.permute.xlu0 %2004
    %2006 = vrot.lane.b32.xlu0 %v1999, 77
    %v2007 = vpop.permute.xlu0 %2006
    %2008 = vrot.lane.b32.xlu0 %v2000, 77
    %v2009 = vpop.permute.xlu0 %2008
    %v2010 = vsel %vm1097, %v2005, %v2007
    %v2011 = vsel %vm1097, %v2007, %v2009
    %v2014 = vadd.f32 %v1994, %v2010
    %v2015 = vadd.f32 %v1995, %v2011
    %s2016 = sld [smem:[#allocation10 + $0x4a]]
    %2017 = vrot.lane.b32.xlu0 %v529, 76
    %v2018 = vpop.permute.xlu0 %2017
    %2019 = vrot.lane.b32.xlu0 %v525, 76
    %v2020 = vpop.permute.xlu0 %2019
    %2021 = vrot.lane.b32.xlu0 %v530, 76
    %v2022 = vpop.permute.xlu0 %2021
    %v2023 = vsel %vm1111, %v2018, %v2020
    %v2024 = vsel %vm1111, %v2020, %v2022
    %v2027 = vsel %vm690, %v2023, 0.0
    %v2028 = vsel %vm691, %v2024, 0.0
    %v2029 = vstv %s2016
    %v2030 = vmul.f32 %v2029, %v2027
    %v2031 = vmul.f32 %v2029, %v2028
    %v2032 = vadd.f32 %v2014, %v2030
    %v2033 = vadd.f32 %v2015, %v2031
    %s2034 = sld [smem:[#allocation10 + $0x4b]]
    %2035 = vrot.lane.b32.xlu0 %v529, 75
    %v2036 = vpop.permute.xlu0 %2035
    %2037 = vrot.lane.b32.xlu0 %v525, 75
    %v2038 = vpop.permute.xlu0 %2037
    %2039 = vrot.lane.b32.xlu0 %v530, 75
    %v2040 = vpop.permute.xlu0 %2039
    %v2041 = vsel %vm1130, %v2036, %v2038
    %v2042 = vsel %vm1130, %v2038, %v2040
    %v2045 = vsel %vm713, %v2041, 0.0
    %v2046 = vsel %vm714, %v2042, 0.0
    %v2047 = vstv %s2034
    %v2048 = vmul.f32 %v2047, %v2045
    %v2049 = vmul.f32 %v2047, %v2046
    %v2050 = vadd.f32 %v2032, %v2048
    %v2051 = vadd.f32 %v2033, %v2049
    %s2052 = sld [smem:[#allocation10 + $0x4c]]
    %2053 = vrot.lane.b32.xlu0 %v529, 74
    %v2054 = vpop.permute.xlu0 %2053
    %2055 = vrot.lane.b32.xlu0 %v525, 74
    %v2056 = vpop.permute.xlu0 %2055
    %2057 = vrot.lane.b32.xlu0 %v530, 74
    %v2058 = vpop.permute.xlu0 %2057
    %v2059 = vsel %vm1149, %v2054, %v2056
    %v2060 = vsel %vm1149, %v2056, %v2058
    %v2063 = vsel %vm736, %v2059, 0.0
    %v2064 = vsel %vm737, %v2060, 0.0
    %v2065 = vstv %s2052
    %v2066 = vmul.f32 %v2065, %v2063
    %v2067 = vmul.f32 %v2065, %v2064
    %v2068 = vadd.f32 %v2050, %v2066
    %v2069 = vadd.f32 %v2051, %v2067
    %s2070 = sld [smem:[#allocation10 + $0x4d]]
    %2071 = vrot.lane.b32.xlu0 %v529, 64
    %v2072 = vpop.permute.xlu0 %2071
    %2073 = vrot.lane.b32.xlu0 %v525, 64
    %v2074 = vpop.permute.xlu0 %2073
    %2075 = vrot.lane.b32.xlu0 %v530, 64
    %v2076 = vpop.permute.xlu0 %2075
    %v2077 = vsel %vm1168, %v2072, %v2074
    %v2078 = vsel %vm1168, %v2074, %v2076
    %v2081 = vsel %vm609, %v2077, 0.0
    %v2082 = vsel %vm610, %v2078, 0.0
    %v2083 = vstv %s2070
    %v2084 = vmul.f32 %v2083, %v2081
    %v2085 = vmul.f32 %v2083, %v2082
    %v2086 = vadd.f32 %v2068, %v2084
    %v2087 = vadd.f32 %v2069, %v2085
    %s2088 = sld [smem:[#allocation10 + $0x4e]]
    %2089 = vrot.lane.b32.xlu0 %v529, 63
    %v2090 = vpop.permute.xlu0 %2089
    %2091 = vrot.lane.b32.xlu0 %v525, 63
    %v2092 = vpop.permute.xlu0 %2091
    %2093 = vrot.lane.b32.xlu0 %v530, 63
    %v2094 = vpop.permute.xlu0 %2093
    %v2095 = vsel %vm1187, %v2090, %v2092
    %v2096 = vsel %vm1187, %v2092, %v2094
    %v2099 = vsel %vm621, %v2095, 0.0
    %v2100 = vsel %vm622, %v2096, 0.0
    %v2101 = vstv %s2088
    %v2102 = vmul.f32 %v2101, %v2099
    %v2103 = vmul.f32 %v2101, %v2100
    %v2104 = vadd.f32 %v2086, %v2102
    %v2105 = vadd.f32 %v2087, %v2103
    %s2106 = sld [smem:[#allocation10 + $0x4f]]
    %2107 = vrot.lane.b32.xlu0 %v529, 62
    %v2108 = vpop.permute.xlu0 %2107
    %2109 = vrot.lane.b32.xlu0 %v525, 62
    %v2110 = vpop.permute.xlu0 %2109
    %2111 = vrot.lane.b32.xlu0 %v530, 62
    %v2112 = vpop.permute.xlu0 %2111
    %v2113 = vsel %vm1206, %v2108, %v2110
    %v2114 = vsel %vm1206, %v2110, %v2112
    %v2117 = vsel %vm646, %v2113, 0.0
    %v2118 = vsel %vm647, %v2114, 0.0
    %v2119 = vstv %s2106
    %v2120 = vmul.f32 %v2119, %v2117
    %v2121 = vmul.f32 %v2119, %v2118
    %v2122 = vadd.f32 %v2104, %v2120
    %v2123 = vadd.f32 %v2105, %v2121
    %s2124 = sld [smem:[#allocation10 + $0x50]]
    %v2125 = vstv %s2124
    %v2126 = vmul.f32 %v2125, %v529
    %v2127 = vmul.f32 %v2125, %v525
    %v2128 = vmul.f32 %v2125, %v530
    %2132 = vrot.lane.b32.xlu0 %v2126, 61
    %v2133 = vpop.permute.xlu0 %2132
    %2134 = vrot.lane.b32.xlu0 %v2127, 61
    %v2135 = vpop.permute.xlu0 %2134
    %2136 = vrot.lane.b32.xlu0 %v2128, 61
    %v2137 = vpop.permute.xlu0 %2136
    %v2138 = vsel %vm1232, %v2133, %v2135
    %v2139 = vsel %vm1232, %v2135, %v2137
    %v2142 = vadd.f32 %v2122, %v2138
    %v2143 = vadd.f32 %v2123, %v2139
    %s2144 = sld [smem:[#allocation10 + $0x51]]
    %2145 = vrot.lane.b32.xlu0 %v529, 60
    %v2146 = vpop.permute.xlu0 %2145
    %2147 = vrot.lane.b32.xlu0 %v525, 60
    %v2148 = vpop.permute.xlu0 %2147
    %2149 = vrot.lane.b32.xlu0 %v530, 60
    %v2150 = vpop.permute.xlu0 %2149
    %v2151 = vsel %vm1246, %v2146, %v2148
    %v2152 = vsel %vm1246, %v2148, %v2150
    %v2155 = vsel %vm690, %v2151, 0.0
    %v2156 = vsel %vm691, %v2152, 0.0
    %v2157 = vstv %s2144
    %v2158 = vmul.f32 %v2157, %v2155
    %v2159 = vmul.f32 %v2157, %v2156
    %v2160 = vadd.f32 %v2142, %v2158
    %v2161 = vadd.f32 %v2143, %v2159
    %s2162 = sld [smem:[#allocation10 + $0x52]]
    %2163 = vrot.lane.b32.xlu0 %v529, 59
    %v2164 = vpop.permute.xlu0 %2163
    %2165 = vrot.lane.b32.xlu0 %v525, 59
    %v2166 = vpop.permute.xlu0 %2165
    %2167 = vrot.lane.b32.xlu0 %v530, 59
    %v2168 = vpop.permute.xlu0 %2167
    %v2169 = vsel %vm1265, %v2164, %v2166
    %v2170 = vsel %vm1265, %v2166, %v2168
    %v2173 = vsel %vm713, %v2169, 0.0
    %v2174 = vsel %vm714, %v2170, 0.0
    %v2175 = vstv %s2162
    %v2176 = vmul.f32 %v2175, %v2173
    %v2177 = vmul.f32 %v2175, %v2174
    %v2178 = vadd.f32 %v2160, %v2176
    %v2179 = vadd.f32 %v2161, %v2177
    %s2180 = sld [smem:[#allocation10 + $0x53]]
    %2181 = vrot.lane.b32.xlu0 %v529, 58
    %v2182 = vpop.permute.xlu0 %2181
    %2183 = vrot.lane.b32.xlu0 %v525, 58
    %v2184 = vpop.permute.xlu0 %2183
    %2185 = vrot.lane.b32.xlu0 %v530, 58
    %v2186 = vpop.permute.xlu0 %2185
    %v2187 = vsel %vm1284, %v2182, %v2184
    %v2188 = vsel %vm1284, %v2184, %v2186
    %v2191 = vsel %vm736, %v2187, 0.0
    %v2192 = vsel %vm737, %v2188, 0.0
    %v2193 = vstv %s2180
    %v2194 = vmul.f32 %v2193, %v2191
    %v2195 = vmul.f32 %v2193, %v2192
    %v2196 = vadd.f32 %v2178, %v2194
    %v2197 = vadd.f32 %v2179, %v2195
    %s2198 = sld [smem:[#allocation10 + $0x54]]
    %2199 = vrot.lane.b32.xlu0 %v529, 48
    %v2200 = vpop.permute.xlu0 %2199
    %2201 = vrot.lane.b32.xlu0 %v525, 48
    %v2202 = vpop.permute.xlu0 %2201
    %2203 = vrot.lane.b32.xlu0 %v530, 48
    %v2204 = vpop.permute.xlu0 %2203
    %v2205 = vsel %vm1303, %v2200, %v2202
    %v2206 = vsel %vm1303, %v2202, %v2204
    %v2209 = vsel %vm609, %v2205, 0.0
    %v2210 = vsel %vm610, %v2206, 0.0
    %v2211 = vstv %s2198
    %v2212 = vmul.f32 %v2211, %v2209
    %v2213 = vmul.f32 %v2211, %v2210
    %v2214 = vadd.f32 %v2196, %v2212
    %v2215 = vadd.f32 %v2197, %v2213
    %s2216 = sld [smem:[#allocation10 + $0x55]]
    %2217 = vrot.lane.b32.xlu0 %v529, 47
    %v2218 = vpop.permute.xlu0 %2217
    %2219 = vrot.lane.b32.xlu0 %v525, 47
    %v2220 = vpop.permute.xlu0 %2219
    %2221 = vrot.lane.b32.xlu0 %v530, 47
    %v2222 = vpop.permute.xlu0 %2221
    %v2223 = vsel %vm1322, %v2218, %v2220
    %v2224 = vsel %vm1322, %v2220, %v2222
    %v2227 = vsel %vm621, %v2223, 0.0
    %v2228 = vsel %vm622, %v2224, 0.0
    %v2229 = vstv %s2216
    %v2230 = vmul.f32 %v2229, %v2227
    %v2231 = vmul.f32 %v2229, %v2228
    %v2232 = vadd.f32 %v2214, %v2230
    %v2233 = vadd.f32 %v2215, %v2231
    %s2234 = sld [smem:[#allocation10 + $0x56]]
    %2235 = vrot.lane.b32.xlu0 %v529, 46
    %v2236 = vpop.permute.xlu0 %2235
    %2237 = vrot.lane.b32.xlu0 %v525, 46
    %v2238 = vpop.permute.xlu0 %2237
    %2239 = vrot.lane.b32.xlu0 %v530, 46
    %v2240 = vpop.permute.xlu0 %2239
    %v2241 = vsel %vm1341, %v2236, %v2238
    %v2242 = vsel %vm1341, %v2238, %v2240
    %v2245 = vsel %vm646, %v2241, 0.0
    %v2246 = vsel %vm647, %v2242, 0.0
    %v2247 = vstv %s2234
    %v2248 = vmul.f32 %v2247, %v2245
    %v2249 = vmul.f32 %v2247, %v2246
    %v2250 = vadd.f32 %v2232, %v2248
    %v2251 = vadd.f32 %v2233, %v2249
    %s2252 = sld [smem:[#allocation10 + $0x57]]
    %v2253 = vstv %s2252
    %v2254 = vmul.f32 %v2253, %v529
    %v2255 = vmul.f32 %v2253, %v525
    %v2256 = vmul.f32 %v2253, %v530
    %2260 = vrot.lane.b32.xlu0 %v2254, 45
    %v2261 = vpop.permute.xlu0 %2260
    %2262 = vrot.lane.b32.xlu0 %v2255, 45
    %v2263 = vpop.permute.xlu0 %2262
    %2264 = vrot.lane.b32.xlu0 %v2256, 45
    %v2265 = vpop.permute.xlu0 %2264
    %v2266 = vsel %vm1367, %v2261, %v2263
    %v2267 = vsel %vm1367, %v2263, %v2265
    %v2270 = vadd.f32 %v2250, %v2266
    %v2271 = vadd.f32 %v2251, %v2267
    %s2272 = sld [smem:[#allocation10 + $0x58]]
    %2273 = vrot.lane.b32.xlu0 %v529, 44
    %v2274 = vpop.permute.xlu0 %2273
    %2275 = vrot.lane.b32.xlu0 %v525, 44
    %v2276 = vpop.permute.xlu0 %2275
    %2277 = vrot.lane.b32.xlu0 %v530, 44
    %v2278 = vpop.permute.xlu0 %2277
    %v2279 = vsel %vm1381, %v2274, %v2276
    %v2280 = vsel %vm1381, %v2276, %v2278
    %v2283 = vsel %vm690, %v2279, 0.0
    %v2284 = vsel %vm691, %v2280, 0.0
    %v2285 = vstv %s2272
    %v2286 = vmul.f32 %v2285, %v2283
    %v2287 = vmul.f32 %v2285, %v2284
    %v2288 = vadd.f32 %v2270, %v2286
    %v2289 = vadd.f32 %v2271, %v2287
    %s2290 = sld [smem:[#allocation10 + $0x59]]
    %2291 = vrot.lane.b32.xlu0 %v529, 43
    %v2292 = vpop.permute.xlu0 %2291
    %2293 = vrot.lane.b32.xlu0 %v525, 43
    %v2294 = vpop.permute.xlu0 %2293
    %2295 = vrot.lane.b32.xlu0 %v530, 43
    %v2296 = vpop.permute.xlu0 %2295
    %v2297 = vsel %vm1400, %v2292, %v2294
    %v2298 = vsel %vm1400, %v2294, %v2296
    %v2301 = vsel %vm713, %v2297, 0.0
    %v2302 = vsel %vm714, %v2298, 0.0
    %v2303 = vstv %s2290
    %v2304 = vmul.f32 %v2303, %v2301
    %v2305 = vmul.f32 %v2303, %v2302
    %v2306 = vadd.f32 %v2288, %v2304
    %v2307 = vadd.f32 %v2289, %v2305
    %s2308 = sld [smem:[#allocation10 + $0x5a]]
    %2309 = vrot.lane.b32.xlu0 %v529, 42
    %v2310 = vpop.permute.xlu0 %2309
    %2311 = vrot.lane.b32.xlu0 %v525, 42
    %v2312 = vpop.permute.xlu0 %2311
    %2313 = vrot.lane.b32.xlu0 %v530, 42
    %v2314 = vpop.permute.xlu0 %2313
    %v2315 = vsel %vm1419, %v2310, %v2312
    %v2316 = vsel %vm1419, %v2312, %v2314
    %v2319 = vsel %vm736, %v2315, 0.0
    %v2320 = vsel %vm737, %v2316, 0.0
    %v2321 = vstv %s2308
    %v2322 = vmul.f32 %v2321, %v2319
    %v2323 = vmul.f32 %v2321, %v2320
    %v2324 = vadd.f32 %v2306, %v2322
    %v2325 = vadd.f32 %v2307, %v2323
    %s2326 = sld [smem:[#allocation10 + $0x5b]]
    %2327 = vrot.lane.b32.xlu0 %v529, 32
    %v2328 = vpop.permute.xlu0 %2327
    %2329 = vrot.lane.b32.xlu0 %v525, 32
    %v2330 = vpop.permute.xlu0 %2329
    %2331 = vrot.lane.b32.xlu0 %v530, 32
    %v2332 = vpop.permute.xlu0 %2331
    %v2333 = vsel %vm1438, %v2328, %v2330
    %v2334 = vsel %vm1438, %v2330, %v2332
    %v2337 = vsel %vm609, %v2333, 0.0
    %v2338 = vsel %vm610, %v2334, 0.0
    %v2339 = vstv %s2326
    %v2340 = vmul.f32 %v2339, %v2337
    %v2341 = vmul.f32 %v2339, %v2338
    %v2342 = vadd.f32 %v2324, %v2340
    %v2343 = vadd.f32 %v2325, %v2341
    %s2344 = sld [smem:[#allocation10 + $0x5c]]
    %2345 = vrot.lane.b32.xlu0 %v529, 31
    %v2346 = vpop.permute.xlu0 %2345
    %2347 = vrot.lane.b32.xlu0 %v525, 31
    %v2348 = vpop.permute.xlu0 %2347
    %2349 = vrot.lane.b32.xlu0 %v530, 31
    %v2350 = vpop.permute.xlu0 %2349
    %v2351 = vsel %vm1457, %v2346, %v2348
    %v2352 = vsel %vm1457, %v2348, %v2350
    %v2355 = vsel %vm621, %v2351, 0.0
    %v2356 = vsel %vm622, %v2352, 0.0
    %v2357 = vstv %s2344
    %v2358 = vmul.f32 %v2357, %v2355
    %v2359 = vmul.f32 %v2357, %v2356
    %v2360 = vadd.f32 %v2342, %v2358
    %v2361 = vadd.f32 %v2343, %v2359
    %s2362 = sld [smem:[#allocation10 + $0x5d]]
    %2363 = vrot.lane.b32.xlu0 %v529, 30
    %v2364 = vpop.permute.xlu0 %2363
    %2365 = vrot.lane.b32.xlu0 %v525, 30
    %v2366 = vpop.permute.xlu0 %2365
    %2367 = vrot.lane.b32.xlu0 %v530, 30
    %v2368 = vpop.permute.xlu0 %2367
    %v2369 = vsel %vm1476, %v2364, %v2366
    %v2370 = vsel %vm1476, %v2366, %v2368
    %v2373 = vsel %vm646, %v2369, 0.0
    %v2374 = vsel %vm647, %v2370, 0.0
    %v2375 = vstv %s2362
    %v2376 = vmul.f32 %v2375, %v2373
    %v2377 = vmul.f32 %v2375, %v2374
    %v2378 = vadd.f32 %v2360, %v2376
    %v2379 = vadd.f32 %v2361, %v2377
    %s2380 = sld [smem:[#allocation10 + $0x5e]]
    %v2381 = vstv %s2380
    %v2382 = vmul.f32 %v2381, %v529
    %v2383 = vmul.f32 %v2381, %v525
    %v2384 = vmul.f32 %v2381, %v530
    %2388 = vrot.lane.b32.xlu0 %v2382, 29
    %v2389 = vpop.permute.xlu0 %2388
    %2390 = vrot.lane.b32.xlu0 %v2383, 29
    %v2391 = vpop.permute.xlu0 %2390
    %2392 = vrot.lane.b32.xlu0 %v2384, 29
    %v2393 = vpop.permute.xlu0 %2392
    %v2394 = vsel %vm1502, %v2389, %v2391
    %v2395 = vsel %vm1502, %v2391, %v2393
    %v2398 = vadd.f32 %v2378, %v2394
    %v2399 = vadd.f32 %v2379, %v2395
    %s2400 = sld [smem:[#allocation10 + $0x5f]]
    %2401 = vrot.lane.b32.xlu0 %v529, 28
    %v2402 = vpop.permute.xlu0 %2401
    %2403 = vrot.lane.b32.xlu0 %v525, 28
    %v2404 = vpop.permute.xlu0 %2403
    %2405 = vrot.lane.b32.xlu0 %v530, 28
    %v2406 = vpop.permute.xlu0 %2405
    %v2407 = vsel %vm1516, %v2402, %v2404
    %v2408 = vsel %vm1516, %v2404, %v2406
    %v2411 = vsel %vm690, %v2407, 0.0
    %v2412 = vsel %vm691, %v2408, 0.0
    %v2413 = vstv %s2400
    %v2414 = vmul.f32 %v2413, %v2411
    %v2415 = vmul.f32 %v2413, %v2412
    %v2416 = vadd.f32 %v2398, %v2414
    %v2417 = vadd.f32 %v2399, %v2415
    %s2418 = sld [smem:[#allocation10 + $0x60]]
    %2419 = vrot.lane.b32.xlu0 %v529, 27
    %v2420 = vpop.permute.xlu0 %2419
    %2421 = vrot.lane.b32.xlu0 %v525, 27
    %v2422 = vpop.permute.xlu0 %2421
    %2423 = vrot.lane.b32.xlu0 %v530, 27
    %v2424 = vpop.permute.xlu0 %2423
    %v2425 = vsel %vm1535, %v2420, %v2422
    %v2426 = vsel %vm1535, %v2422, %v2424
    %v2429 = vsel %vm713, %v2425, 0.0
    %v2430 = vsel %vm714, %v2426, 0.0
    %v2431 = vstv %s2418
    %v2432 = vmul.f32 %v2431, %v2429
    %v2433 = vmul.f32 %v2431, %v2430
    %v2434 = vadd.f32 %v2416, %v2432
    %v2435 = vadd.f32 %v2417, %v2433
    %s2436 = sld [smem:[#allocation10 + $0x61]]
    %2437 = vrot.lane.b32.xlu0 %v529, 26
    %v2438 = vpop.permute.xlu0 %2437
    %2439 = vrot.lane.b32.xlu0 %v525, 26
    %v2440 = vpop.permute.xlu0 %2439
    %2441 = vrot.lane.b32.xlu0 %v530, 26
    %v2442 = vpop.permute.xlu0 %2441
    %v2443 = vsel %vm1554, %v2438, %v2440
    %v2444 = vsel %vm1554, %v2440, %v2442
    %v2447 = vsel %vm736, %v2443, 0.0
    %v2448 = vsel %vm737, %v2444, 0.0
    %v2449 = vstv %s2436
    %v2450 = vmul.f32 %v2449, %v2447
    %v2451 = vmul.f32 %v2449, %v2448
    %v2452 = vadd.f32 %v2434, %v2450
    %v2453 = vadd.f32 %v2435, %v2451
    %v2454 = vxor.u32 %v2452, 2147483648
    %v2455 = vxor.u32 %v2453, 2147483648
    %v2456 = vmul.f32 %v2454, 1.442695
    %v2457 = vpow.pop %v2456
    %v2458 = vmul.f32 %v2455, 1.442695
    %v2459 = vpow.pop %v2458
    %v2460 = vadd.f32 %v2457, 1.0
    %v2461 = vadd.f32 %v2459, 1.0
    %v2462 = vrcp.pop %v2460
    %v2463 = vmul.f32 %v2460, %v2462
    %v2464 = vsub.f32 1.0, %v2463
    %v2465 = vmul.f32 %v2462, %v2464
    %v2466 = vadd.f32 %v2462, %v2465
    %vm2467 = vweird.f32 %v2460
    %vm2468 = vweird.f32 %v2462
    %vm2469 = vmor %vm2467, %vm2468
    %v2470 = vsel %vm2469, %v2462, %v2466
    %v2471 = vand.u32 2147483647, %v2460
    %vm2472 = vcmp.eq.f32.partialorder %v2471, 8.507059e+37
    %v2473 = vand.u32 %v2460, 2147483648
    %v2474 = vor.u32 1.1754944e-38, %v2473
    %v2475 = vsel %vm2472, %v2474, %v2470
    %v2476 = vmul.f32 1.0, %v2475
    %v2477 = vrcp.pop %v2461
    %v2478 = vmul.f32 %v2461, %v2477
    %v2479 = vsub.f32 1.0, %v2478
    %v2480 = vmul.f32 %v2477, %v2479
    %v2481 = vadd.f32 %v2477, %v2480
    %vm2482 = vweird.f32 %v2461
    %vm2483 = vweird.f32 %v2477
    %vm2484 = vmor %vm2482, %vm2483
    %v2485 = vsel %vm2484, %v2477, %v2481
    %v2486 = vand.u32 2147483647, %v2461
    %vm2487 = vcmp.eq.f32.partialorder %v2486, 8.507059e+37
    %v2488 = vand.u32 %v2461, 2147483648
    %v2489 = vor.u32 1.1754944e-38, %v2488
    %v2490 = vsel %vm2487, %v2489, %v2485
    %v2491 = vmul.f32 1.0, %v2490
    %v2494 = vrot.slane %v2491, 7
    %vm2495 = vcmask 1040384
    %v2496 = vsel %vm2495, %v2476, %v2494
    %v2497 = vsel %vm221, %v2476, %v2494
    %v2498 = vrot.slane %v2497, 1
    %v2499 = vperm.slane %v2496, 0
    %v2500 = vperm.slane %v2496, 1
    %v2501 = vperm.slane %v2498, 0
    %v2502 = vperm.slane %v2498, 1
    %v2507 = vmul.f32 %v406, %v2499
    %v2508 = vmul.f32 %v407, %v2500
    %v2509 = vmul.f32 %v408, %v2499
    %v2510 = vmul.f32 %v409, %v2500
    %v2511 = vmul.f32 %v410, %v2499
    %v2512 = vmul.f32 %v411, %v2500
    %v2513 = vmul.f32 %v412, %v2499
    %v2514 = vmul.f32 %v413, %v2500
    %v2515 = vmul.f32 %v414, %v2501
    %v2516 = vmul.f32 %v415, %v2502
    %v2517 = vmul.f32 %v416, %v2501
    %v2518 = vmul.f32 %v417, %v2502
    %v2519 = vmul.f32 %v418, %v2501
    %v2520 = vmul.f32 %v419, %v2502
    %v2521 = vmul.f32 %v420, %v2501
    %v2522 = vmul.f32 %v421, %v2502
    %2523 = vst [vmem:[#allocation11] sm:$0xff] %v2507
    %2524 = vst [vmem:[#allocation11 + $0x8] sm:$0xff] %v2508
    %2525 = vst [vmem:[#allocation11 + $0x10] sm:$0xff] %v2509
    %2526 = vst [vmem:[#allocation11 + $0x18] sm:$0xff] %v2510
    %2527 = vst [vmem:[#allocation11 + $0x20] sm:$0xff] %v2511
    %2528 = vst [vmem:[#allocation11 + $0x28] sm:$0xff] %v2512
    %2529 = vst [vmem:[#allocation11 + $0x30] sm:$0xff] %v2513
    %2530 = vst [vmem:[#allocation11 + $0x38] sm:$0xff] %v2514
    %2531 = vst [vmem:[#allocation11 + $0x40] sm:$0xff] %v2515
    %2532 = vst [vmem:[#allocation11 + $0x48] sm:$0xff] %v2516
    %2533 = vst [vmem:[#allocation11 + $0x50] sm:$0xff] %v2517
    %2534 = vst [vmem:[#allocation11 + $0x58] sm:$0xff] %v2518
    %2535 = vst [vmem:[#allocation11 + $0x60] sm:$0xff] %v2519
    %2536 = vst [vmem:[#allocation11 + $0x68] sm:$0xff] %v2520
    %2537 = vst [vmem:[#allocation11 + $0x70] sm:$0xff] %v2521
    %2538 = vst [vmem:[#allocation11 + $0x78] sm:$0xff] %v2522
    // Predicated region
    $region42: #{tpu_custom_call.1} parent=1 // pred_check
      _
    $region43: #{tpu_custom_call.1} parent=1 // pred_check_branch
      %2540 = sbr.rel (0) target = $region45
    $region44: #{tpu_custom_call.1} parent=1 // pred_region
      %2542 = vsyncadd [#allocation4], 0
      %s2543 = sshll.u32 [#allocation11], 4
      %s2544 = int_to_ptr.vmem [resolvable:$true] %s2543
      %s2545 = sshll.u32 %s6, 4
      %s2546 = int_to_ptr.hbm [resolvable:$true] %s2545
      %2551 = dma.vmem_to_hbm [thread:$0]  %s2544, 2048, %s2546, [#allocation4], 256, 256, 16
    $region45: #{tpu_custom_call.1} parent=1 // pred_fallthru
      _
    // Predicated region
    $region46: #{tpu_custom_call.1} parent=1 // pred_check
      _
    $region47: #{tpu_custom_call.1} parent=1 // pred_check_branch
      %2553 = sbr.rel (0) target = $region49
    $region48: #{tpu_custom_call.1} parent=1 // pred_region
      %2555 = dma.done [#allocation4], 2048
    $region49: #{tpu_custom_call.1} parent=1 // pred_fallthru
      _
    %2556 = vsyncpa [#allocation3], 1
    %2557 = vsyncpa [#allocation8], 1
    %2558 = vsyncpa [#allocation4], 1
    %2559 = vsyncpa [#allocation5], 1
    %2560 = vsyncpa [#allocation6], 1

</llo_original>
